<compile_context>
chip_gen: v7x
topology: tpu7x:2x2x1
jax: 0.10.0
libtpu: 0.0.40
codegen_flags: <defaults>
</compile_context>

<pallas_src>
import math
import functools

import jax
import jax.numpy as jnp
from jax.experimental import pallas as pl
from jax.experimental.pallas import tpu as pltpu

NUM_GROUPS = 32
EPS = 1e-6
VMEM_LIMIT_BYTES = 48 * 1024 * 1024   # fits v7x 64 MiB physical VMEM with headroom


def _pick_tile(n, target):
    """Largest divisor of n that is <= target and a multiple of 8 (or n itself)."""
    for d in range(min(n, target), 0, -1):
        if n % d == 0 and (d % 8 == 0 or d == n):
            return d
    return n


# ---------------------------------------------------------------------------
# Pass 1: GroupNorm statistics -> per-channel affine (scale, shift)
# ---------------------------------------------------------------------------
def _gn_stats_kernel(x_ref, gamma_ref, beta_ref, mg_ref,
                     scale_ref, shift_ref, s_acc, mean_s, *, inv_count):
    # grid = (B, 2, T): pass p=0 accumulates sum(x), pass p=1 accumulates
    # sum((x - mean)^2) -> two-pass variance (no E[x^2]-E[x]^2 cancellation).
    p = pl.program_id(1)
    t = pl.program_id(2)
    last_t = t == pl.num_programs(2) - 1

    x = x_ref[0].astype(jnp.float32)          # (ts, C)
    mg = mg_ref[...]                          # (C, G) one-hot group membership

    @pl.when(t == 0)
    def _():
        s_acc[...] = jnp.zeros_like(s_acc)

    @pl.when(p == 0)
    def _():
        s_acc[...] += jnp.sum(x, axis=0, keepdims=True)

    @pl.when(p == 1)
    def _():
        d = x - mean_s[...]
        s_acc[...] += jnp.sum(d * d, axis=0, keepdims=True)

    @pl.when(jnp.logical_and(p == 0, last_t))
    def _():
        g_sum = jnp.dot(s_acc[...], mg, preferred_element_type=jnp.float32)   # (1, G)
        mean_g = g_sum * inv_count
        # broadcast group mean back to channels (contract the G axes, no transpose)
        mean_s[...] = jax.lax.dot_general(
            mean_g, mg, (((1,), (1,)), ((), ())),
            preferred_element_type=jnp.float32)                               # (1, C)

    @pl.when(jnp.logical_and(p == 1, last_t))
    def _():
        g_ss = jnp.dot(s_acc[...], mg, preferred_element_type=jnp.float32)    # (1, G)
        var_c = jax.lax.dot_general(
            g_ss * inv_count, mg, (((1,), (1,)), ((), ())),
            preferred_element_type=jnp.float32)                               # (1, C)
        inv_std = jax.lax.rsqrt(var_c + EPS)
        sc = inv_std * gamma_ref[...]
        scale_ref[0] = sc
        shift_ref[0] = beta_ref[...] - mean_s[...] * sc


# ---------------------------------------------------------------------------
# Pass 2: flash-style tiled single-head attention + proj_out + residual
# ---------------------------------------------------------------------------
def _flash_attn_kernel(xq_ref, xkv_ref, scale_ref, shift_ref,
                       wq_ref, bq_ref, wkv_ref, bkv_ref, wp_ref, bp_ref,
                       o_ref, q_s, m_s, l_s, acc_s, *, attn_scale):
    j = pl.program_id(2)
    last_kv = j == pl.num_programs(2) - 1
    C = acc_s.shape[-1]

    sc = scale_ref[0]                 # (1, C) GroupNorm per-channel scale
    sh = shift_ref[0]                 # (1, C) GroupNorm per-channel shift

    @pl.when(j == 0)
    def _():
        # q for this query tile, computed once and cached across kv tiles
        hq = (xq_ref[0].astype(jnp.float32) * sc + sh).astype(jnp.bfloat16)
        q = jnp.dot(hq, wq_ref[...], preferred_element_type=jnp.float32) + bq_ref[...]
        q_s[...] = (q * attn_scale).astype(jnp.bfloat16)     # fold 1/sqrt(C) into q
        m_s[...] = jnp.full_like(m_s, -jnp.inf)
        l_s[...] = jnp.zeros_like(l_s)
        acc_s[...] = jnp.zeros_like(acc_s)

    # normalize the kv tile, project k & v with a single fused (C, 2C) matmul
    hk = (xkv_ref[0].astype(jnp.float32) * sc + sh).astype(jnp.bfloat16)
    kv = jnp.dot(hk, wkv_ref[...], preferred_element_type=jnp.float32) + bkv_ref[...]
    k = kv[:, :C].astype(jnp.bfloat16)
    v = kv[:, C:].astype(jnp.bfloat16)

    # scores: contract the channel dims of q and k directly (no k transpose)
    s = jax.lax.dot_general(q_s[...], k, (((1,), (1,)), ((), ())),
                            preferred_element_type=jnp.float32)        # (tq, tk)

    m_prev = m_s[...]
    m_new = jnp.maximum(m_prev, jnp.max(s, axis=-1, keepdims=True))
    alpha = jnp.exp(m_prev - m_new)
    p = jnp.exp(s - m_new)                                             # unnormalized
    l_s[...] = alpha * l_s[...] + jnp.sum(p, axis=-1, keepdims=True)
    acc_s[...] = alpha * acc_s[...] + jnp.dot(
        p.astype(jnp.bfloat16), v, preferred_element_type=jnp.float32)
    m_s[...] = m_new

    @pl.when(last_kv)
    def _():
        # deferred softmax normalization (EUP reciprocal) + proj_out + residual
        out = acc_s[...] * pl.reciprocal(l_s[...], approx=True)
        proj = jnp.dot(out.astype(jnp.bfloat16), wp_ref[...],
                       preferred_element_type=jnp.float32) + bp_ref[...]
        o_ref[0] = (xq_ref[0].astype(jnp.float32) + proj).astype(o_ref.dtype)


# ---------------------------------------------------------------------------
# Wrapper
# ---------------------------------------------------------------------------
def memory_efficient_attn_block(x, params, *, tq=256, tk=512, stats_tile=512):
    """x: NCHW float32; params: GroupNorm + 1x1-conv weights. Returns NCHW."""
    B, C, H, W = x.shape
    N = H * W
    G = NUM_GROUPS
    assert C % G == 0, "GroupNorm(num_groups=32) requires C % 32 == 0"
    # TODO(synk): pad C up to a multiple of 128 for lane-dense vregs when C < 128.

    tq = _pick_tile(N, tq)
    tk = _pick_tile(N, tk)
    ts = _pick_tile(N, stats_tile)

    # NCHW -> (B, N, C): tokens on sublanes, channels on the lane axis.
    x_t = jnp.transpose(x, (0, 2, 3, 1)).reshape(B, N, C)

    # group-membership one-hot (C, G)
    mg = (jnp.arange(C)[:, None] // (C // G) == jnp.arange(G)[None, :]).astype(jnp.float32)

    # ---- pass 1: per-batch GroupNorm scale / shift --------------------------
    inv_count = 1.0 / float(N * (C // G))
    scale, shift = pl.pallas_call(
        functools.partial(_gn_stats_kernel, inv_count=inv_count),
        out_shape=(jax.ShapeDtypeStruct((B, 1, C), jnp.float32),
                   jax.ShapeDtypeStruct((B, 1, C), jnp.float32)),
        grid=(B, 2, N // ts),
        in_specs=[
            pl.BlockSpec((1, ts, C), lambda b, p, t: (b, t, 0)),
            pl.BlockSpec((1, C), lambda b, p, t: (0, 0)),
            pl.BlockSpec((1, C), lambda b, p, t: (0, 0)),
            pl.BlockSpec((C, G), lambda b, p, t: (0, 0)),
        ],
        out_specs=(pl.BlockSpec((1, 1, C), lambda b, p, t: (b, 0, 0)),
                   pl.BlockSpec((1, 1, C), lambda b, p, t: (b, 0, 0))),
        scratch_shapes=[pltpu.VMEM((1, C), jnp.float32),
                        pltpu.VMEM((1, C), jnp.float32)],
        compiler_params=pltpu.CompilerParams(
            dimension_semantics=("parallel", "arbitrary", "arbitrary")),
    )(x_t, params["gamma"], params["beta"], mg)

    # ---- pass 2: flash attention --------------------------------------------
    wq = params["wq_t"].astype(jnp.bfloat16)
    wkv = jnp.concatenate([params["wk_t"], params["wv_t"]], axis=1).astype(jnp.bfloat16)
    wp = params["wp_t"].astype(jnp.bfloat16)
    bkv = jnp.concatenate([params["bk"], params["bv"]], axis=1)

    full2d = lambda shape: pl.BlockSpec(shape, lambda b, i, j: (0, 0))

    out = pl.pallas_call(
        functools.partial(_flash_attn_kernel, attn_scale=1.0 / math.sqrt(C)),
        out_shape=jax.ShapeDtypeStruct((B, N, C), x.dtype),
        grid=(B, N // tq, N // tk),
        in_specs=[
            pl.BlockSpec((1, tq, C), lambda b, i, j: (b, i, 0)),   # x  (query tile)
            # TODO(synk): raise kv pipeline depth (pipeline_mode=pl.Buffered(3))
            # if profiles show exposed DMA under the score matmul.
            pl.BlockSpec((1, tk, C), lambda b, i, j: (b, j, 0)),   # x  (kv tile)
            pl.BlockSpec((1, 1, C), lambda b, i, j: (b, 0, 0)),    # GN scale
            pl.BlockSpec((1, 1, C), lambda b, i, j: (b, 0, 0)),    # GN shift
            full2d((C, C)), full2d((1, C)),                        # Wq^T (bf16), bq
            full2d((C, 2 * C)), full2d((1, 2 * C)),                # Wkv^T (bf16), bkv
            full2d((C, C)), full2d((1, C)),                        # Wproj^T (bf16), bp
        ],
        out_specs=pl.BlockSpec((1, tq, C), lambda b, i, j: (b, i, 0)),
        scratch_shapes=[
            pltpu.VMEM((tq, C), jnp.bfloat16),    # cached scaled q
            pltpu.VMEM((tq, 1), jnp.float32),     # running max
            pltpu.VMEM((tq, 1), jnp.float32),     # running sum
            pltpu.VMEM((tq, C), jnp.float32),     # output accumulator
        ],
        compiler_params=pltpu.CompilerParams(
            dimension_semantics=("parallel", "parallel", "arbitrary"),
            vmem_limit_bytes=VMEM_LIMIT_BYTES),
    )(x_t, x_t, scale, shift,
      wq, params["bq"], wkv, bkv, wp, params["bp"])

    # (B, N, C) -> NCHW
    return jnp.transpose(out.reshape(B, H, W, C), (0, 3, 1, 2))


# ---------------------------------------------------------------------------
# Pure-JAX reference (f32, mirrors the PyTorch forward)
# ---------------------------------------------------------------------------
def _reference(x, params):
    B, C, H, W = x.shape
    G = NUM_GROUPS
    xr = x.reshape(B, G, C // G, H, W)
    mean = xr.mean(axis=(2, 3, 4), keepdims=True)
    var = xr.var(axis=(2, 3, 4), keepdims=True)
    hn = (xr - mean) / jnp.sqrt(var + EPS)
    hn = hn.reshape(B, C, H, W)
    hn = hn * params["gamma"][0][None, :, None, None] + params["beta"][0][None, :, None, None]
    hseq = jnp.transpose(hn, (0, 2, 3, 1)).reshape(B, H * W, C)
    q = hseq @ params["wq_t"] + params["bq"]
    k = hseq @ params["wk_t"] + params["bk"]
    v = hseq @ params["wv_t"] + params["bv"]
    scores = jnp.einsum("bnc,bmc->bnm", q, k) / math.sqrt(C)
    p = jax.nn.softmax(scores, axis=-1)
    out = jnp.einsum("bnm,bmc->bnc", p, v)
    proj = out @ params["wp_t"] + params["bp"]
    y = jnp.transpose(proj.reshape(B, H, W, C), (0, 3, 1, 2))
    return x + y


def _init_params(key, C):
    # 1x1-conv weights stored pre-transposed as (C_in, C_out) so the kernels
    # compute h @ W^T via a plain matmul. GroupNorm affine = PyTorch init.
    keys = jax.random.split(key, 8)
    s = 1.0 / math.sqrt(C)
    return {
        "gamma": jnp.ones((1, C), jnp.float32),
        "beta": jnp.zeros((1, C), jnp.float32),
        "wq_t": jax.random.normal(keys[0], (C, C), jnp.float32) * s,
        "bq": jax.random.normal(keys[1], (1, C), jnp.float32) * 0.01,
        "wk_t": jax.random.normal(keys[2], (C, C), jnp.float32) * s,
        "bk": jax.random.normal(keys[3], (1, C), jnp.float32) * 0.01,
        "wv_t": jax.random.normal(keys[4], (C, C), jnp.float32) * s,
        "bv": jax.random.normal(keys[5], (1, C), jnp.float32) * 0.01,
        "wp_t": jax.random.normal(keys[6], (C, C), jnp.float32) * s,
        "bp": jax.random.normal(keys[7], (1, C), jnp.float32) * 0.01,
    }


if __name__ == "__main__":
    key = jax.random.PRNGKey(0)
    k_x, k_p = jax.random.split(key)

    # C must be divisible by 32 (GroupNorm); C=128 keeps the lane axis dense.
    # N = 32*32 = 1024 exercises multiple q tiles (4), kv tiles (2) and stats
    # tiles (2) per batch element.
    B, C, H, W = 2, 128, 32, 32
    x = jax.random.normal(k_x, (B, C, H, W), jnp.float32)
    params = _init_params(k_p, C)

    fn = jax.jit(memory_efficient_attn_block)
    y = jax.block_until_ready(fn(x, params))
    y_ref = jax.block_until_ready(_reference(x, params))

    assert y.shape == x.shape
    err = float(jnp.max(jnp.abs(y - y_ref)))
    # tolerance sized for bf16 MXU operands (f32 accumulation) vs f32 reference
    assert jnp.allclose(y, y_ref, atol=5e-2, rtol=5e-2), f"max abs err = {err}"
    print("KERNEL_OK")
</pallas_src>

<mosaic_0001>
module attributes {stable_mosaic.version = 11 : i64} {
  func.func @_gn_stats_kernel(%arg0: i32, %arg1: i32, %arg2: i32, %arg3: memref<1x512x128xf32, #tpu.memory_space<vmem>>, %arg4: memref<1x128xf32, #tpu.memory_space<vmem>>, %arg5: memref<1x128xf32, #tpu.memory_space<vmem>>, %arg6: memref<128x32xf32, #tpu.memory_space<vmem>>, %arg7: memref<1x1x128xf32, #tpu.memory_space<vmem>>, %arg8: memref<1x1x128xf32, #tpu.memory_space<vmem>>, %arg9: memref<1x128xf32, #tpu.memory_space<vmem>>, %arg10: memref<1x128xf32, #tpu.memory_space<vmem>>) attributes {dimension_semantics = [#tpu.dimension_semantics<parallel>, #tpu.dimension_semantics<arbitrary>, #tpu.dimension_semantics<arbitrary>], iteration_bounds = array<i64: 2, 2, 2>, scalar_prefetch = 0 : i64, scratch_operands = 2 : i64, tpu.core_type = #tpu.core_type<tc>, window_params = [{transform_indices = @transform_0, window_bounds = array<i64: 1, 512, 128>}, {pipeline_mode = #tpu.pipeline_mode<synchronous>, transform_indices = @transform_1, window_bounds = array<i64: 1, 128>}, {pipeline_mode = #tpu.pipeline_mode<synchronous>, transform_indices = @transform_2, window_bounds = array<i64: 1, 128>}, {pipeline_mode = #tpu.pipeline_mode<synchronous>, transform_indices = @transform_3, window_bounds = array<i64: 128, 32>}, {transform_indices = @transform_4, window_bounds = array<i64: 1, 1, 128>}, {transform_indices = @transform_5, window_bounds = array<i64: 1, 1, 128>}]} {
    %c1_i32 = arith.constant 1 : i32
    %0 = arith.cmpi eq, %arg2, %c1_i32 : i32
    %c0 = arith.constant 0 : index
    %c0_0 = arith.constant 0 : index
    %c0_1 = arith.constant 0 : index
    %1 = vector.load %arg3[%c0, %c0_0, %c0_1] : memref<1x512x128xf32, #tpu.memory_space<vmem>>, vector<1x512x128xf32>
    %2 = vector.shape_cast %1 : vector<1x512x128xf32> to vector<512x128xf32>
    %c0_2 = arith.constant 0 : index
    %c0_3 = arith.constant 0 : index
    %3 = vector.load %arg6[%c0_2, %c0_3] : memref<128x32xf32, #tpu.memory_space<vmem>>, vector<128x32xf32>
    %c0_i32 = arith.constant 0 : i32
    %4 = arith.cmpi eq, %arg2, %c0_i32 : i32
    %5 = arith.extui %4 : i1 to i32
    %c0_i32_4 = arith.constant 0 : i32
    %6 = arith.cmpi ne, %5, %c0_i32_4 : i32
    scf.if %6 {
      %cst = arith.constant 0.000000e+00 : f32
      %21 = vector.broadcast %cst : f32 to vector<1x128xf32>
      %c0_13 = arith.constant 0 : index
      %c0_14 = arith.constant 0 : index
      %22 = vector.load %arg9[%c0_13, %c0_14] : memref<1x128xf32, #tpu.memory_space<vmem>>, vector<1x128xf32>
      tpu.vector_store %arg9[%c0_13, %c0_14], %21 {strides = array<i32>} : memref<1x128xf32, #tpu.memory_space<vmem>>, vector<1x128xf32>,
    } else {
    }
    %c0_i32_5 = arith.constant 0 : i32
    %7 = arith.cmpi eq, %arg1, %c0_i32_5 : i32
    %8 = arith.extui %7 : i1 to i32
    %c0_i32_6 = arith.constant 0 : i32
    %9 = arith.cmpi ne, %8, %c0_i32_6 : i32
    scf.if %9 {
      %c0_13 = arith.constant 0 : index
      %c0_14 = arith.constant 0 : index
      %21 = vector.load %arg9[%c0_13, %c0_14] : memref<1x128xf32, #tpu.memory_space<vmem>>, vector<1x128xf32>
      %cst = arith.constant dense<0.000000e+00> : vector<128xf32>
      %22 = vector.multi_reduction <add>, %2, %cst [0] : vector<512x128xf32> to vector<128xf32>
      %23 = vector.shape_cast %22 : vector<128xf32> to vector<1x128xf32>
      %24 = arith.addf %21, %23 : vector<1x128xf32>
      %c0_15 = arith.constant 0 : index
      %c0_16 = arith.constant 0 : index
      %25 = vector.load %arg9[%c0_15, %c0_16] : memref<1x128xf32, #tpu.memory_space<vmem>>, vector<1x128xf32>
      tpu.vector_store %arg9[%c0_15, %c0_16], %24 {strides = array<i32>} : memref<1x128xf32, #tpu.memory_space<vmem>>, vector<1x128xf32>,
    } else {
    }
    %c1_i32_7 = arith.constant 1 : i32
    %10 = arith.cmpi eq, %arg1, %c1_i32_7 : i32
    %11 = arith.extui %10 : i1 to i32
    %c0_i32_8 = arith.constant 0 : i32
    %12 = arith.cmpi ne, %11, %c0_i32_8 : i32
    scf.if %12 {
      %c0_13 = arith.constant 0 : index
      %c0_14 = arith.constant 0 : index
      %21 = vector.load %arg10[%c0_13, %c0_14] : memref<1x128xf32, #tpu.memory_space<vmem>>, vector<1x128xf32>
      %22 = vector.broadcast %21 : vector<1x128xf32> to vector<512x128xf32>
      %23 = arith.subf %2, %22 : vector<512x128xf32>
      %c0_15 = arith.constant 0 : index
      %c0_16 = arith.constant 0 : index
      %24 = vector.load %arg9[%c0_15, %c0_16] : memref<1x128xf32, #tpu.memory_space<vmem>>, vector<1x128xf32>
      %25 = arith.mulf %23, %23 : vector<512x128xf32>
      %cst = arith.constant dense<0.000000e+00> : vector<128xf32>
      %26 = vector.multi_reduction <add>, %25, %cst [0] : vector<512x128xf32> to vector<128xf32>
      %27 = vector.shape_cast %26 : vector<128xf32> to vector<1x128xf32>
      %28 = arith.addf %24, %27 : vector<1x128xf32>
      %c0_17 = arith.constant 0 : index
      %c0_18 = arith.constant 0 : index
      %29 = vector.load %arg9[%c0_17, %c0_18] : memref<1x128xf32, #tpu.memory_space<vmem>>, vector<1x128xf32>
      tpu.vector_store %arg9[%c0_17, %c0_18], %28 {strides = array<i32>} : memref<1x128xf32, #tpu.memory_space<vmem>>, vector<1x128xf32>,
    } else {
    }
    %c0_i32_9 = arith.constant 0 : i32
    %13 = arith.cmpi eq, %arg1, %c0_i32_9 : i32
    %14 = arith.andi %13, %0 : i1
    %15 = arith.extui %14 : i1 to i32
    %c0_i32_10 = arith.constant 0 : i32
    %16 = arith.cmpi ne, %15, %c0_i32_10 : i32
    scf.if %16 {
      %c0_13 = arith.constant 0 : index
      %c0_14 = arith.constant 0 : index
      %21 = vector.load %arg9[%c0_13, %c0_14] : memref<1x128xf32, #tpu.memory_space<vmem>>, vector<1x128xf32>
      %cst = arith.constant dense<0.000000e+00> : vector<1x32xf32>
      %22 = tpu.matmul %21, %3, %cst {dimension_numbers = #tpu.dot_dimension_numbers<[1], [0], [0], [1], [0, 0, 1, 1], [], []>} : vector<1x128xf32>, vector<128x32xf32>, vector<1x32xf32> -> vector<1x32xf32>
      %cst_15 = arith.constant 2.44140625E-4 : f32
      %23 = vector.broadcast %cst_15 : f32 to vector<1x32xf32>
      %24 = arith.mulf %22, %23 : vector<1x32xf32>
      %cst_16 = arith.constant dense<0.000000e+00> : vector<1x128xf32>
      %25 = tpu.matmul %24, %3, %cst_16 {dimension_numbers = #tpu.dot_dimension_numbers<[1], [1], [0], [0], [0, 0, 1, 0], [], []>} : vector<1x32xf32>, vector<128x32xf32>, vector<1x128xf32> -> vector<1x128xf32>
      %c0_17 = arith.constant 0 : index
      %c0_18 = arith.constant 0 : index
      %26 = vector.load %arg10[%c0_17, %c0_18] : memref<1x128xf32, #tpu.memory_space<vmem>>, vector<1x128xf32>
      tpu.vector_store %arg10[%c0_17, %c0_18], %25 {strides = array<i32>} : memref<1x128xf32, #tpu.memory_space<vmem>>, vector<1x128xf32>,
    } else {
    }
    %c1_i32_11 = arith.constant 1 : i32
    %17 = arith.cmpi eq, %arg1, %c1_i32_11 : i32
    %18 = arith.andi %17, %0 : i1
    %19 = arith.extui %18 : i1 to i32
    %c0_i32_12 = arith.constant 0 : i32
    %20 = arith.cmpi ne, %19, %c0_i32_12 : i32
    scf.if %20 {
      %c0_13 = arith.constant 0 : index
      %c0_14 = arith.constant 0 : index
      %21 = vector.load %arg9[%c0_13, %c0_14] : memref<1x128xf32, #tpu.memory_space<vmem>>, vector<1x128xf32>
      %cst = arith.constant dense<0.000000e+00> : vector<1x32xf32>
      %22 = tpu.matmul %21, %3, %cst {dimension_numbers = #tpu.dot_dimension_numbers<[1], [0], [0], [1], [0, 0, 1, 1], [], []>} : vector<1x128xf32>, vector<128x32xf32>, vector<1x32xf32> -> vector<1x32xf32>
      %cst_15 = arith.constant 2.44140625E-4 : f32
      %23 = vector.broadcast %cst_15 : f32 to vector<1x32xf32>
      %24 = arith.mulf %22, %23 : vector<1x32xf32>
      %cst_16 = arith.constant dense<0.000000e+00> : vector<1x128xf32>
      %25 = tpu.matmul %24, %3, %cst_16 {dimension_numbers = #tpu.dot_dimension_numbers<[1], [1], [0], [0], [0, 0, 1, 0], [], []>} : vector<1x32xf32>, vector<128x32xf32>, vector<1x128xf32> -> vector<1x128xf32>
      %cst_17 = arith.constant 9.99999997E-7 : f32
      %26 = vector.broadcast %cst_17 : f32 to vector<1x128xf32>
      %27 = arith.addf %25, %26 : vector<1x128xf32>
      %28 = math.rsqrt %27 : vector<1x128xf32>
      %c0_18 = arith.constant 0 : index
      %c0_19 = arith.constant 0 : index
      %29 = vector.load %arg4[%c0_18, %c0_19] : memref<1x128xf32, #tpu.memory_space<vmem>>, vector<1x128xf32>
      %30 = arith.mulf %28, %29 : vector<1x128xf32>
      %c0_20 = arith.constant 0 : index
      %c0_21 = arith.constant 0 : index
      %c0_22 = arith.constant 0 : index
      %31 = vector.load %arg7[%c0_20, %c0_21, %c0_22] : memref<1x1x128xf32, #tpu.memory_space<vmem>>, vector<1x1x128xf32>
      %32 = vector.shape_cast %31 : vector<1x1x128xf32> to vector<1x128xf32>
      %33 = vector.shape_cast %30 : vector<1x128xf32> to vector<1x1x128xf32>
      tpu.vector_store %arg7[%c0_20, %c0_21, %c0_22], %33 {strides = array<i32>} : memref<1x1x128xf32, #tpu.memory_space<vmem>>, vector<1x1x128xf32>,
      %c0_23 = arith.constant 0 : index
      %c0_24 = arith.constant 0 : index
      %34 = vector.load %arg5[%c0_23, %c0_24] : memref<1x128xf32, #tpu.memory_space<vmem>>, vector<1x128xf32>
      %c0_25 = arith.constant 0 : index
      %c0_26 = arith.constant 0 : index
      %35 = vector.load %arg10[%c0_25, %c0_26] : memref<1x128xf32, #tpu.memory_space<vmem>>, vector<1x128xf32>
      %36 = arith.mulf %35, %30 : vector<1x128xf32>
      %37 = arith.subf %34, %36 : vector<1x128xf32>
      %c0_27 = arith.constant 0 : index
      %c0_28 = arith.constant 0 : index
      %c0_29 = arith.constant 0 : index
      %38 = vector.load %arg8[%c0_27, %c0_28, %c0_29] : memref<1x1x128xf32, #tpu.memory_space<vmem>>, vector<1x1x128xf32>
      %39 = vector.shape_cast %38 : vector<1x1x128xf32> to vector<1x128xf32>
      %40 = vector.shape_cast %37 : vector<1x128xf32> to vector<1x1x128xf32>
      tpu.vector_store %arg8[%c0_27, %c0_28, %c0_29], %40 {strides = array<i32>} : memref<1x1x128xf32, #tpu.memory_space<vmem>>, vector<1x1x128xf32>,
    } else {
    }
    return
  }
  func.func @transform_0(%arg0: i32, %arg1: i32, %arg2: i32) -> (i32, i32, i32) {
    %c0_i32 = arith.constant 0 : i32
    %c0_i32_0 = arith.constant 0 : i32
    return %arg0, %arg2, %c0_i32 : i32, i32, i32
  }
  func.func @transform_1(%arg0: i32, %arg1: i32, %arg2: i32) -> (i32, i32) {
    %c0_i32 = arith.constant 0 : i32
    %c0_i32_0 = arith.constant 0 : i32
    %c0_i32_1 = arith.constant 0 : i32
    return %c0_i32, %c0_i32_0 : i32, i32
  }
  func.func @transform_2(%arg0: i32, %arg1: i32, %arg2: i32) -> (i32, i32) {
    %c0_i32 = arith.constant 0 : i32
    %c0_i32_0 = arith.constant 0 : i32
    %c0_i32_1 = arith.constant 0 : i32
    return %c0_i32, %c0_i32_0 : i32, i32
  }
  func.func @transform_3(%arg0: i32, %arg1: i32, %arg2: i32) -> (i32, i32) {
    %c0_i32 = arith.constant 0 : i32
    %c0_i32_0 = arith.constant 0 : i32
    %c0_i32_1 = arith.constant 0 : i32
    return %c0_i32, %c0_i32_0 : i32, i32
  }
  func.func @transform_4(%arg0: i32, %arg1: i32, %arg2: i32) -> (i32, i32, i32) {
    %c0_i32 = arith.constant 0 : i32
    %c0_i32_0 = arith.constant 0 : i32
    %c0_i32_1 = arith.constant 0 : i32
    return %arg0, %c0_i32, %c0_i32_0 : i32, i32, i32
  }
  func.func @transform_5(%arg0: i32, %arg1: i32, %arg2: i32) -> (i32, i32, i32) {
    %c0_i32 = arith.constant 0 : i32
    %c0_i32_0 = arith.constant 0 : i32
    %c0_i32_1 = arith.constant 0 : i32
    return %arg0, %c0_i32, %c0_i32_0 : i32, i32, i32
  }
}

module attributes {stable_mosaic.version = 11 : i64} {
  func.func @_flash_attn_kernel(%arg0: i32, %arg1: i32, %arg2: i32, %arg3: memref<1x256x128xf32, #tpu.memory_space<vmem>>, %arg4: memref<1x512x128xf32, #tpu.memory_space<vmem>>, %arg5: memref<1x1x128xf32, #tpu.memory_space<vmem>>, %arg6: memref<1x1x128xf32, #tpu.memory_space<vmem>>, %arg7: memref<128x128xbf16, #tpu.memory_space<vmem>>, %arg8: memref<1x128xf32, #tpu.memory_space<vmem>>, %arg9: memref<128x256xbf16, #tpu.memory_space<vmem>>, %arg10: memref<1x256xf32, #tpu.memory_space<vmem>>, %arg11: memref<128x128xbf16, #tpu.memory_space<vmem>>, %arg12: memref<1x128xf32, #tpu.memory_space<vmem>>, %arg13: memref<1x256x128xf32, #tpu.memory_space<vmem>>, %arg14: memref<256x128xbf16, #tpu.memory_space<vmem>>, %arg15: memref<256x1xf32, #tpu.memory_space<vmem>>, %arg16: memref<256x1xf32, #tpu.memory_space<vmem>>, %arg17: memref<256x128xf32, #tpu.memory_space<vmem>>) attributes {dimension_semantics = [#tpu.dimension_semantics<parallel>, #tpu.dimension_semantics<parallel>, #tpu.dimension_semantics<arbitrary>], iteration_bounds = array<i64: 2, 4, 2>, scalar_prefetch = 0 : i64, scratch_operands = 4 : i64, tpu.core_type = #tpu.core_type<tc>, window_params = [{transform_indices = @transform_0, window_bounds = array<i64: 1, 256, 128>}, {transform_indices = @transform_1, window_bounds = array<i64: 1, 512, 128>}, {transform_indices = @transform_2, window_bounds = array<i64: 1, 1, 128>}, {transform_indices = @transform_3, window_bounds = array<i64: 1, 1, 128>}, {pipeline_mode = #tpu.pipeline_mode<synchronous>, transform_indices = @transform_4, window_bounds = array<i64: 128, 128>}, {pipeline_mode = #tpu.pipeline_mode<synchronous>, transform_indices = @transform_5, window_bounds = array<i64: 1, 128>}, {pipeline_mode = #tpu.pipeline_mode<synchronous>, transform_indices = @transform_6, window_bounds = array<i64: 128, 256>}, {pipeline_mode = #tpu.pipeline_mode<synchronous>, transform_indices = @transform_7, window_bounds = array<i64: 1, 256>}, {pipeline_mode = #tpu.pipeline_mode<synchronous>, transform_indices = @transform_8, window_bounds = array<i64: 128, 128>}, {pipeline_mode = #tpu.pipeline_mode<synchronous>, transform_indices = @transform_9, window_bounds = array<i64: 1, 128>}, {transform_indices = @transform_10, window_bounds = array<i64: 1, 256, 128>}]} {
    %c1_i32 = arith.constant 1 : i32
    %0 = arith.cmpi eq, %arg2, %c1_i32 : i32
    %c0 = arith.constant 0 : index
    %c0_0 = arith.constant 0 : index
    %c0_1 = arith.constant 0 : index
    %1 = vector.load %arg5[%c0, %c0_0, %c0_1] : memref<1x1x128xf32, #tpu.memory_space<vmem>>, vector<1x1x128xf32>
    %2 = vector.shape_cast %1 : vector<1x1x128xf32> to vector<1x128xf32>
    %c0_2 = arith.constant 0 : index
    %c0_3 = arith.constant 0 : index
    %c0_4 = arith.constant 0 : index
    %3 = vector.load %arg6[%c0_2, %c0_3, %c0_4] : memref<1x1x128xf32, #tpu.memory_space<vmem>>, vector<1x1x128xf32>
    %4 = vector.shape_cast %3 : vector<1x1x128xf32> to vector<1x128xf32>
    %c0_i32 = arith.constant 0 : i32
    %5 = arith.cmpi eq, %arg2, %c0_i32 : i32
    %6 = arith.extui %5 : i1 to i32
    %c0_i32_5 = arith.constant 0 : i32
    %7 = arith.cmpi ne, %6, %c0_i32_5 : i32
    scf.if %7 {
      %c0_32 = arith.constant 0 : index
      %c0_33 = arith.constant 0 : index
      %c0_34 = arith.constant 0 : index
      %51 = vector.load %arg3[%c0_32, %c0_33, %c0_34] : memref<1x256x128xf32, #tpu.memory_space<vmem>>, vector<1x256x128xf32>
      %52 = vector.shape_cast %51 : vector<1x256x128xf32> to vector<256x128xf32>
      %53 = vector.broadcast %2 : vector<1x128xf32> to vector<256x128xf32>
      %54 = arith.mulf %52, %53 : vector<256x128xf32>
      %55 = vector.broadcast %4 : vector<1x128xf32> to vector<256x128xf32>
      %56 = arith.addf %54, %55 : vector<256x128xf32>
      %57 = arith.truncf %56 : vector<256x128xf32> to vector<256x128xbf16>
      %c0_35 = arith.constant 0 : index
      %c0_36 = arith.constant 0 : index
      %58 = vector.load %arg7[%c0_35, %c0_36] : memref<128x128xbf16, #tpu.memory_space<vmem>>, vector<128x128xbf16>
      %cst_37 = arith.constant dense<0.000000e+00> : vector<256x128xf32>
      %59 = tpu.matmul %57, %58, %cst_37 {dimension_numbers = #tpu.dot_dimension_numbers<[1], [0], [0], [1], [0, 0, 1, 1], [], []>} : vector<256x128xbf16>, vector<128x128xbf16>, vector<256x128xf32> -> vector<256x128xf32>
      %c0_38 = arith.constant 0 : index
      %c0_39 = arith.constant 0 : index
      %60 = vector.load %arg8[%c0_38, %c0_39] : memref<1x128xf32, #tpu.memory_space<vmem>>, vector<1x128xf32>
      %61 = vector.broadcast %60 : vector<1x128xf32> to vector<256x128xf32>
      %62 = arith.addf %59, %61 : vector<256x128xf32>
      %cst_40 = arith.constant 0.0883883461 : f32
      %63 = vector.broadcast %cst_40 : f32 to vector<256x128xf32>
      %64 = arith.mulf %62, %63 : vector<256x128xf32>
      %65 = arith.truncf %64 : vector<256x128xf32> to vector<256x128xbf16>
      %c0_41 = arith.constant 0 : index
      %c0_42 = arith.constant 0 : index
      %66 = vector.load %arg14[%c0_41, %c0_42] : memref<256x128xbf16, #tpu.memory_space<vmem>>, vector<256x128xbf16>
      tpu.vector_store %arg14[%c0_41, %c0_42], %65 {strides = array<i32>} : memref<256x128xbf16, #tpu.memory_space<vmem>>, vector<256x128xbf16>,
      %cst_43 = arith.constant 0xFF800000 : f32
      %67 = vector.broadcast %cst_43 : f32 to vector<256x1xf32>
      %c0_44 = arith.constant 0 : index
      %c0_45 = arith.constant 0 : index
      %68 = vector.load %arg15[%c0_44, %c0_45] : memref<256x1xf32, #tpu.memory_space<vmem>>, vector<256x1xf32>
      tpu.vector_store %arg15[%c0_44, %c0_45], %67 {strides = array<i32>} : memref<256x1xf32, #tpu.memory_space<vmem>>, vector<256x1xf32>,
      %cst_46 = arith.constant 0.000000e+00 : f32
      %69 = vector.broadcast %cst_46 : f32 to vector<256x1xf32>
      %c0_47 = arith.constant 0 : index
      %c0_48 = arith.constant 0 : index
      %70 = vector.load %arg16[%c0_47, %c0_48] : memref<256x1xf32, #tpu.memory_space<vmem>>, vector<256x1xf32>
      tpu.vector_store %arg16[%c0_47, %c0_48], %69 {strides = array<i32>} : memref<256x1xf32, #tpu.memory_space<vmem>>, vector<256x1xf32>,
      %cst_49 = arith.constant 0.000000e+00 : f32
      %71 = vector.broadcast %cst_49 : f32 to vector<256x128xf32>
      %c0_50 = arith.constant 0 : index
      %c0_51 = arith.constant 0 : index
      %72 = vector.load %arg17[%c0_50, %c0_51] : memref<256x128xf32, #tpu.memory_space<vmem>>, vector<256x128xf32>
      tpu.vector_store %arg17[%c0_50, %c0_51], %71 {strides = array<i32>} : memref<256x128xf32, #tpu.memory_space<vmem>>, vector<256x128xf32>,
    } else {
    }
    %c0_6 = arith.constant 0 : index
    %c0_7 = arith.constant 0 : index
    %c0_8 = arith.constant 0 : index
    %8 = vector.load %arg4[%c0_6, %c0_7, %c0_8] : memref<1x512x128xf32, #tpu.memory_space<vmem>>, vector<1x512x128xf32>
    %9 = vector.shape_cast %8 : vector<1x512x128xf32> to vector<512x128xf32>
    %10 = vector.broadcast %2 : vector<1x128xf32> to vector<512x128xf32>
    %11 = arith.mulf %9, %10 : vector<512x128xf32>
    %12 = vector.broadcast %4 : vector<1x128xf32> to vector<512x128xf32>
    %13 = arith.addf %11, %12 : vector<512x128xf32>
    %14 = arith.truncf %13 : vector<512x128xf32> to vector<512x128xbf16>
    %c0_9 = arith.constant 0 : index
    %c0_10 = arith.constant 0 : index
    %15 = vector.load %arg9[%c0_9, %c0_10] : memref<128x256xbf16, #tpu.memory_space<vmem>>, vector<128x256xbf16>
    %cst = arith.constant dense<0.000000e+00> : vector<512x256xf32>
    %16 = tpu.matmul %14, %15, %cst {dimension_numbers = #tpu.dot_dimension_numbers<[1], [0], [0], [1], [0, 0, 1, 1], [], []>} : vector<512x128xbf16>, vector<128x256xbf16>, vector<512x256xf32> -> vector<512x256xf32>
    %c0_11 = arith.constant 0 : index
    %c0_12 = arith.constant 0 : index
    %17 = vector.load %arg10[%c0_11, %c0_12] : memref<1x256xf32, #tpu.memory_space<vmem>>, vector<1x256xf32>
    %18 = vector.broadcast %17 : vector<1x256xf32> to vector<512x256xf32>
    %19 = arith.addf %16, %18 : vector<512x256xf32>
    %20 = vector.extract_strided_slice %19 {offsets = [0, 0], sizes = [512, 128], strides = [1, 1]} : vector<512x256xf32> to vector<512x128xf32>
    %21 = arith.truncf %20 : vector<512x128xf32> to vector<512x128xbf16>
    %22 = vector.extract_strided_slice %19 {offsets = [0, 128], sizes = [512, 128], strides = [1, 1]} : vector<512x256xf32> to vector<512x128xf32>
    %23 = arith.truncf %22 : vector<512x128xf32> to vector<512x128xbf16>
    %c0_13 = arith.constant 0 : index
    %c0_14 = arith.constant 0 : index
    %24 = vector.load %arg14[%c0_13, %c0_14] : memref<256x128xbf16, #tpu.memory_space<vmem>>, vector<256x128xbf16>
    %cst_15 = arith.constant dense<0.000000e+00> : vector<256x512xf32>
    %25 = tpu.matmul %24, %21, %cst_15 {dimension_numbers = #tpu.dot_dimension_numbers<[1], [1], [0], [0], [0, 0, 1, 0], [], []>} : vector<256x128xbf16>, vector<512x128xbf16>, vector<256x512xf32> -> vector<256x512xf32>
    %c0_16 = arith.constant 0 : index
    %c0_17 = arith.constant 0 : index
    %26 = vector.load %arg15[%c0_16, %c0_17] : memref<256x1xf32, #tpu.memory_space<vmem>>, vector<256x1xf32>
    %cst_18 = arith.constant dense<0xFF800000> : vector<256xf32>
    %27 = vector.multi_reduction <maximumf>, %25, %cst_18 [1] : vector<256x512xf32> to vector<256xf32>
    %28 = vector.shape_cast %27 : vector<256xf32> to vector<256x1xf32>
    %29 = arith.maximumf %26, %28 : vector<256x1xf32>
    %30 = arith.subf %26, %29 : vector<256x1xf32>
    %31 = math.exp %30 : vector<256x1xf32>
    %32 = vector.broadcast %29 : vector<256x1xf32> to vector<256x512xf32>
    %33 = arith.subf %25, %32 : vector<256x512xf32>
    %34 = math.exp %33 : vector<256x512xf32>
    %c0_19 = arith.constant 0 : index
    %c0_20 = arith.constant 0 : index
    %35 = vector.load %arg16[%c0_19, %c0_20] : memref<256x1xf32, #tpu.memory_space<vmem>>, vector<256x1xf32>
    %36 = arith.mulf %31, %35 : vector<256x1xf32>
    %cst_21 = arith.constant dense<0.000000e+00> : vector<256xf32>
    %37 = vector.multi_reduction <add>, %34, %cst_21 [1] : vector<256x512xf32> to vector<256xf32>
    %38 = vector.shape_cast %37 : vector<256xf32> to vector<256x1xf32>
    %39 = arith.addf %36, %38 : vector<256x1xf32>
    %c0_22 = arith.constant 0 : index
    %c0_23 = arith.constant 0 : index
    %40 = vector.load %arg16[%c0_22, %c0_23] : memref<256x1xf32, #tpu.memory_space<vmem>>, vector<256x1xf32>
    tpu.vector_store %arg16[%c0_22, %c0_23], %39 {strides = array<i32>} : memref<256x1xf32, #tpu.memory_space<vmem>>, vector<256x1xf32>,
    %c0_24 = arith.constant 0 : index
    %c0_25 = arith.constant 0 : index
    %41 = vector.load %arg17[%c0_24, %c0_25] : memref<256x128xf32, #tpu.memory_space<vmem>>, vector<256x128xf32>
    %42 = vector.broadcast %31 : vector<256x1xf32> to vector<256x128xf32>
    %43 = arith.mulf %42, %41 : vector<256x128xf32>
    %44 = arith.truncf %34 : vector<256x512xf32> to vector<256x512xbf16>
    %cst_26 = arith.constant dense<0.000000e+00> : vector<256x128xf32>
    %45 = tpu.matmul %44, %23, %cst_26 {dimension_numbers = #tpu.dot_dimension_numbers<[1], [0], [0], [1], [0, 0, 1, 1], [], []>} : vector<256x512xbf16>, vector<512x128xbf16>, vector<256x128xf32> -> vector<256x128xf32>
    %46 = arith.addf %43, %45 : vector<256x128xf32>
    %c0_27 = arith.constant 0 : index
    %c0_28 = arith.constant 0 : index
    %47 = vector.load %arg17[%c0_27, %c0_28] : memref<256x128xf32, #tpu.memory_space<vmem>>, vector<256x128xf32>
    tpu.vector_store %arg17[%c0_27, %c0_28], %46 {strides = array<i32>} : memref<256x128xf32, #tpu.memory_space<vmem>>, vector<256x128xf32>,
    %c0_29 = arith.constant 0 : index
    %c0_30 = arith.constant 0 : index
    %48 = vector.load %arg15[%c0_29, %c0_30] : memref<256x1xf32, #tpu.memory_space<vmem>>, vector<256x1xf32>
    tpu.vector_store %arg15[%c0_29, %c0_30], %29 {strides = array<i32>} : memref<256x1xf32, #tpu.memory_space<vmem>>, vector<256x1xf32>,
    %49 = arith.extui %0 : i1 to i32
    %c0_i32_31 = arith.constant 0 : i32
    %50 = arith.cmpi ne, %49, %c0_i32_31 : i32
    scf.if %50 {
      %c0_32 = arith.constant 0 : index
      %c0_33 = arith.constant 0 : index
      %51 = vector.load %arg17[%c0_32, %c0_33] : memref<256x128xf32, #tpu.memory_space<vmem>>, vector<256x128xf32>
      %c0_34 = arith.constant 0 : index
      %c0_35 = arith.constant 0 : index
      %52 = vector.load %arg16[%c0_34, %c0_35] : memref<256x1xf32, #tpu.memory_space<vmem>>, vector<256x1xf32>
      %53 = tpu.reciprocal %52 {approx = true} : vector<256x1xf32> -> vector<256x1xf32>
      %54 = vector.broadcast %53 : vector<256x1xf32> to vector<256x128xf32>
      %55 = arith.mulf %51, %54 : vector<256x128xf32>
      %56 = arith.truncf %55 : vector<256x128xf32> to vector<256x128xbf16>
      %c0_36 = arith.constant 0 : index
      %c0_37 = arith.constant 0 : index
      %57 = vector.load %arg11[%c0_36, %c0_37] : memref<128x128xbf16, #tpu.memory_space<vmem>>, vector<128x128xbf16>
      %cst_38 = arith.constant dense<0.000000e+00> : vector<256x128xf32>
      %58 = tpu.matmul %56, %57, %cst_38 {dimension_numbers = #tpu.dot_dimension_numbers<[1], [0], [0], [1], [0, 0, 1, 1], [], []>} : vector<256x128xbf16>, vector<128x128xbf16>, vector<256x128xf32> -> vector<256x128xf32>
      %c0_39 = arith.constant 0 : index
      %c0_40 = arith.constant 0 : index
      %59 = vector.load %arg12[%c0_39, %c0_40] : memref<1x128xf32, #tpu.memory_space<vmem>>, vector<1x128xf32>
      %60 = vector.broadcast %59 : vector<1x128xf32> to vector<256x128xf32>
      %61 = arith.addf %58, %60 : vector<256x128xf32>
      %c0_41 = arith.constant 0 : index
      %c0_42 = arith.constant 0 : index
      %c0_43 = arith.constant 0 : index
      %62 = vector.load %arg3[%c0_41, %c0_42, %c0_43] : memref<1x256x128xf32, #tpu.memory_space<vmem>>, vector<1x256x128xf32>
      %63 = vector.shape_cast %62 : vector<1x256x128xf32> to vector<256x128xf32>
      %64 = arith.addf %63, %61 : vector<256x128xf32>
      %c0_44 = arith.constant 0 : index
      %c0_45 = arith.constant 0 : index
      %c0_46 = arith.constant 0 : index
      %65 = vector.load %arg13[%c0_44, %c0_45, %c0_46] : memref<1x256x128xf32, #tpu.memory_space<vmem>>, vector<1x256x128xf32>
      %66 = vector.shape_cast %65 : vector<1x256x128xf32> to vector<256x128xf32>
      %67 = vector.shape_cast %64 : vector<256x128xf32> to vector<1x256x128xf32>
      tpu.vector_store %arg13[%c0_44, %c0_45, %c0_46], %67 {strides = array<i32>} : memref<1x256x128xf32, #tpu.memory_space<vmem>>, vector<1x256x128xf32>,
    } else {
    }
    return
  }
  func.func @transform_0(%arg0: i32, %arg1: i32, %arg2: i32) -> (i32, i32, i32) {
    %c0_i32 = arith.constant 0 : i32
    %c0_i32_0 = arith.constant 0 : i32
    return %arg0, %arg1, %c0_i32 : i32, i32, i32
  }
  func.func @transform_1(%arg0: i32, %arg1: i32, %arg2: i32) -> (i32, i32, i32) {
    %c0_i32 = arith.constant 0 : i32
    %c0_i32_0 = arith.constant 0 : i32
    return %arg0, %arg2, %c0_i32 : i32, i32, i32
  }
  func.func @transform_2(%arg0: i32, %arg1: i32, %arg2: i32) -> (i32, i32, i32) {
    %c0_i32 = arith.constant 0 : i32
    %c0_i32_0 = arith.constant 0 : i32
    %c0_i32_1 = arith.constant 0 : i32
    return %arg0, %c0_i32, %c0_i32_0 : i32, i32, i32
  }
  func.func @transform_3(%arg0: i32, %arg1: i32, %arg2: i32) -> (i32, i32, i32) {
    %c0_i32 = arith.constant 0 : i32
    %c0_i32_0 = arith.constant 0 : i32
    %c0_i32_1 = arith.constant 0 : i32
    return %arg0, %c0_i32, %c0_i32_0 : i32, i32, i32
  }
  func.func @transform_4(%arg0: i32, %arg1: i32, %arg2: i32) -> (i32, i32) {
    %c0_i32 = arith.constant 0 : i32
    %c0_i32_0 = arith.constant 0 : i32
    %c0_i32_1 = arith.constant 0 : i32
    return %c0_i32, %c0_i32_0 : i32, i32
  }
  func.func @transform_5(%arg0: i32, %arg1: i32, %arg2: i32) -> (i32, i32) {
    %c0_i32 = arith.constant 0 : i32
    %c0_i32_0 = arith.constant 0 : i32
    %c0_i32_1 = arith.constant 0 : i32
    return %c0_i32, %c0_i32_0 : i32, i32
  }
  func.func @transform_6(%arg0: i32, %arg1: i32, %arg2: i32) -> (i32, i32) {
    %c0_i32 = arith.constant 0 : i32
    %c0_i32_0 = arith.constant 0 : i32
    %c0_i32_1 = arith.constant 0 : i32
    return %c0_i32, %c0_i32_0 : i32, i32
  }
  func.func @transform_7(%arg0: i32, %arg1: i32, %arg2: i32) -> (i32, i32) {
    %c0_i32 = arith.constant 0 : i32
    %c0_i32_0 = arith.constant 0 : i32
    %c0_i32_1 = arith.constant 0 : i32
    return %c0_i32, %c0_i32_0 : i32, i32
  }
  func.func @transform_8(%arg0: i32, %arg1: i32, %arg2: i32) -> (i32, i32) {
    %c0_i32 = arith.constant 0 : i32
    %c0_i32_0 = arith.constant 0 : i32
    %c0_i32_1 = arith.constant 0 : i32
    return %c0_i32, %c0_i32_0 : i32, i32
  }
  func.func @transform_9(%arg0: i32, %arg1: i32, %arg2: i32) -> (i32, i32) {
    %c0_i32 = arith.constant 0 : i32
    %c0_i32_0 = arith.constant 0 : i32
    %c0_i32_1 = arith.constant 0 : i32
    return %c0_i32, %c0_i32_0 : i32, i32
  }
  func.func @transform_10(%arg0: i32, %arg1: i32, %arg2: i32) -> (i32, i32, i32) {
    %c0_i32 = arith.constant 0 : i32
    %c0_i32_0 = arith.constant 0 : i32
    return %arg0, %arg1, %c0_i32 : i32, i32, i32
  }
}

</mosaic_0001>

<llo_original>
// kernel: memory_efficient_attn_block.2
$region0: #{memory_efficient_attn_block.2}
  #allocation0 [shape = 'u32[]', space=smem, size = 0x4, offset = 0x4, fixed_abs, tag = 'smem constant byte address 0x4 - core index']
  #allocation1 [shape = 'u32[144,128]{1,0:T(1,128)}', space=vmem, size = 0x12000, scoped, tag = 'internal scratch']
  #allocation2 [shape = 'f32[1,128]{1,0:T(1,128)}', space=vmem, size = 0x200, scoped, tag = 'scratch operand']
  #allocation3 [shape = 'f32[1,128]{1,0:T(1,128)}', space=vmem, size = 0x200, scoped, tag = 'scratch operand']
  %s0 = inlined_call_operand.hbm [shape: f32[2,1024,128], index: 0, kind: input, shape index: {}]
  %s1 = inlined_call_operand.vmem [shape: f32[1,128], index: 1, kind: input, shape index: {}]
  %s2 = inlined_call_operand.vmem [shape: f32[1,128], index: 2, kind: input, shape index: {}]
  %s3 = inlined_call_operand.vmem [shape: f32[128,32], index: 3, kind: input, shape index: {}]
  %s4 = inlined_call_operand.vmem [shape: f32[2,1,128], index: 4, kind: output, shape index: {0}]
  %s5 = inlined_call_operand.vmem [shape: f32[2,1,128], index: 5, kind: output, shape index: {1}]
  %6 = xla_tuple %s4, %s5
  %s7 = sld [smem:[#allocation0]]
  $region81: #{memory_efficient_attn_block.2} parent=0
    _
  %s9 = ssub.s32 1, %s7
  %s10 = scalar_select 0, %s9, %s7
  $region1: #{memory_efficient_attn_block.2} parent=0
    #allocation4 [shape = 'u8[524288]{0}', space=vmem, size = 0x80000, scoped, tag = 'input window, operand 0']
    #allocation5 [shape = 's32[2]{0}', space=sflag, size = 0x8, scoped, tag = 'scoped memory for memory_efficient_attn_block.2']
    %11 = vsyncpa [#allocation5], 0
    %s12 = scalar_lea.sflag [#allocation5], 1
    %13 = vsyncpa %s12, 0
    loop: start=0, step=1, limit=10
    $region2: #{memory_efficient_attn_block.2} parent=1 // loop_pre_header
      _
    $region3: #{memory_efficient_attn_block.2} parent=1 // loop_header
      %s15 = sphi 0, %s19
      %p16 = scmp.ge.s32.totalorder %s15, 10
      %s22 = sphi 0, %s41
      %s23 = sphi 0, %s37
      %s24 = sphi 0, %s33
      %s25 = sphi 0, %s22
      %s26 = sphi 0, %s23
      %s27 = sphi 0, %s24
      %s28 = sphi 0, %s25
      %s29 = sphi 0, %s26
      %s30 = sphi 0, %s27
      %s46 = sphi 0, %s48
      %s49 = sphi 0, %s46
      %s50 = sphi 0, %s49
      %s66 = sphi 0, %s50
      %s70 = sphi 0, %s70
      %s72 = sphi 0, %s70
      %s73 = sphi 0, %s72
      %s87 = sphi 0, %s73
      %s91 = sphi 0, %s91
      %s93 = sphi 0, %s91
      %s94 = sphi 0, %s93
      %s108 = sphi 0, %s94
      %s112 = sphi 0, %s112
      %s114 = sphi 0, %s112
      %s115 = sphi 0, %s114
      %s129 = sphi 0, %s115
      %s135 = sphi 0, %s137
      %s138 = sphi 0, %s135
      %s139 = sphi 0, %s138
      %s155 = sphi 0, %s139
      %s161 = sphi 0, %s163
      %s164 = sphi 0, %s161
      %s165 = sphi 0, %s164
      %s181 = sphi 0, %s165
    $region4: #{memory_efficient_attn_block.2} parent=1 // loop_header_branch
      %18 = sbr.rel (%p16) target = $region8
    $region5: #{memory_efficient_attn_block.2} parent=1 // loop_body
      %s20 = ssub.s32 %s15, 1
      %s21 = ssub.s32 %s15, 2
      %s31 = sadd.s32 1, %s24
      %p32 = scmp.ge.s32.totalorder %s31, 2
      %s33 = scalar_select %p32, 0, %s31
      %s34 = sadd.s32 1, %s23
      %s35 = scalar_select %p32, %s34, %s23
      %p36 = scmp.ge.s32.totalorder %s35, 2
      %s37 = scalar_select %p36, 0, %s35
      %s38 = sadd.s32 1, %s22
      %s39 = scalar_select %p36, %s38, %s22
      %p40 = scmp.ge.s32.totalorder %s39, 2
      %s41 = scalar_select %p40, 0, %s39
      %s42 = ssub.s32 %s22, %s41
      %s43 = ssub.s32 %s24, %s33
      %s44 = sor.u32 %s42, %s43
      %p45 = scmp.eq.s32.totalorder %s44, 0
      %s47 = sadd.s32 %s46, 1
      %s48 = scalar_select %p45, %s46, %s47
      %p51 = pneg %p45
      %p52 = scmp.eq.s32.totalorder %s15, 7
      %p53 = por %p51, %p52
      %p54 = scmp.ne.s32.totalorder %s46, %s49
      %p55 = scmp.eq.s32.totalorder %s15, 0
      %p56 = por %p54, %p55
      %p57 = scmp.ne.s32.totalorder %s46, %s49
      %p58 = scmp.eq.s32.totalorder %s20, 7
      %p59 = por %p57, %p58
      %p60 = scmp.ne.s32.totalorder %s49, %s50
      %p61 = scmp.eq.s32.totalorder %s20, 0
      %p62 = por %p60, %p61
      %p63 = scmp.ne.s32.totalorder %s49, %s50
      %p64 = scmp.eq.s32.totalorder %s21, 7
      %p65 = por %p63, %p64
      %p67 = scmp.ne.s32.totalorder %s50, %s66
      %p68 = scmp.eq.s32.totalorder %s21, 0
      %p69 = por %p67, %p68
      %s71 = sadd.s32 %s70, 1
      %p74 = scmp.eq.s32.totalorder %s15, 7
      %p75 = scmp.ne.s32.totalorder %s70, %s72
      %p76 = scmp.eq.s32.totalorder %s15, 0
      %p77 = por %p75, %p76
      %p78 = scmp.ne.s32.totalorder %s70, %s72
      %p79 = scmp.eq.s32.totalorder %s20, 7
      %p80 = por %p78, %p79
      %p81 = scmp.ne.s32.totalorder %s72, %s73
      %p82 = scmp.eq.s32.totalorder %s20, 0
      %p83 = por %p81, %p82
      %p84 = scmp.ne.s32.totalorder %s72, %s73
      %p85 = scmp.eq.s32.totalorder %s21, 7
      %p86 = por %p84, %p85
      %p88 = scmp.ne.s32.totalorder %s73, %s87
      %p89 = scmp.eq.s32.totalorder %s21, 0
      %p90 = por %p88, %p89
      %s92 = sadd.s32 %s91, 1
      %p95 = scmp.eq.s32.totalorder %s15, 7
      %p96 = scmp.ne.s32.totalorder %s91, %s93
      %p97 = scmp.eq.s32.totalorder %s15, 0
      %p98 = por %p96, %p97
      %p99 = scmp.ne.s32.totalorder %s91, %s93
      %p100 = scmp.eq.s32.totalorder %s20, 7
      %p101 = por %p99, %p100
      %p102 = scmp.ne.s32.totalorder %s93, %s94
      %p103 = scmp.eq.s32.totalorder %s20, 0
      %p104 = por %p102, %p103
      %p105 = scmp.ne.s32.totalorder %s93, %s94
      %p106 = scmp.eq.s32.totalorder %s21, 7
      %p107 = por %p105, %p106
      %p109 = scmp.ne.s32.totalorder %s94, %s108
      %p110 = scmp.eq.s32.totalorder %s21, 0
      %p111 = por %p109, %p110
      %s113 = sadd.s32 %s112, 1
      %p116 = scmp.eq.s32.totalorder %s15, 7
      %p117 = scmp.ne.s32.totalorder %s112, %s114
      %p118 = scmp.eq.s32.totalorder %s15, 0
      %p119 = por %p117, %p118
      %p120 = scmp.ne.s32.totalorder %s112, %s114
      %p121 = scmp.eq.s32.totalorder %s20, 7
      %p122 = por %p120, %p121
      %p123 = scmp.ne.s32.totalorder %s114, %s115
      %p124 = scmp.eq.s32.totalorder %s20, 0
      %p125 = por %p123, %p124
      %p126 = scmp.ne.s32.totalorder %s114, %s115
      %p127 = scmp.eq.s32.totalorder %s21, 7
      %p128 = por %p126, %p127
      %p130 = scmp.ne.s32.totalorder %s115, %s129
      %p131 = scmp.eq.s32.totalorder %s21, 0
      %p132 = por %p130, %p131
      %s133 = ssub.s32 %s22, %s41
      %p134 = scmp.eq.s32.totalorder %s133, 0
      %s136 = sadd.s32 %s135, 1
      %s137 = scalar_select %p134, %s135, %s136
      %p140 = pneg %p134
      %p141 = scmp.eq.s32.totalorder %s15, 7
      %p142 = por %p140, %p141
      %p143 = scmp.ne.s32.totalorder %s135, %s138
      %p144 = scmp.eq.s32.totalorder %s15, 0
      %p145 = por %p143, %p144
      %p146 = scmp.ne.s32.totalorder %s135, %s138
      %p147 = scmp.eq.s32.totalorder %s20, 7
      %p148 = por %p146, %p147
      %p149 = scmp.ne.s32.totalorder %s138, %s139
      %p150 = scmp.eq.s32.totalorder %s20, 0
      %p151 = por %p149, %p150
      %p152 = scmp.ne.s32.totalorder %s138, %s139
      %p153 = scmp.eq.s32.totalorder %s21, 7
      %p154 = por %p152, %p153
      %p156 = scmp.ne.s32.totalorder %s139, %s155
      %p157 = scmp.eq.s32.totalorder %s21, 0
      %p158 = por %p156, %p157
      %s159 = ssub.s32 %s22, %s41
      %p160 = scmp.eq.s32.totalorder %s159, 0
      %s162 = sadd.s32 %s161, 1
      %s163 = scalar_select %p160, %s161, %s162
      %p166 = pneg %p160
      %p167 = scmp.eq.s32.totalorder %s15, 7
      %p168 = por %p166, %p167
      %p169 = scmp.ne.s32.totalorder %s161, %s164
      %p170 = scmp.eq.s32.totalorder %s15, 0
      %p171 = por %p169, %p170
      %p172 = scmp.ne.s32.totalorder %s161, %s164
      %p173 = scmp.eq.s32.totalorder %s20, 7
      %p174 = por %p172, %p173
      %p175 = scmp.ne.s32.totalorder %s164, %s165
      %p176 = scmp.eq.s32.totalorder %s20, 0
      %p177 = por %p175, %p176
      %p178 = scmp.ne.s32.totalorder %s164, %s165
      %p179 = scmp.eq.s32.totalorder %s21, 7
      %p180 = por %p178, %p179
      %p182 = scmp.ne.s32.totalorder %s165, %s181
      %p183 = scmp.eq.s32.totalorder %s21, 0
      %p184 = por %p182, %p183
      %p185 = scmp.le.s32.totalorder 1, %s15
      %p186 = scmp.lt.s32.totalorder %s15, 9
      %p187 = pnand %p185, %p186
      %p188 = pneg %p187
      // Predicated region
      $region9: #{memory_efficient_attn_block.2} parent=5 // pred_check
        _
      $region10: #{memory_efficient_attn_block.2} parent=5 // pred_check_branch
        %190 = sbr.rel (%p187) target = $region12
      $region11: #{memory_efficient_attn_block.2} parent=5 // pred_region
        %s191 = ssub.s32 %s15, 1
        // Predicated region
        $region13: #{memory_efficient_attn_block.2} parent=11 // pred_check
          %p192 = pneg %p83
        $region14: #{memory_efficient_attn_block.2} parent=11 // pred_check_branch
          %194 = sbr.rel (%p192) target = $region16
        $region15: #{memory_efficient_attn_block.2} parent=11 // pred_region
          _
        $region16: #{memory_efficient_attn_block.2} parent=11 // pred_fallthru
          _
        // Predicated region
        $region17: #{memory_efficient_attn_block.2} parent=11 // pred_check
          %p195 = pneg %p104
        $region18: #{memory_efficient_attn_block.2} parent=11 // pred_check_branch
          %197 = sbr.rel (%p195) target = $region20
        $region19: #{memory_efficient_attn_block.2} parent=11 // pred_region
          _
        $region20: #{memory_efficient_attn_block.2} parent=11 // pred_fallthru
          _
        // Predicated region
        $region21: #{memory_efficient_attn_block.2} parent=11 // pred_check
          %p198 = pneg %p125
        $region22: #{memory_efficient_attn_block.2} parent=11 // pred_check_branch
          %200 = sbr.rel (%p198) target = $region24
        $region23: #{memory_efficient_attn_block.2} parent=11 // pred_region
          _
        $region24: #{memory_efficient_attn_block.2} parent=11 // pred_fallthru
          _
      $region12: #{memory_efficient_attn_block.2} parent=5 // pred_fallthru
        _
      %p201 = scmp.lt.s32.totalorder %s15, 8
      // Predicated region
      $region25: #{memory_efficient_attn_block.2} parent=5 // pred_check
        %p202 = pneg %p201
      $region26: #{memory_efficient_attn_block.2} parent=5 // pred_check_branch
        %204 = sbr.rel (%p202) target = $region28
      $region27: #{memory_efficient_attn_block.2} parent=5 // pred_region
        // Predicated region
        $region29: #{memory_efficient_attn_block.2} parent=27 // pred_check
          %p205 = pneg %p56
        $region30: #{memory_efficient_attn_block.2} parent=27 // pred_check_branch
          %207 = sbr.rel (%p205) target = $region32
        $region31: #{memory_efficient_attn_block.2} parent=27 // pred_region
          %s208 = sand.u32 %s46, 1
          %s209 = scalar_lea.sflag [#allocation5], %s208
          %s210 = sand.u32 %s46, 1
          %s211 = smul.addr %s210, 512
          %s212 = scalar_lea.vmem [#allocation4], %s211
          %s213 = smul.u32 64, %s24
          %s215 = ssub.s32 8192, 8192
          %216 = vsyncadd %s209, %s215
          %s217 = smul.addr %s22, 128
          %s218 = sadd.s32 %s213, %s217
          %s219 = smul.addr %s218, 128
          %s220 = scalar_lea.hbm %s0, %s219
          %s221 = sshll.u32 %s212, 4
          %s222 = int_to_ptr.vmem [resolvable:$true] %s221
          %227 = dma.hbm_to_vmem [thread:$0]  %s220, 8192, %s222, %s209, 128, 128, 8
        $region32: #{memory_efficient_attn_block.2} parent=27 // pred_fallthru
          _
      $region28: #{memory_efficient_attn_block.2} parent=5 // pred_fallthru
        _
      %p228 = scmp.le.s32.totalorder 1, %s15
      %p229 = scmp.lt.s32.totalorder %s15, 9
      %p230 = pnand %p228, %p229
      %p231 = pneg %p230
      // Predicated region
      $region33: #{memory_efficient_attn_block.2} parent=5 // pred_check
        _
      $region34: #{memory_efficient_attn_block.2} parent=5 // pred_check_branch
        %233 = sbr.rel (%p230) target = $region36
      $region35: #{memory_efficient_attn_block.2} parent=5 // pred_region
        %s234 = ssub.s32 %s15, 1
        %s235 = sand.u32 %s49, 1
        %s236 = scalar_lea.sflag [#allocation5], %s235
        %s237 = sand.u32 %s49, 1
        %s238 = smul.addr %s237, 512
        %s239 = scalar_lea.vmem [#allocation4], %s238
        // Predicated region
        $region37: #{memory_efficient_attn_block.2} parent=35 // pred_check
          %p240 = pneg %p62
        $region38: #{memory_efficient_attn_block.2} parent=35 // pred_check_branch
          %242 = sbr.rel (%p240) target = $region40
        $region39: #{memory_efficient_attn_block.2} parent=35 // pred_region
          %243 = dma.done %s236, 8192
        $region40: #{memory_efficient_attn_block.2} parent=35 // pred_fallthru
          _
        %s244 = sand.u32 %s49, 1
        %s245 = scalar_lea.sflag [#allocation5], %s244
        %s246 = sand.u32 %s49, 1
        %s247 = smul.addr %s246, 512
        %s248 = scalar_lea.vmem [#allocation4], %s247
        %p249 = pneg %p62
        %p250 = pneg %p59
        %p251 = pneg %p83
        %p252 = pneg %p80
        %p253 = pneg %p104
        %p254 = pneg %p101
        %p255 = pneg %p125
        %p256 = pneg %p122
        %p257 = pneg %p151
        %p258 = pneg %p148
        %p259 = scmp.lt.s32.totalorder %s25, 1
        %s260 = scalar_select %p259, %s25, 1
        %s261 = scalar_lea.vmem %s4, %s260
        %p262 = pneg %p177
        %p263 = pneg %p174
        %p264 = scmp.lt.s32.totalorder %s25, 1
        %s265 = scalar_select %p264, %s25, 1
        %s266 = scalar_lea.vmem %s5, %s265
        %s267 = smul.u32 64, %s27
        %p268 = scmp.lt.s32.totalorder %s25, 1
        %s269 = scalar_select %p268, %s25, 1
        %s270 = scalar_lea.vmem %s4, %s269
        %p271 = scmp.lt.s32.totalorder %s25, 1
        %s272 = scalar_select %p271, %s25, 1
        %s273 = scalar_lea.vmem %s5, %s272
        %p274 = scmp.eq.s32.totalorder %s27, 1
        %v275 = vld [vmem:[%s239] sm:$0xff]
        %v276 = vld [vmem:[%s239 + $0x8] sm:$0xff]
        %v277 = vld [vmem:[%s239 + $0x10] sm:$0xff]
        %v278 = vld [vmem:[%s239 + $0x18] sm:$0xff]
        %v279 = vld [vmem:[%s239 + $0x20] sm:$0xff]
        %v280 = vld [vmem:[%s239 + $0x28] sm:$0xff]
        %v281 = vld [vmem:[%s239 + $0x30] sm:$0xff]
        %v282 = vld [vmem:[%s239 + $0x38] sm:$0xff]
        %v283 = vld [vmem:[%s239 + $0x40] sm:$0xff]
        %v284 = vld [vmem:[%s239 + $0x48] sm:$0xff]
        %v285 = vld [vmem:[%s239 + $0x50] sm:$0xff]
        %v286 = vld [vmem:[%s239 + $0x58] sm:$0xff]
        %v287 = vld [vmem:[%s239 + $0x60] sm:$0xff]
        %v288 = vld [vmem:[%s239 + $0x68] sm:$0xff]
        %v289 = vld [vmem:[%s239 + $0x70] sm:$0xff]
        %v290 = vld [vmem:[%s239 + $0x78] sm:$0xff]
        %v291 = vld [vmem:[%s239 + $0x80] sm:$0xff]
        %v292 = vld [vmem:[%s239 + $0x88] sm:$0xff]
        %v293 = vld [vmem:[%s239 + $0x90] sm:$0xff]
        %v294 = vld [vmem:[%s239 + $0x98] sm:$0xff]
        %v295 = vld [vmem:[%s239 + $0xa0] sm:$0xff]
        %v296 = vld [vmem:[%s239 + $0xa8] sm:$0xff]
        %v297 = vld [vmem:[%s239 + $0xb0] sm:$0xff]
        %v298 = vld [vmem:[%s239 + $0xb8] sm:$0xff]
        %v299 = vld [vmem:[%s239 + $0xc0] sm:$0xff]
        %v300 = vld [vmem:[%s239 + $0xc8] sm:$0xff]
        %v301 = vld [vmem:[%s239 + $0xd0] sm:$0xff]
        %v302 = vld [vmem:[%s239 + $0xd8] sm:$0xff]
        %v303 = vld [vmem:[%s239 + $0xe0] sm:$0xff]
        %v304 = vld [vmem:[%s239 + $0xe8] sm:$0xff]
        %v305 = vld [vmem:[%s239 + $0xf0] sm:$0xff]
        %v306 = vld [vmem:[%s239 + $0xf8] sm:$0xff]
        %v307 = vld [vmem:[%s239 + $0x100] sm:$0xff]
        %v308 = vld [vmem:[%s239 + $0x108] sm:$0xff]
        %v309 = vld [vmem:[%s239 + $0x110] sm:$0xff]
        %v310 = vld [vmem:[%s239 + $0x118] sm:$0xff]
        %v311 = vld [vmem:[%s239 + $0x120] sm:$0xff]
        %v312 = vld [vmem:[%s239 + $0x128] sm:$0xff]
        %v313 = vld [vmem:[%s239 + $0x130] sm:$0xff]
        %v314 = vld [vmem:[%s239 + $0x138] sm:$0xff]
        %v315 = vld [vmem:[%s239 + $0x140] sm:$0xff]
        %v316 = vld [vmem:[%s239 + $0x148] sm:$0xff]
        %v317 = vld [vmem:[%s239 + $0x150] sm:$0xff]
        %v318 = vld [vmem:[%s239 + $0x158] sm:$0xff]
        %v319 = vld [vmem:[%s239 + $0x160] sm:$0xff]
        %v320 = vld [vmem:[%s239 + $0x168] sm:$0xff]
        %v321 = vld [vmem:[%s239 + $0x170] sm:$0xff]
        %v322 = vld [vmem:[%s239 + $0x178] sm:$0xff]
        %v323 = vld [vmem:[%s239 + $0x180] sm:$0xff]
        %v324 = vld [vmem:[%s239 + $0x188] sm:$0xff]
        %v325 = vld [vmem:[%s239 + $0x190] sm:$0xff]
        %v326 = vld [vmem:[%s239 + $0x198] sm:$0xff]
        %v327 = vld [vmem:[%s239 + $0x1a0] sm:$0xff]
        %v328 = vld [vmem:[%s239 + $0x1a8] sm:$0xff]
        %v329 = vld [vmem:[%s239 + $0x1b0] sm:$0xff]
        %v330 = vld [vmem:[%s239 + $0x1b8] sm:$0xff]
        %v331 = vld [vmem:[%s239 + $0x1c0] sm:$0xff]
        %v332 = vld [vmem:[%s239 + $0x1c8] sm:$0xff]
        %v333 = vld [vmem:[%s239 + $0x1d0] sm:$0xff]
        %v334 = vld [vmem:[%s239 + $0x1d8] sm:$0xff]
        %v335 = vld [vmem:[%s239 + $0x1e0] sm:$0xff]
        %v336 = vld [vmem:[%s239 + $0x1e8] sm:$0xff]
        %v337 = vld [vmem:[%s239 + $0x1f0] sm:$0xff]
        %v338 = vld [vmem:[%s239 + $0x1f8] sm:$0xff]
        %v339 = vld [vmem:[%s3] sm:$0xff]
        %v340 = vld [vmem:[%s3 + $0x8] sm:$0xff]
        %v341 = vld [vmem:[%s3 + $0x10] sm:$0xff]
        %v342 = vld [vmem:[%s3 + $0x18] sm:$0xff]
        %v343 = vld [vmem:[%s3 + $0x20] sm:$0xff]
        %v344 = vld [vmem:[%s3 + $0x28] sm:$0xff]
        %v345 = vld [vmem:[%s3 + $0x30] sm:$0xff]
        %v346 = vld [vmem:[%s3 + $0x38] sm:$0xff]
        %v347 = vld [vmem:[%s3 + $0x40] sm:$0xff]
        %v348 = vld [vmem:[%s3 + $0x48] sm:$0xff]
        %v349 = vld [vmem:[%s3 + $0x50] sm:$0xff]
        %v350 = vld [vmem:[%s3 + $0x58] sm:$0xff]
        %v351 = vld [vmem:[%s3 + $0x60] sm:$0xff]
        %v352 = vld [vmem:[%s3 + $0x68] sm:$0xff]
        %v353 = vld [vmem:[%s3 + $0x70] sm:$0xff]
        %v354 = vld [vmem:[%s3 + $0x78] sm:$0xff]
        %p355 = scmp.eq.s32.totalorder %s27, 0
        // Predicated region
        $region41: #{memory_efficient_attn_block.2} parent=35 // pred_check
          %p356 = pneg %p355
        $region42: #{memory_efficient_attn_block.2} parent=35 // pred_check_branch
          %358 = sbr.rel (%p356) target = $region44
        $region43: #{memory_efficient_attn_block.2} parent=35 // pred_region
          %359 = vst [vmem:[#allocation2] sm:$0x1] 0.0
        $region44: #{memory_efficient_attn_block.2} parent=35 // pred_fallthru
          _
        %p360 = scmp.eq.s32.totalorder %s26, 0
        // Predicated region
        $region45: #{memory_efficient_attn_block.2} parent=35 // pred_check
          %p361 = pneg %p360
        $region46: #{memory_efficient_attn_block.2} parent=35 // pred_check_branch
          %363 = sbr.rel (%p361) target = $region48
        $region47: #{memory_efficient_attn_block.2} parent=35 // pred_region
          %v364 = vld [vmem:[#allocation2] sm:$0x1]
          %v365 = vadd.f32 %v275, %v276
          %v366 = vadd.f32 %v365, %v277
          %v367 = vadd.f32 %v366, %v278
          %v368 = vadd.f32 %v367, %v279
          %v369 = vadd.f32 %v368, %v280
          %v370 = vadd.f32 %v369, %v281
          %v371 = vadd.f32 %v370, %v282
          %v372 = vadd.f32 %v371, %v283
          %v373 = vadd.f32 %v372, %v284
          %v374 = vadd.f32 %v373, %v285
          %v375 = vadd.f32 %v374, %v286
          %v376 = vadd.f32 %v375, %v287
          %v377 = vadd.f32 %v376, %v288
          %v378 = vadd.f32 %v377, %v289
          %v379 = vadd.f32 %v378, %v290
          %v380 = vadd.f32 %v379, %v291
          %v381 = vadd.f32 %v380, %v292
          %v382 = vadd.f32 %v381, %v293
          %v383 = vadd.f32 %v382, %v294
          %v384 = vadd.f32 %v383, %v295
          %v385 = vadd.f32 %v384, %v296
          %v386 = vadd.f32 %v385, %v297
          %v387 = vadd.f32 %v386, %v298
          %v388 = vadd.f32 %v387, %v299
          %v389 = vadd.f32 %v388, %v300
          %v390 = vadd.f32 %v389, %v301
          %v391 = vadd.f32 %v390, %v302
          %v392 = vadd.f32 %v391, %v303
          %v393 = vadd.f32 %v392, %v304
          %v394 = vadd.f32 %v393, %v305
          %v395 = vadd.f32 %v394, %v306
          %v396 = vadd.f32 %v395, %v307
          %v397 = vadd.f32 %v396, %v308
          %v398 = vadd.f32 %v397, %v309
          %v399 = vadd.f32 %v398, %v310
          %v400 = vadd.f32 %v399, %v311
          %v401 = vadd.f32 %v400, %v312
          %v402 = vadd.f32 %v401, %v313
          %v403 = vadd.f32 %v402, %v314
          %v404 = vadd.f32 %v403, %v315
          %v405 = vadd.f32 %v404, %v316
          %v406 = vadd.f32 %v405, %v317
          %v407 = vadd.f32 %v406, %v318
          %v408 = vadd.f32 %v407, %v319
          %v409 = vadd.f32 %v408, %v320
          %v410 = vadd.f32 %v409, %v321
          %v411 = vadd.f32 %v410, %v322
          %v412 = vadd.f32 %v411, %v323
          %v413 = vadd.f32 %v412, %v324
          %v414 = vadd.f32 %v413, %v325
          %v415 = vadd.f32 %v414, %v326
          %v416 = vadd.f32 %v415, %v327
          %v417 = vadd.f32 %v416, %v328
          %v418 = vadd.f32 %v417, %v329
          %v419 = vadd.f32 %v418, %v330
          %v420 = vadd.f32 %v419, %v331
          %v421 = vadd.f32 %v420, %v332
          %v422 = vadd.f32 %v421, %v333
          %v423 = vadd.f32 %v422, %v334
          %v424 = vadd.f32 %v423, %v335
          %v425 = vadd.f32 %v424, %v336
          %v426 = vadd.f32 %v425, %v337
          %v427 = vadd.f32 %v426, %v338
          %v428 = vrot.slane %v427, 4
          %v429 = vadd.f32 %v427, %v428
          %v430 = vrot.slane %v429, 2
          %v431 = vadd.f32 %v429, %v430
          %v432 = vrot.slane %v431, 1
          %v433 = vadd.f32 %v431, %v432
          %v434 = vadd.f32 %v364, %v433
          %435 = vst [vmem:[#allocation2] sm:$0x1] %v434
        $region48: #{memory_efficient_attn_block.2} parent=35 // pred_fallthru
          _
        %p436 = scmp.eq.s32.totalorder %s26, 1
        // Predicated region
        $region49: #{memory_efficient_attn_block.2} parent=35 // pred_check
          %p437 = pneg %p436
        $region50: #{memory_efficient_attn_block.2} parent=35 // pred_check_branch
          %439 = sbr.rel (%p437) target = $region52
        $region51: #{memory_efficient_attn_block.2} parent=35 // pred_region
          %v440 = vld [vmem:[#allocation3] sm:$0x1]
          %v442 = vlaneseq
          %v443 = vshrl.u32 %v442, 7
          %v444 = vsub.s32 0, %v443
          %v445 = vrot.slane %v440, %v444
          %v447 = vsub.f32 %v275, %v445
          %v448 = vsub.f32 %v276, %v445
          %v449 = vsub.f32 %v277, %v445
          %v450 = vsub.f32 %v278, %v445
          %v451 = vsub.f32 %v279, %v445
          %v452 = vsub.f32 %v280, %v445
          %v453 = vsub.f32 %v281, %v445
          %v454 = vsub.f32 %v282, %v445
          %v455 = vsub.f32 %v283, %v445
          %v456 = vsub.f32 %v284, %v445
          %v457 = vsub.f32 %v285, %v445
          %v458 = vsub.f32 %v286, %v445
          %v459 = vsub.f32 %v287, %v445
          %v460 = vsub.f32 %v288, %v445
          %v461 = vsub.f32 %v289, %v445
          %v462 = vsub.f32 %v290, %v445
          %v463 = vsub.f32 %v291, %v445
          %v464 = vsub.f32 %v292, %v445
          %v465 = vsub.f32 %v293, %v445
          %v466 = vsub.f32 %v294, %v445
          %v467 = vsub.f32 %v295, %v445
          %v468 = vsub.f32 %v296, %v445
          %v469 = vsub.f32 %v297, %v445
          %v470 = vsub.f32 %v298, %v445
          %v471 = vsub.f32 %v299, %v445
          %v472 = vsub.f32 %v300, %v445
          %v473 = vsub.f32 %v301, %v445
          %v474 = vsub.f32 %v302, %v445
          %v475 = vsub.f32 %v303, %v445
          %v476 = vsub.f32 %v304, %v445
          %v477 = vsub.f32 %v305, %v445
          %v478 = vsub.f32 %v306, %v445
          %v479 = vsub.f32 %v307, %v445
          %v480 = vsub.f32 %v308, %v445
          %v481 = vsub.f32 %v309, %v445
          %v482 = vsub.f32 %v310, %v445
          %v483 = vsub.f32 %v311, %v445
          %v484 = vsub.f32 %v312, %v445
          %v485 = vsub.f32 %v313, %v445
          %v486 = vsub.f32 %v314, %v445
          %v487 = vsub.f32 %v315, %v445
          %v488 = vsub.f32 %v316, %v445
          %v489 = vsub.f32 %v317, %v445
          %v490 = vsub.f32 %v318, %v445
          %v491 = vsub.f32 %v319, %v445
          %v492 = vsub.f32 %v320, %v445
          %v493 = vsub.f32 %v321, %v445
          %v494 = vsub.f32 %v322, %v445
          %v495 = vsub.f32 %v323, %v445
          %v496 = vsub.f32 %v324, %v445
          %v497 = vsub.f32 %v325, %v445
          %v498 = vsub.f32 %v326, %v445
          %v499 = vsub.f32 %v327, %v445
          %v500 = vsub.f32 %v328, %v445
          %v501 = vsub.f32 %v329, %v445
          %v502 = vsub.f32 %v330, %v445
          %v503 = vsub.f32 %v331, %v445
          %v504 = vsub.f32 %v332, %v445
          %v505 = vsub.f32 %v333, %v445
          %v506 = vsub.f32 %v334, %v445
          %v507 = vsub.f32 %v335, %v445
          %v508 = vsub.f32 %v336, %v445
          %v509 = vsub.f32 %v337, %v445
          %v510 = vsub.f32 %v338, %v445
          %v511 = vld [vmem:[#allocation2] sm:$0x1]
          %v512 = vmul.f32 %v447, %v447
          %v513 = vmul.f32 %v448, %v448
          %v514 = vmul.f32 %v449, %v449
          %v515 = vmul.f32 %v450, %v450
          %v516 = vmul.f32 %v451, %v451
          %v517 = vmul.f32 %v452, %v452
          %v518 = vmul.f32 %v453, %v453
          %v519 = vmul.f32 %v454, %v454
          %v520 = vmul.f32 %v455, %v455
          %v521 = vmul.f32 %v456, %v456
          %v522 = vmul.f32 %v457, %v457
          %v523 = vmul.f32 %v458, %v458
          %v524 = vmul.f32 %v459, %v459
          %v525 = vmul.f32 %v460, %v460
          %v526 = vmul.f32 %v461, %v461
          %v527 = vmul.f32 %v462, %v462
          %v528 = vmul.f32 %v463, %v463
          %v529 = vmul.f32 %v464, %v464
          %v530 = vmul.f32 %v465, %v465
          %v531 = vmul.f32 %v466, %v466
          %v532 = vmul.f32 %v467, %v467
          %v533 = vmul.f32 %v468, %v468
          %v534 = vmul.f32 %v469, %v469
          %v535 = vmul.f32 %v470, %v470
          %v536 = vmul.f32 %v471, %v471
          %v537 = vmul.f32 %v472, %v472
          %v538 = vmul.f32 %v473, %v473
          %v539 = vmul.f32 %v474, %v474
          %v540 = vmul.f32 %v475, %v475
          %v541 = vmul.f32 %v476, %v476
          %v542 = vmul.f32 %v477, %v477
          %v543 = vmul.f32 %v478, %v478
          %v544 = vmul.f32 %v479, %v479
          %v545 = vmul.f32 %v480, %v480
          %v546 = vmul.f32 %v481, %v481
          %v547 = vmul.f32 %v482, %v482
          %v548 = vmul.f32 %v483, %v483
          %v549 = vmul.f32 %v484, %v484
          %v550 = vmul.f32 %v485, %v485
          %v551 = vmul.f32 %v486, %v486
          %v552 = vmul.f32 %v487, %v487
          %v553 = vmul.f32 %v488, %v488
          %v554 = vmul.f32 %v489, %v489
          %v555 = vmul.f32 %v490, %v490
          %v556 = vmul.f32 %v491, %v491
          %v557 = vmul.f32 %v492, %v492
          %v558 = vmul.f32 %v493, %v493
          %v559 = vmul.f32 %v494, %v494
          %v560 = vmul.f32 %v495, %v495
          %v561 = vmul.f32 %v496, %v496
          %v562 = vmul.f32 %v497, %v497
          %v563 = vmul.f32 %v498, %v498
          %v564 = vmul.f32 %v499, %v499
          %v565 = vmul.f32 %v500, %v500
          %v566 = vmul.f32 %v501, %v501
          %v567 = vmul.f32 %v502, %v502
          %v568 = vmul.f32 %v503, %v503
          %v569 = vmul.f32 %v504, %v504
          %v570 = vmul.f32 %v505, %v505
          %v571 = vmul.f32 %v506, %v506
          %v572 = vmul.f32 %v507, %v507
          %v573 = vmul.f32 %v508, %v508
          %v574 = vmul.f32 %v509, %v509
          %v575 = vmul.f32 %v510, %v510
          %v576 = vadd.f32 %v512, %v513
          %v577 = vadd.f32 %v576, %v514
          %v578 = vadd.f32 %v577, %v515
          %v579 = vadd.f32 %v578, %v516
          %v580 = vadd.f32 %v579, %v517
          %v581 = vadd.f32 %v580, %v518
          %v582 = vadd.f32 %v581, %v519
          %v583 = vadd.f32 %v582, %v520
          %v584 = vadd.f32 %v583, %v521
          %v585 = vadd.f32 %v584, %v522
          %v586 = vadd.f32 %v585, %v523
          %v587 = vadd.f32 %v586, %v524
          %v588 = vadd.f32 %v587, %v525
          %v589 = vadd.f32 %v588, %v526
          %v590 = vadd.f32 %v589, %v527
          %v591 = vadd.f32 %v590, %v528
          %v592 = vadd.f32 %v591, %v529
          %v593 = vadd.f32 %v592, %v530
          %v594 = vadd.f32 %v593, %v531
          %v595 = vadd.f32 %v594, %v532
          %v596 = vadd.f32 %v595, %v533
          %v597 = vadd.f32 %v596, %v534
          %v598 = vadd.f32 %v597, %v535
          %v599 = vadd.f32 %v598, %v536
          %v600 = vadd.f32 %v599, %v537
          %v601 = vadd.f32 %v600, %v538
          %v602 = vadd.f32 %v601, %v539
          %v603 = vadd.f32 %v602, %v540
          %v604 = vadd.f32 %v603, %v541
          %v605 = vadd.f32 %v604, %v542
          %v606 = vadd.f32 %v605, %v543
          %v607 = vadd.f32 %v606, %v544
          %v608 = vadd.f32 %v607, %v545
          %v609 = vadd.f32 %v608, %v546
          %v610 = vadd.f32 %v609, %v547
          %v611 = vadd.f32 %v610, %v548
          %v612 = vadd.f32 %v611, %v549
          %v613 = vadd.f32 %v612, %v550
          %v614 = vadd.f32 %v613, %v551
          %v615 = vadd.f32 %v614, %v552
          %v616 = vadd.f32 %v615, %v553
          %v617 = vadd.f32 %v616, %v554
          %v618 = vadd.f32 %v617, %v555
          %v619 = vadd.f32 %v618, %v556
          %v620 = vadd.f32 %v619, %v557
          %v621 = vadd.f32 %v620, %v558
          %v622 = vadd.f32 %v621, %v559
          %v623 = vadd.f32 %v622, %v560
          %v624 = vadd.f32 %v623, %v561
          %v625 = vadd.f32 %v624, %v562
          %v626 = vadd.f32 %v625, %v563
          %v627 = vadd.f32 %v626, %v564
          %v628 = vadd.f32 %v627, %v565
          %v629 = vadd.f32 %v628, %v566
          %v630 = vadd.f32 %v629, %v567
          %v631 = vadd.f32 %v630, %v568
          %v632 = vadd.f32 %v631, %v569
          %v633 = vadd.f32 %v632, %v570
          %v634 = vadd.f32 %v633, %v571
          %v635 = vadd.f32 %v634, %v572
          %v636 = vadd.f32 %v635, %v573
          %v637 = vadd.f32 %v636, %v574
          %v638 = vadd.f32 %v637, %v575
          %v639 = vrot.slane %v638, 4
          %v640 = vadd.f32 %v638, %v639
          %v641 = vrot.slane %v640, 2
          %v642 = vadd.f32 %v640, %v641
          %v643 = vrot.slane %v642, 1
          %v644 = vadd.f32 %v642, %v643
          %v645 = vadd.f32 %v511, %v644
          %646 = vst [vmem:[#allocation2] sm:$0x1] %v645
        $region52: #{memory_efficient_attn_block.2} parent=35 // pred_fallthru
          _
        %p647 = pnand %p360, %p274
        %p648 = pneg %p647
        // Predicated region
        $region53: #{memory_efficient_attn_block.2} parent=35 // pred_check
          _
        $region54: #{memory_efficient_attn_block.2} parent=35 // pred_check_branch
          %650 = sbr.rel (%p647) target = $region56
        $region55: #{memory_efficient_attn_block.2} parent=35 // pred_region
          %v651 = vld [vmem:[#allocation2] sm:$0x1]
          %652 = vmatprep.subr.mxu0 0.0
          %653 = vmatpush1.msra.mxu0 %v339
          %654 = vmatprep.subr.mxu0 0.0
          %655 = vmatpush1.msra.mxu0 %v340
          %656 = vmatprep.subr.mxu0 0.0
          %657 = vmatpush1.msra.mxu0 %v341
          %658 = vmatprep.subr.mxu0 0.0
          %659 = vmatpush1.msra.mxu0 %v342
          %660 = vmatprep.subr.mxu0 0.0
          %661 = vmatpush1.msra.mxu0 %v343
          %662 = vmatprep.subr.mxu0 0.0
          %663 = vmatpush1.msra.mxu0 %v344
          %664 = vmatprep.subr.mxu0 0.0
          %665 = vmatpush1.msra.mxu0 %v345
          %666 = vmatprep.subr.mxu0 0.0
          %667 = vmatpush1.msra.mxu0 %v346
          %668 = vmatprep.subr.mxu0 0.0
          %669 = vmatpush1.msra.mxu0 %v347
          %670 = vmatprep.subr.mxu0 0.0
          %671 = vmatpush1.msra.mxu0 %v348
          %672 = vmatprep.subr.mxu0 0.0
          %673 = vmatpush1.msra.mxu0 %v349
          %674 = vmatprep.subr.mxu0 0.0
          %675 = vmatpush1.msra.mxu0 %v350
          %676 = vmatprep.subr.mxu0 0.0
          %677 = vmatpush1.msra.mxu0 %v351
          %678 = vmatprep.subr.mxu0 0.0
          %679 = vmatpush1.msra.mxu0 %v352
          %680 = vmatprep.subr.mxu0 0.0
          %681 = vmatpush1.msra.mxu0 %v353
          %682 = vmatprep.subr.mxu0 0.0
          %683 = vmatpush1.msra.mxu0 %v354
          %684 = vmatprep.subr.mxu0 0.0
          %685 = vmatpush1.msra.mxu0 0.0
          %686 = vmatprep.subr.mxu0 0.0
          %687 = vmatpush1.msra.mxu0 0.0
          %688 = vmatprep.subr.mxu0 0.0
          %689 = vmatpush1.msra.mxu0 0.0
          %690 = vmatprep.subr.mxu0 0.0
          %691 = vmatpush1.msra.mxu0 0.0
          %692 = vmatprep.subr.mxu0 0.0
          %693 = vmatpush1.msra.mxu0 0.0
          %694 = vmatprep.subr.mxu0 0.0
          %695 = vmatpush1.msra.mxu0 0.0
          %696 = vmatprep.subr.mxu0 0.0
          %697 = vmatpush1.msra.mxu0 0.0
          %698 = vmatprep.subr.mxu0 0.0
          %699 = vmatpush1.msra.mxu0 0.0
          %700 = vmatprep.subr.mxu0 0.0
          %701 = vmatpush1.msra.mxu0 0.0
          %702 = vmatprep.subr.mxu0 0.0
          %703 = vmatpush1.msra.mxu0 0.0
          %704 = vmatprep.subr.mxu0 0.0
          %705 = vmatpush1.msra.mxu0 0.0
          %706 = vmatprep.subr.mxu0 0.0
          %707 = vmatpush1.msra.mxu0 0.0
          %708 = vmatprep.subr.mxu0 0.0
          %709 = vmatpush1.msra.mxu0 0.0
          %710 = vmatprep.subr.mxu0 0.0
          %711 = vmatpush1.msra.mxu0 0.0
          %712 = vmatprep.subr.mxu0 0.0
          %713 = vmatpush1.msra.mxu0 0.0
          %714 = vmatprep.subr.mxu0 0.0
          %715 = vmatpush1.msra.mxu0 0.0
          %716 = vmatprep.mubr.f32.mxu0 0.0
          %717 = vmatmul.mubr.f32.gmra.mrb[0].mxu0 %v651
          %v718 = vpop.f32.mrb[0].mxu0
          %v719 = vadd.f32 0.0, %v718
          %v720 = vpop.f32.mrb[0].mxu0
          %721 = vdwg.mxu0
          %v722 = vmul.f32 %v719, 0.00024414063
          %vm723 = vcmask 261120
          %v725 = vsel %vm723, %v722, 0
          %v728 = vsel %vm723, %v339, 0
          %v731 = vsel %vm723, %v340, 0
          %v734 = vsel %vm723, %v341, 0
          %v737 = vsel %vm723, %v342, 0
          %v740 = vsel %vm723, %v343, 0
          %v743 = vsel %vm723, %v344, 0
          %v746 = vsel %vm723, %v345, 0
          %v749 = vsel %vm723, %v346, 0
          %v752 = vsel %vm723, %v347, 0
          %v755 = vsel %vm723, %v348, 0
          %v758 = vsel %vm723, %v349, 0
          %v761 = vsel %vm723, %v350, 0
          %v764 = vsel %vm723, %v351, 0
          %v767 = vsel %vm723, %v352, 0
          %v770 = vsel %vm723, %v353, 0
          %v773 = vsel %vm723, %v354, 0
          %775 = vmatprep.subr.mxu0 0.0
          %776 = vmatpush1.xpose.msra.mxu0 %v728
          %777 = vmatprep.subr.mxu0 0.0
          %778 = vmatpush1.xpose.msra.mxu0 %v731
          %779 = vmatprep.subr.mxu0 0.0
          %780 = vmatpush1.xpose.msra.mxu0 %v734
          %781 = vmatprep.subr.mxu0 0.0
          %782 = vmatpush1.xpose.msra.mxu0 %v737
          %783 = vmatprep.subr.mxu0 0.0
          %784 = vmatpush1.xpose.msra.mxu0 %v740
          %785 = vmatprep.subr.mxu0 0.0
          %786 = vmatpush1.xpose.msra.mxu0 %v743
          %787 = vmatprep.subr.mxu0 0.0
          %788 = vmatpush1.xpose.msra.mxu0 %v746
          %789 = vmatprep.subr.mxu0 0.0
          %790 = vmatpush1.xpose.msra.mxu0 %v749
          %791 = vmatprep.subr.mxu0 0.0
          %792 = vmatpush1.xpose.msra.mxu0 %v752
          %793 = vmatprep.subr.mxu0 0.0
          %794 = vmatpush1.xpose.msra.mxu0 %v755
          %795 = vmatprep.subr.mxu0 0.0
          %796 = vmatpush1.xpose.msra.mxu0 %v758
          %797 = vmatprep.subr.mxu0 0.0
          %798 = vmatpush1.xpose.msra.mxu0 %v761
          %799 = vmatprep.subr.mxu0 0.0
          %800 = vmatpush1.xpose.msra.mxu0 %v764
          %801 = vmatprep.subr.mxu0 0.0
          %802 = vmatpush1.xpose.msra.mxu0 %v767
          %803 = vmatprep.subr.mxu0 0.0
          %804 = vmatpush1.xpose.msra.mxu0 %v770
          %805 = vmatprep.subr.mxu0 0.0
          %806 = vmatpush1.xpose.msra.mxu0 %v773
          %807 = vmatprep.subr.mxu0 0.0
          %808 = vmatpush1.xpose.msra.mxu0 0.0
          %809 = vmatprep.subr.mxu0 0.0
          %810 = vmatpush1.xpose.msra.mxu0 0.0
          %811 = vmatprep.subr.mxu0 0.0
          %812 = vmatpush1.xpose.msra.mxu0 0.0
          %813 = vmatprep.subr.mxu0 0.0
          %814 = vmatpush1.xpose.msra.mxu0 0.0
          %815 = vmatprep.subr.mxu0 0.0
          %816 = vmatpush1.xpose.msra.mxu0 0.0
          %817 = vmatprep.subr.mxu0 0.0
          %818 = vmatpush1.xpose.msra.mxu0 0.0
          %819 = vmatprep.subr.mxu0 0.0
          %820 = vmatpush1.xpose.msra.mxu0 0.0
          %821 = vmatprep.subr.mxu0 0.0
          %822 = vmatpush1.xpose.msra.mxu0 0.0
          %823 = vmatprep.subr.mxu0 0.0
          %824 = vmatpush1.xpose.msra.mxu0 0.0
          %825 = vmatprep.subr.mxu0 0.0
          %826 = vmatpush1.xpose.msra.mxu0 0.0
          %827 = vmatprep.subr.mxu0 0.0
          %828 = vmatpush1.xpose.msra.mxu0 0.0
          %829 = vmatprep.subr.mxu0 0.0
          %830 = vmatpush1.xpose.msra.mxu0 0.0
          %831 = vmatprep.subr.mxu0 0.0
          %832 = vmatpush1.xpose.msra.mxu0 0.0
          %833 = vmatprep.subr.mxu0 0.0
          %834 = vmatpush1.xpose.msra.mxu0 0.0
          %835 = vmatprep.subr.mxu0 0.0
          %836 = vmatpush1.xpose.msra.mxu0 0.0
          %837 = vmatprep.subr.mxu0 0.0
          %838 = vmatpush1.xpose.msra.mxu0 0.0
          %839 = vmatprep.mubr.f32.mxu0 0.0
          %840 = vmatmul.mubr.f32.gmra.mrb[0].mxu0 %v725
          %v841 = vpop.f32.mrb[0].mxu0
          %v842 = vadd.f32 0.0, %v841
          %v843 = vpop.f32.mrb[0].mxu0
          %844 = vdwg.mxu0
          %845 = vst [vmem:[#allocation3] sm:$0x1] %v842
        $region56: #{memory_efficient_attn_block.2} parent=35 // pred_fallthru
          _
        %p846 = pnand %p436, %p274
        %p847 = pneg %p846
        // Predicated region
        $region57: #{memory_efficient_attn_block.2} parent=35 // pred_check
          _
        $region58: #{memory_efficient_attn_block.2} parent=35 // pred_check_branch
          %849 = sbr.rel (%p846) target = $region60
        $region59: #{memory_efficient_attn_block.2} parent=35 // pred_region
          %v850 = vld [vmem:[#allocation2] sm:$0x1]
          %851 = vmatprep.subr.mxu0 0.0
          %852 = vmatpush1.msra.mxu0 %v339
          %853 = vmatprep.subr.mxu0 0.0
          %854 = vmatpush1.msra.mxu0 %v340
          %855 = vmatprep.subr.mxu0 0.0
          %856 = vmatpush1.msra.mxu0 %v341
          %857 = vmatprep.subr.mxu0 0.0
          %858 = vmatpush1.msra.mxu0 %v342
          %859 = vmatprep.subr.mxu0 0.0
          %860 = vmatpush1.msra.mxu0 %v343
          %861 = vmatprep.subr.mxu0 0.0
          %862 = vmatpush1.msra.mxu0 %v344
          %863 = vmatprep.subr.mxu0 0.0
          %864 = vmatpush1.msra.mxu0 %v345
          %865 = vmatprep.subr.mxu0 0.0
          %866 = vmatpush1.msra.mxu0 %v346
          %867 = vmatprep.subr.mxu0 0.0
          %868 = vmatpush1.msra.mxu0 %v347
          %869 = vmatprep.subr.mxu0 0.0
          %870 = vmatpush1.msra.mxu0 %v348
          %871 = vmatprep.subr.mxu0 0.0
          %872 = vmatpush1.msra.mxu0 %v349
          %873 = vmatprep.subr.mxu0 0.0
          %874 = vmatpush1.msra.mxu0 %v350
          %875 = vmatprep.subr.mxu0 0.0
          %876 = vmatpush1.msra.mxu0 %v351
          %877 = vmatprep.subr.mxu0 0.0
          %878 = vmatpush1.msra.mxu0 %v352
          %879 = vmatprep.subr.mxu0 0.0
          %880 = vmatpush1.msra.mxu0 %v353
          %881 = vmatprep.subr.mxu0 0.0
          %882 = vmatpush1.msra.mxu0 %v354
          %883 = vmatprep.subr.mxu0 0.0
          %884 = vmatpush1.msra.mxu0 0.0
          %885 = vmatprep.subr.mxu0 0.0
          %886 = vmatpush1.msra.mxu0 0.0
          %887 = vmatprep.subr.mxu0 0.0
          %888 = vmatpush1.msra.mxu0 0.0
          %889 = vmatprep.subr.mxu0 0.0
          %890 = vmatpush1.msra.mxu0 0.0
          %891 = vmatprep.subr.mxu0 0.0
          %892 = vmatpush1.msra.mxu0 0.0
          %893 = vmatprep.subr.mxu0 0.0
          %894 = vmatpush1.msra.mxu0 0.0
          %895 = vmatprep.subr.mxu0 0.0
          %896 = vmatpush1.msra.mxu0 0.0
          %897 = vmatprep.subr.mxu0 0.0
          %898 = vmatpush1.msra.mxu0 0.0
          %899 = vmatprep.subr.mxu0 0.0
          %900 = vmatpush1.msra.mxu0 0.0
          %901 = vmatprep.subr.mxu0 0.0
          %902 = vmatpush1.msra.mxu0 0.0
          %903 = vmatprep.subr.mxu0 0.0
          %904 = vmatpush1.msra.mxu0 0.0
          %905 = vmatprep.subr.mxu0 0.0
          %906 = vmatpush1.msra.mxu0 0.0
          %907 = vmatprep.subr.mxu0 0.0
          %908 = vmatpush1.msra.mxu0 0.0
          %909 = vmatprep.subr.mxu0 0.0
          %910 = vmatpush1.msra.mxu0 0.0
          %911 = vmatprep.subr.mxu0 0.0
          %912 = vmatpush1.msra.mxu0 0.0
          %913 = vmatprep.subr.mxu0 0.0
          %914 = vmatpush1.msra.mxu0 0.0
          %915 = vmatprep.mubr.f32.mxu0 0.0
          %916 = vmatmul.mubr.f32.gmra.mrb[0].mxu0 %v850
          %v917 = vpop.f32.mrb[0].mxu0
          %v918 = vadd.f32 0.0, %v917
          %v919 = vpop.f32.mrb[0].mxu0
          %920 = vdwg.mxu0
          %v921 = vmul.f32 %v918, 0.00024414063
          %vm922 = vcmask 261120
          %v924 = vsel %vm922, %v921, 0
          %v927 = vsel %vm922, %v339, 0
          %v930 = vsel %vm922, %v340, 0
          %v933 = vsel %vm922, %v341, 0
          %v936 = vsel %vm922, %v342, 0
          %v939 = vsel %vm922, %v343, 0
          %v942 = vsel %vm922, %v344, 0
          %v945 = vsel %vm922, %v345, 0
          %v948 = vsel %vm922, %v346, 0
          %v951 = vsel %vm922, %v347, 0
          %v954 = vsel %vm922, %v348, 0
          %v957 = vsel %vm922, %v349, 0
          %v960 = vsel %vm922, %v350, 0
          %v963 = vsel %vm922, %v351, 0
          %v966 = vsel %vm922, %v352, 0
          %v969 = vsel %vm922, %v353, 0
          %v972 = vsel %vm922, %v354, 0
          %974 = vmatprep.subr.mxu0 0.0
          %975 = vmatpush1.xpose.msra.mxu0 %v927
          %976 = vmatprep.subr.mxu0 0.0
          %977 = vmatpush1.xpose.msra.mxu0 %v930
          %978 = vmatprep.subr.mxu0 0.0
          %979 = vmatpush1.xpose.msra.mxu0 %v933
          %980 = vmatprep.subr.mxu0 0.0
          %981 = vmatpush1.xpose.msra.mxu0 %v936
          %982 = vmatprep.subr.mxu0 0.0
          %983 = vmatpush1.xpose.msra.mxu0 %v939
          %984 = vmatprep.subr.mxu0 0.0
          %985 = vmatpush1.xpose.msra.mxu0 %v942
          %986 = vmatprep.subr.mxu0 0.0
          %987 = vmatpush1.xpose.msra.mxu0 %v945
          %988 = vmatprep.subr.mxu0 0.0
          %989 = vmatpush1.xpose.msra.mxu0 %v948
          %990 = vmatprep.subr.mxu0 0.0
          %991 = vmatpush1.xpose.msra.mxu0 %v951
          %992 = vmatprep.subr.mxu0 0.0
          %993 = vmatpush1.xpose.msra.mxu0 %v954
          %994 = vmatprep.subr.mxu0 0.0
          %995 = vmatpush1.xpose.msra.mxu0 %v957
          %996 = vmatprep.subr.mxu0 0.0
          %997 = vmatpush1.xpose.msra.mxu0 %v960
          %998 = vmatprep.subr.mxu0 0.0
          %999 = vmatpush1.xpose.msra.mxu0 %v963
          %1000 = vmatprep.subr.mxu0 0.0
          %1001 = vmatpush1.xpose.msra.mxu0 %v966
          %1002 = vmatprep.subr.mxu0 0.0
          %1003 = vmatpush1.xpose.msra.mxu0 %v969
          %1004 = vmatprep.subr.mxu0 0.0
          %1005 = vmatpush1.xpose.msra.mxu0 %v972
          %1006 = vmatprep.subr.mxu0 0.0
          %1007 = vmatpush1.xpose.msra.mxu0 0.0
          %1008 = vmatprep.subr.mxu0 0.0
          %1009 = vmatpush1.xpose.msra.mxu0 0.0
          %1010 = vmatprep.subr.mxu0 0.0
          %1011 = vmatpush1.xpose.msra.mxu0 0.0
          %1012 = vmatprep.subr.mxu0 0.0
          %1013 = vmatpush1.xpose.msra.mxu0 0.0
          %1014 = vmatprep.subr.mxu0 0.0
          %1015 = vmatpush1.xpose.msra.mxu0 0.0
          %1016 = vmatprep.subr.mxu0 0.0
          %1017 = vmatpush1.xpose.msra.mxu0 0.0
          %1018 = vmatprep.subr.mxu0 0.0
          %1019 = vmatpush1.xpose.msra.mxu0 0.0
          %1020 = vmatprep.subr.mxu0 0.0
          %1021 = vmatpush1.xpose.msra.mxu0 0.0
          %1022 = vmatprep.subr.mxu0 0.0
          %1023 = vmatpush1.xpose.msra.mxu0 0.0
          %1024 = vmatprep.subr.mxu0 0.0
          %1025 = vmatpush1.xpose.msra.mxu0 0.0
          %1026 = vmatprep.subr.mxu0 0.0
          %1027 = vmatpush1.xpose.msra.mxu0 0.0
          %1028 = vmatprep.subr.mxu0 0.0
          %1029 = vmatpush1.xpose.msra.mxu0 0.0
          %1030 = vmatprep.subr.mxu0 0.0
          %1031 = vmatpush1.xpose.msra.mxu0 0.0
          %1032 = vmatprep.subr.mxu0 0.0
          %1033 = vmatpush1.xpose.msra.mxu0 0.0
          %1034 = vmatprep.subr.mxu0 0.0
          %1035 = vmatpush1.xpose.msra.mxu0 0.0
          %1036 = vmatprep.subr.mxu0 0.0
          %1037 = vmatpush1.xpose.msra.mxu0 0.0
          %1038 = vmatprep.mubr.f32.mxu0 0.0
          %1039 = vmatmul.mubr.f32.gmra.mrb[0].mxu0 %v924
          %v1040 = vpop.f32.mrb[0].mxu0
          %v1041 = vadd.f32 1e-06, %v1040
          %v1042 = vpop.f32.mrb[0].mxu0
          %1043 = vdwg.mxu0
          %v1044 = vrsqrt.pop %v1041
          %v1045 = vld [vmem:[%s1] sm:$0x1]
          %v1046 = vmul.f32 %v1044, %v1045
          %1047 = vst [vmem:[%s270] sm:$0x1] %v1046
          %v1048 = vld [vmem:[%s2] sm:$0x1]
          %v1049 = vld [vmem:[#allocation3] sm:$0x1]
          %v1050 = vmul.f32 %v1049, %v1046
          %v1051 = vsub.f32 %v1048, %v1050
          %1052 = vst [vmem:[%s273] sm:$0x1] %v1051
        $region60: #{memory_efficient_attn_block.2} parent=35 // pred_fallthru
          _
        %p1053 = scmp.lt.s32.totalorder %s25, 1
        %s1054 = scalar_select %p1053, %s25, 1
        %s1055 = scalar_lea.vmem %s4, %s1054
        %p1056 = scmp.lt.s32.totalorder %s25, 1
        %s1057 = scalar_select %p1056, %s25, 1
        %s1058 = scalar_lea.vmem %s5, %s1057
        // Predicated region
        $region61: #{memory_efficient_attn_block.2} parent=35 // pred_check
          %p1059 = pneg %p148
        $region62: #{memory_efficient_attn_block.2} parent=35 // pred_check_branch
          %1061 = sbr.rel (%p1059) target = $region64
        $region63: #{memory_efficient_attn_block.2} parent=35 // pred_region
          _
        $region64: #{memory_efficient_attn_block.2} parent=35 // pred_fallthru
          _
        // Predicated region
        $region65: #{memory_efficient_attn_block.2} parent=35 // pred_check
          %p1062 = pneg %p174
        $region66: #{memory_efficient_attn_block.2} parent=35 // pred_check_branch
          %1064 = sbr.rel (%p1062) target = $region68
        $region67: #{memory_efficient_attn_block.2} parent=35 // pred_region
          _
        $region68: #{memory_efficient_attn_block.2} parent=35 // pred_fallthru
          _
      $region36: #{memory_efficient_attn_block.2} parent=5 // pred_fallthru
        _
      %p1065 = scmp.le.s32.totalorder 2, %s15
      // Predicated region
      $region69: #{memory_efficient_attn_block.2} parent=5 // pred_check
        %p1066 = pneg %p1065
      $region70: #{memory_efficient_attn_block.2} parent=5 // pred_check_branch
        %1068 = sbr.rel (%p1066) target = $region72
      $region71: #{memory_efficient_attn_block.2} parent=5 // pred_region
        %s1069 = ssub.s32 %s15, 2
        // Predicated region
        $region73: #{memory_efficient_attn_block.2} parent=71 // pred_check
          %p1070 = pneg %p154
        $region74: #{memory_efficient_attn_block.2} parent=71 // pred_check_branch
          %1072 = sbr.rel (%p1070) target = $region76
        $region75: #{memory_efficient_attn_block.2} parent=71 // pred_region
          %p1073 = scmp.lt.s32.totalorder %s28, 1
          %s1074 = scalar_select %p1073, %s28, 1
          %s1075 = scalar_lea.vmem %s4, %s1074
        $region76: #{memory_efficient_attn_block.2} parent=71 // pred_fallthru
          _
        // Predicated region
        $region77: #{memory_efficient_attn_block.2} parent=71 // pred_check
          %p1076 = pneg %p180
        $region78: #{memory_efficient_attn_block.2} parent=71 // pred_check_branch
          %1078 = sbr.rel (%p1076) target = $region80
        $region79: #{memory_efficient_attn_block.2} parent=71 // pred_region
          %p1079 = scmp.lt.s32.totalorder %s28, 1
          %s1080 = scalar_select %p1079, %s28, 1
          %s1081 = scalar_lea.vmem %s5, %s1080
        $region80: #{memory_efficient_attn_block.2} parent=71 // pred_fallthru
          _
      $region72: #{memory_efficient_attn_block.2} parent=5 // pred_fallthru
        _
    $region6: #{memory_efficient_attn_block.2} parent=1 // loop_footer
      %s19 = sadd.s32 1, %s15
    $region7: #{memory_efficient_attn_block.2} parent=1 // loop_footer_branch
      %14 = sbr.rel target = $region3
    $region8: #{memory_efficient_attn_block.2} parent=1 // loop_exit
      _
    %1082 = vsyncpa [#allocation5], 1
    %s1083 = scalar_lea.sflag [#allocation5], 1
    %1084 = vsyncpa %s1083, 1

// kernel: memory_efficient_attn_block.3
$region0: #{memory_efficient_attn_block.3}
  #allocation0 [shape = 'u32[]', space=smem, size = 0x4, offset = 0x4, fixed_abs, tag = 'smem constant byte address 0x4 - core index']
  #allocation1 [shape = 'u32[144,128]{1,0:T(1,128)}', space=vmem, size = 0x12000, scoped, tag = 'internal scratch']
  #allocation2 [shape = 'bf16[256,128]{1,0:T(16,128)(2,1)}', space=vmem, size = 0x10000, scoped, tag = 'scratch operand']
  #allocation3 [shape = 'f32[256,1]{1,0:T(8,128)}', space=vmem, size = 0x20000, scoped, tag = 'scratch operand']
  #allocation4 [shape = 'f32[256,1]{1,0:T(8,128)}', space=vmem, size = 0x20000, scoped, tag = 'scratch operand']
  #allocation5 [shape = 'f32[256,128]{1,0:T(8,128)}', space=vmem, size = 0x20000, scoped, tag = 'scratch operand']
  %s0 = inlined_call_operand.vmem [shape: f32[2,1024,128], index: 0, kind: input, shape index: {}, may-alias: {0,1}]
  %s1 = inlined_call_operand.vmem [shape: f32[2,1024,128], index: 1, kind: input, shape index: {}, may-alias: {0,1}]
  %s2 = inlined_call_operand.vmem [shape: f32[2,1,128], index: 2, kind: input, shape index: {}]
  %s3 = inlined_call_operand.vmem [shape: f32[2,1,128], index: 3, kind: input, shape index: {}]
  %s4 = inlined_call_operand.vmem [shape: bf16[128,128], index: 4, kind: input, shape index: {}]
  %s5 = inlined_call_operand.vmem [shape: f32[1,128], index: 5, kind: input, shape index: {}]
  %s6 = inlined_call_operand.vmem [shape: bf16[128,256], index: 6, kind: input, shape index: {}]
  %s7 = inlined_call_operand.vmem [shape: f32[1,256], index: 7, kind: input, shape index: {}]
  %s8 = inlined_call_operand.vmem [shape: bf16[128,128], index: 8, kind: input, shape index: {}]
  %s9 = inlined_call_operand.vmem [shape: f32[1,128], index: 9, kind: input, shape index: {}]
  %s10 = inlined_call_operand.hbm [shape: f32[2,1024,128], index: 10, kind: output, shape index: {}]
  %s11 = sld [smem:[#allocation0]]
  $region81: #{memory_efficient_attn_block.3} parent=0
    _
  %s13 = ssub.s32 1, %s11
  %s14 = scalar_select 0, %s13, %s11
  $region1: #{memory_efficient_attn_block.3} parent=0
    #allocation6 [shape = 'u8[262144]{0}', space=vmem, size = 0x40000, scoped, tag = 'output window, operand 0']
    #allocation7 [shape = 's32[2]{0}', space=sflag, size = 0x8, scoped, tag = 'scoped memory for memory_efficient_attn_block.3']
    %15 = vsyncpa [#allocation7], 0
    %s16 = scalar_lea.sflag [#allocation7], 1
    %17 = vsyncpa %s16, 0
    loop: start=0, step=1, limit=18
    $region2: #{memory_efficient_attn_block.3} parent=1 // loop_pre_header
      _
    $region3: #{memory_efficient_attn_block.3} parent=1 // loop_header
      %s19 = sphi 0, %s23
      %p20 = scmp.ge.s32.totalorder %s19, 18
      %s26 = sphi 0, %s45
      %s27 = sphi 0, %s41
      %s28 = sphi 0, %s37
      %s29 = sphi 0, %s26
      %s30 = sphi 0, %s27
      %s31 = sphi 0, %s28
      %s32 = sphi 0, %s29
      %s33 = sphi 0, %s30
      %s34 = sphi 0, %s31
      %s50 = sphi 0, %s52
      %s53 = sphi 0, %s50
      %s54 = sphi 0, %s53
      %s70 = sphi 0, %s54
      %s78 = sphi 0, %s80
      %s81 = sphi 0, %s78
      %s82 = sphi 0, %s81
      %s98 = sphi 0, %s82
      %s104 = sphi 0, %s106
      %s107 = sphi 0, %s104
      %s108 = sphi 0, %s107
      %s124 = sphi 0, %s108
      %s130 = sphi 0, %s132
      %s133 = sphi 0, %s130
      %s134 = sphi 0, %s133
      %s150 = sphi 0, %s134
      %s154 = sphi 0, %s154
      %s156 = sphi 0, %s154
      %s157 = sphi 0, %s156
      %s171 = sphi 0, %s157
      %s175 = sphi 0, %s175
      %s177 = sphi 0, %s175
      %s178 = sphi 0, %s177
      %s192 = sphi 0, %s178
      %s196 = sphi 0, %s196
      %s198 = sphi 0, %s196
      %s199 = sphi 0, %s198
      %s213 = sphi 0, %s199
      %s217 = sphi 0, %s217
      %s219 = sphi 0, %s217
      %s220 = sphi 0, %s219
      %s234 = sphi 0, %s220
      %s238 = sphi 0, %s238
      %s240 = sphi 0, %s238
      %s241 = sphi 0, %s240
      %s255 = sphi 0, %s241
      %s259 = sphi 0, %s259
      %s261 = sphi 0, %s259
      %s262 = sphi 0, %s261
      %s276 = sphi 0, %s262
      %s284 = sphi 0, %s286
      %s287 = sphi 0, %s284
      %s288 = sphi 0, %s287
      %s304 = sphi 0, %s288
    $region4: #{memory_efficient_attn_block.3} parent=1 // loop_header_branch
      %22 = sbr.rel (%p20) target = $region8
    $region5: #{memory_efficient_attn_block.3} parent=1 // loop_body
      %s24 = ssub.s32 %s19, 1
      %s25 = ssub.s32 %s19, 2
      %s35 = sadd.s32 1, %s28
      %p36 = scmp.ge.s32.totalorder %s35, 2
      %s37 = scalar_select %p36, 0, %s35
      %s38 = sadd.s32 1, %s27
      %s39 = scalar_select %p36, %s38, %s27
      %p40 = scmp.ge.s32.totalorder %s39, 4
      %s41 = scalar_select %p40, 0, %s39
      %s42 = sadd.s32 1, %s26
      %s43 = scalar_select %p40, %s42, %s26
      %p44 = scmp.ge.s32.totalorder %s43, 2
      %s45 = scalar_select %p44, 0, %s43
      %s46 = ssub.s32 %s26, %s45
      %s47 = ssub.s32 %s27, %s41
      %s48 = sor.u32 %s46, %s47
      %p49 = scmp.eq.s32.totalorder %s48, 0
      %s51 = sadd.s32 %s50, 1
      %s52 = scalar_select %p49, %s50, %s51
      %p55 = pneg %p49
      %p56 = scmp.eq.s32.totalorder %s19, 15
      %p57 = por %p55, %p56
      %p58 = scmp.ne.s32.totalorder %s50, %s53
      %p59 = scmp.eq.s32.totalorder %s19, 0
      %p60 = por %p58, %p59
      %p61 = scmp.ne.s32.totalorder %s50, %s53
      %p62 = scmp.eq.s32.totalorder %s24, 15
      %p63 = por %p61, %p62
      %p64 = scmp.ne.s32.totalorder %s53, %s54
      %p65 = scmp.eq.s32.totalorder %s24, 0
      %p66 = por %p64, %p65
      %p67 = scmp.ne.s32.totalorder %s53, %s54
      %p68 = scmp.eq.s32.totalorder %s25, 15
      %p69 = por %p67, %p68
      %p71 = scmp.ne.s32.totalorder %s54, %s70
      %p72 = scmp.eq.s32.totalorder %s25, 0
      %p73 = por %p71, %p72
      %s74 = ssub.s32 %s26, %s45
      %s75 = ssub.s32 %s28, %s37
      %s76 = sor.u32 %s74, %s75
      %p77 = scmp.eq.s32.totalorder %s76, 0
      %s79 = sadd.s32 %s78, 1
      %s80 = scalar_select %p77, %s78, %s79
      %p83 = pneg %p77
      %p84 = scmp.eq.s32.totalorder %s19, 15
      %p85 = por %p83, %p84
      %p86 = scmp.ne.s32.totalorder %s78, %s81
      %p87 = scmp.eq.s32.totalorder %s19, 0
      %p88 = por %p86, %p87
      %p89 = scmp.ne.s32.totalorder %s78, %s81
      %p90 = scmp.eq.s32.totalorder %s24, 15
      %p91 = por %p89, %p90
      %p92 = scmp.ne.s32.totalorder %s81, %s82
      %p93 = scmp.eq.s32.totalorder %s24, 0
      %p94 = por %p92, %p93
      %p95 = scmp.ne.s32.totalorder %s81, %s82
      %p96 = scmp.eq.s32.totalorder %s25, 15
      %p97 = por %p95, %p96
      %p99 = scmp.ne.s32.totalorder %s82, %s98
      %p100 = scmp.eq.s32.totalorder %s25, 0
      %p101 = por %p99, %p100
      %s102 = ssub.s32 %s26, %s45
      %p103 = scmp.eq.s32.totalorder %s102, 0
      %s105 = sadd.s32 %s104, 1
      %s106 = scalar_select %p103, %s104, %s105
      %p109 = pneg %p103
      %p110 = scmp.eq.s32.totalorder %s19, 15
      %p111 = por %p109, %p110
      %p112 = scmp.ne.s32.totalorder %s104, %s107
      %p113 = scmp.eq.s32.totalorder %s19, 0
      %p114 = por %p112, %p113
      %p115 = scmp.ne.s32.totalorder %s104, %s107
      %p116 = scmp.eq.s32.totalorder %s24, 15
      %p117 = por %p115, %p116
      %p118 = scmp.ne.s32.totalorder %s107, %s108
      %p119 = scmp.eq.s32.totalorder %s24, 0
      %p120 = por %p118, %p119
      %p121 = scmp.ne.s32.totalorder %s107, %s108
      %p122 = scmp.eq.s32.totalorder %s25, 15
      %p123 = por %p121, %p122
      %p125 = scmp.ne.s32.totalorder %s108, %s124
      %p126 = scmp.eq.s32.totalorder %s25, 0
      %p127 = por %p125, %p126
      %s128 = ssub.s32 %s26, %s45
      %p129 = scmp.eq.s32.totalorder %s128, 0
      %s131 = sadd.s32 %s130, 1
      %s132 = scalar_select %p129, %s130, %s131
      %p135 = pneg %p129
      %p136 = scmp.eq.s32.totalorder %s19, 15
      %p137 = por %p135, %p136
      %p138 = scmp.ne.s32.totalorder %s130, %s133
      %p139 = scmp.eq.s32.totalorder %s19, 0
      %p140 = por %p138, %p139
      %p141 = scmp.ne.s32.totalorder %s130, %s133
      %p142 = scmp.eq.s32.totalorder %s24, 15
      %p143 = por %p141, %p142
      %p144 = scmp.ne.s32.totalorder %s133, %s134
      %p145 = scmp.eq.s32.totalorder %s24, 0
      %p146 = por %p144, %p145
      %p147 = scmp.ne.s32.totalorder %s133, %s134
      %p148 = scmp.eq.s32.totalorder %s25, 15
      %p149 = por %p147, %p148
      %p151 = scmp.ne.s32.totalorder %s134, %s150
      %p152 = scmp.eq.s32.totalorder %s25, 0
      %p153 = por %p151, %p152
      %s155 = sadd.s32 %s154, 1
      %p158 = scmp.eq.s32.totalorder %s19, 15
      %p159 = scmp.ne.s32.totalorder %s154, %s156
      %p160 = scmp.eq.s32.totalorder %s19, 0
      %p161 = por %p159, %p160
      %p162 = scmp.ne.s32.totalorder %s154, %s156
      %p163 = scmp.eq.s32.totalorder %s24, 15
      %p164 = por %p162, %p163
      %p165 = scmp.ne.s32.totalorder %s156, %s157
      %p166 = scmp.eq.s32.totalorder %s24, 0
      %p167 = por %p165, %p166
      %p168 = scmp.ne.s32.totalorder %s156, %s157
      %p169 = scmp.eq.s32.totalorder %s25, 15
      %p170 = por %p168, %p169
      %p172 = scmp.ne.s32.totalorder %s157, %s171
      %p173 = scmp.eq.s32.totalorder %s25, 0
      %p174 = por %p172, %p173
      %s176 = sadd.s32 %s175, 1
      %p179 = scmp.eq.s32.totalorder %s19, 15
      %p180 = scmp.ne.s32.totalorder %s175, %s177
      %p181 = scmp.eq.s32.totalorder %s19, 0
      %p182 = por %p180, %p181
      %p183 = scmp.ne.s32.totalorder %s175, %s177
      %p184 = scmp.eq.s32.totalorder %s24, 15
      %p185 = por %p183, %p184
      %p186 = scmp.ne.s32.totalorder %s177, %s178
      %p187 = scmp.eq.s32.totalorder %s24, 0
      %p188 = por %p186, %p187
      %p189 = scmp.ne.s32.totalorder %s177, %s178
      %p190 = scmp.eq.s32.totalorder %s25, 15
      %p191 = por %p189, %p190
      %p193 = scmp.ne.s32.totalorder %s178, %s192
      %p194 = scmp.eq.s32.totalorder %s25, 0
      %p195 = por %p193, %p194
      %s197 = sadd.s32 %s196, 1
      %p200 = scmp.eq.s32.totalorder %s19, 15
      %p201 = scmp.ne.s32.totalorder %s196, %s198
      %p202 = scmp.eq.s32.totalorder %s19, 0
      %p203 = por %p201, %p202
      %p204 = scmp.ne.s32.totalorder %s196, %s198
      %p205 = scmp.eq.s32.totalorder %s24, 15
      %p206 = por %p204, %p205
      %p207 = scmp.ne.s32.totalorder %s198, %s199
      %p208 = scmp.eq.s32.totalorder %s24, 0
      %p209 = por %p207, %p208
      %p210 = scmp.ne.s32.totalorder %s198, %s199
      %p211 = scmp.eq.s32.totalorder %s25, 15
      %p212 = por %p210, %p211
      %p214 = scmp.ne.s32.totalorder %s199, %s213
      %p215 = scmp.eq.s32.totalorder %s25, 0
      %p216 = por %p214, %p215
      %s218 = sadd.s32 %s217, 1
      %p221 = scmp.eq.s32.totalorder %s19, 15
      %p222 = scmp.ne.s32.totalorder %s217, %s219
      %p223 = scmp.eq.s32.totalorder %s19, 0
      %p224 = por %p222, %p223
      %p225 = scmp.ne.s32.totalorder %s217, %s219
      %p226 = scmp.eq.s32.totalorder %s24, 15
      %p227 = por %p225, %p226
      %p228 = scmp.ne.s32.totalorder %s219, %s220
      %p229 = scmp.eq.s32.totalorder %s24, 0
      %p230 = por %p228, %p229
      %p231 = scmp.ne.s32.totalorder %s219, %s220
      %p232 = scmp.eq.s32.totalorder %s25, 15
      %p233 = por %p231, %p232
      %p235 = scmp.ne.s32.totalorder %s220, %s234
      %p236 = scmp.eq.s32.totalorder %s25, 0
      %p237 = por %p235, %p236
      %s239 = sadd.s32 %s238, 1
      %p242 = scmp.eq.s32.totalorder %s19, 15
      %p243 = scmp.ne.s32.totalorder %s238, %s240
      %p244 = scmp.eq.s32.totalorder %s19, 0
      %p245 = por %p243, %p244
      %p246 = scmp.ne.s32.totalorder %s238, %s240
      %p247 = scmp.eq.s32.totalorder %s24, 15
      %p248 = por %p246, %p247
      %p249 = scmp.ne.s32.totalorder %s240, %s241
      %p250 = scmp.eq.s32.totalorder %s24, 0
      %p251 = por %p249, %p250
      %p252 = scmp.ne.s32.totalorder %s240, %s241
      %p253 = scmp.eq.s32.totalorder %s25, 15
      %p254 = por %p252, %p253
      %p256 = scmp.ne.s32.totalorder %s241, %s255
      %p257 = scmp.eq.s32.totalorder %s25, 0
      %p258 = por %p256, %p257
      %s260 = sadd.s32 %s259, 1
      %p263 = scmp.eq.s32.totalorder %s19, 15
      %p264 = scmp.ne.s32.totalorder %s259, %s261
      %p265 = scmp.eq.s32.totalorder %s19, 0
      %p266 = por %p264, %p265
      %p267 = scmp.ne.s32.totalorder %s259, %s261
      %p268 = scmp.eq.s32.totalorder %s24, 15
      %p269 = por %p267, %p268
      %p270 = scmp.ne.s32.totalorder %s261, %s262
      %p271 = scmp.eq.s32.totalorder %s24, 0
      %p272 = por %p270, %p271
      %p273 = scmp.ne.s32.totalorder %s261, %s262
      %p274 = scmp.eq.s32.totalorder %s25, 15
      %p275 = por %p273, %p274
      %p277 = scmp.ne.s32.totalorder %s262, %s276
      %p278 = scmp.eq.s32.totalorder %s25, 0
      %p279 = por %p277, %p278
      %s280 = ssub.s32 %s26, %s45
      %s281 = ssub.s32 %s27, %s41
      %s282 = sor.u32 %s280, %s281
      %p283 = scmp.eq.s32.totalorder %s282, 0
      %s285 = sadd.s32 %s284, 1
      %s286 = scalar_select %p283, %s284, %s285
      %p289 = pneg %p283
      %p290 = scmp.eq.s32.totalorder %s19, 15
      %p291 = por %p289, %p290
      %p292 = scmp.ne.s32.totalorder %s284, %s287
      %p293 = scmp.eq.s32.totalorder %s19, 0
      %p294 = por %p292, %p293
      %p295 = scmp.ne.s32.totalorder %s284, %s287
      %p296 = scmp.eq.s32.totalorder %s24, 15
      %p297 = por %p295, %p296
      %p298 = scmp.ne.s32.totalorder %s287, %s288
      %p299 = scmp.eq.s32.totalorder %s24, 0
      %p300 = por %p298, %p299
      %p301 = scmp.ne.s32.totalorder %s287, %s288
      %p302 = scmp.eq.s32.totalorder %s25, 15
      %p303 = por %p301, %p302
      %p305 = scmp.ne.s32.totalorder %s288, %s304
      %p306 = scmp.eq.s32.totalorder %s25, 0
      %p307 = por %p305, %p306
      %p308 = scmp.le.s32.totalorder 1, %s19
      %p309 = scmp.lt.s32.totalorder %s19, 17
      %p310 = pnand %p308, %p309
      %p311 = pneg %p310
      // Predicated region
      $region9: #{memory_efficient_attn_block.3} parent=5 // pred_check
        _
      $region10: #{memory_efficient_attn_block.3} parent=5 // pred_check_branch
        %313 = sbr.rel (%p310) target = $region12
      $region11: #{memory_efficient_attn_block.3} parent=5 // pred_region
        %s314 = ssub.s32 %s19, 1
        // Predicated region
        $region13: #{memory_efficient_attn_block.3} parent=11 // pred_check
          %p315 = pneg %p167
        $region14: #{memory_efficient_attn_block.3} parent=11 // pred_check_branch
          %317 = sbr.rel (%p315) target = $region16
        $region15: #{memory_efficient_attn_block.3} parent=11 // pred_region
          _
        $region16: #{memory_efficient_attn_block.3} parent=11 // pred_fallthru
          _
        // Predicated region
        $region17: #{memory_efficient_attn_block.3} parent=11 // pred_check
          %p318 = pneg %p188
        $region18: #{memory_efficient_attn_block.3} parent=11 // pred_check_branch
          %320 = sbr.rel (%p318) target = $region20
        $region19: #{memory_efficient_attn_block.3} parent=11 // pred_region
          _
        $region20: #{memory_efficient_attn_block.3} parent=11 // pred_fallthru
          _
        // Predicated region
        $region21: #{memory_efficient_attn_block.3} parent=11 // pred_check
          %p321 = pneg %p209
        $region22: #{memory_efficient_attn_block.3} parent=11 // pred_check_branch
          %323 = sbr.rel (%p321) target = $region24
        $region23: #{memory_efficient_attn_block.3} parent=11 // pred_region
          _
        $region24: #{memory_efficient_attn_block.3} parent=11 // pred_fallthru
          _
        // Predicated region
        $region25: #{memory_efficient_attn_block.3} parent=11 // pred_check
          %p324 = pneg %p230
        $region26: #{memory_efficient_attn_block.3} parent=11 // pred_check_branch
          %326 = sbr.rel (%p324) target = $region28
        $region27: #{memory_efficient_attn_block.3} parent=11 // pred_region
          _
        $region28: #{memory_efficient_attn_block.3} parent=11 // pred_fallthru
          _
        // Predicated region
        $region29: #{memory_efficient_attn_block.3} parent=11 // pred_check
          %p327 = pneg %p251
        $region30: #{memory_efficient_attn_block.3} parent=11 // pred_check_branch
          %329 = sbr.rel (%p327) target = $region32
        $region31: #{memory_efficient_attn_block.3} parent=11 // pred_region
          _
        $region32: #{memory_efficient_attn_block.3} parent=11 // pred_fallthru
          _
        // Predicated region
        $region33: #{memory_efficient_attn_block.3} parent=11 // pred_check
          %p330 = pneg %p272
        $region34: #{memory_efficient_attn_block.3} parent=11 // pred_check_branch
          %332 = sbr.rel (%p330) target = $region36
        $region35: #{memory_efficient_attn_block.3} parent=11 // pred_region
          _
        $region36: #{memory_efficient_attn_block.3} parent=11 // pred_fallthru
          _
      $region12: #{memory_efficient_attn_block.3} parent=5 // pred_fallthru
        _
      %p333 = scmp.lt.s32.totalorder %s19, 16
      // Predicated region
      $region37: #{memory_efficient_attn_block.3} parent=5 // pred_check
        %p334 = pneg %p333
      $region38: #{memory_efficient_attn_block.3} parent=5 // pred_check_branch
        %336 = sbr.rel (%p334) target = $region40
      $region39: #{memory_efficient_attn_block.3} parent=5 // pred_region
        // Predicated region
        $region41: #{memory_efficient_attn_block.3} parent=39 // pred_check
          %p337 = pneg %p60
        $region42: #{memory_efficient_attn_block.3} parent=39 // pred_check_branch
          %339 = sbr.rel (%p337) target = $region44
        $region43: #{memory_efficient_attn_block.3} parent=39 // pred_region
          %s340 = smul.u32 32, %s27
          %p341 = scmp.lt.s32.totalorder %s26, 1
          %s342 = scalar_select %p341, %s26, 1
          %p343 = scmp.lt.s32.totalorder %s340, 127
          %s344 = scalar_select %p343, %s340, 127
          %s345 = smul.addr %s342, 128
          %s346 = sadd.s32 %s344, %s345
          %s347 = smul.addr %s346, 8
          %s348 = scalar_lea.vmem %s0, %s347
          %s349 = smul.u32 32, %s27
        $region44: #{memory_efficient_attn_block.3} parent=39 // pred_fallthru
          _
        // Predicated region
        $region45: #{memory_efficient_attn_block.3} parent=39 // pred_check
          %p350 = pneg %p88
        $region46: #{memory_efficient_attn_block.3} parent=39 // pred_check_branch
          %352 = sbr.rel (%p350) target = $region48
        $region47: #{memory_efficient_attn_block.3} parent=39 // pred_region
          %s353 = smul.u32 64, %s28
          %p354 = scmp.lt.s32.totalorder %s26, 1
          %s355 = scalar_select %p354, %s26, 1
          %p356 = scmp.lt.s32.totalorder %s353, 127
          %s357 = scalar_select %p356, %s353, 127
          %s358 = smul.addr %s355, 128
          %s359 = sadd.s32 %s357, %s358
          %s360 = smul.addr %s359, 8
          %s361 = scalar_lea.vmem %s1, %s360
          %s362 = smul.u32 64, %s28
        $region48: #{memory_efficient_attn_block.3} parent=39 // pred_fallthru
          _
        // Predicated region
        $region49: #{memory_efficient_attn_block.3} parent=39 // pred_check
          %p363 = pneg %p114
        $region50: #{memory_efficient_attn_block.3} parent=39 // pred_check_branch
          %365 = sbr.rel (%p363) target = $region52
        $region51: #{memory_efficient_attn_block.3} parent=39 // pred_region
          %p366 = scmp.lt.s32.totalorder %s26, 1
          %s367 = scalar_select %p366, %s26, 1
          %s368 = scalar_lea.vmem %s2, %s367
        $region52: #{memory_efficient_attn_block.3} parent=39 // pred_fallthru
          _
        // Predicated region
        $region53: #{memory_efficient_attn_block.3} parent=39 // pred_check
          %p369 = pneg %p140
        $region54: #{memory_efficient_attn_block.3} parent=39 // pred_check_branch
          %371 = sbr.rel (%p369) target = $region56
        $region55: #{memory_efficient_attn_block.3} parent=39 // pred_region
          %p372 = scmp.lt.s32.totalorder %s26, 1
          %s373 = scalar_select %p372, %s26, 1
          %s374 = scalar_lea.vmem %s3, %s373
        $region56: #{memory_efficient_attn_block.3} parent=39 // pred_fallthru
          _
      $region40: #{memory_efficient_attn_block.3} parent=5 // pred_fallthru
        _
      %p375 = scmp.le.s32.totalorder 1, %s19
      %p376 = scmp.lt.s32.totalorder %s19, 17
      %p377 = pnand %p375, %p376
      %p378 = pneg %p377
      // Predicated region
      $region57: #{memory_efficient_attn_block.3} parent=5 // pred_check
        _
      $region58: #{memory_efficient_attn_block.3} parent=5 // pred_check_branch
        %380 = sbr.rel (%p377) target = $region60
      $region59: #{memory_efficient_attn_block.3} parent=5 // pred_region
        %s381 = ssub.s32 %s19, 1
        %s382 = smul.u32 32, %s30
        %p383 = scmp.lt.s32.totalorder %s29, 1
        %s384 = scalar_select %p383, %s29, 1
        %p385 = scmp.lt.s32.totalorder %s382, 127
        %s386 = scalar_select %p385, %s382, 127
        %s387 = smul.addr %s384, 128
        %s388 = sadd.s32 %s386, %s387
        %s389 = smul.addr %s388, 8
        %s390 = scalar_lea.vmem %s0, %s389
        %p391 = pneg %p66
        %p392 = pneg %p63
        %s393 = smul.u32 64, %s31
        %p394 = scmp.lt.s32.totalorder %s29, 1
        %s395 = scalar_select %p394, %s29, 1
        %p396 = scmp.lt.s32.totalorder %s393, 127
        %s397 = scalar_select %p396, %s393, 127
        %s398 = smul.addr %s395, 128
        %s399 = sadd.s32 %s397, %s398
        %s400 = smul.addr %s399, 8
        %s401 = scalar_lea.vmem %s1, %s400
        %p402 = pneg %p94
        %p403 = pneg %p91
        %p404 = scmp.lt.s32.totalorder %s29, 1
        %s405 = scalar_select %p404, %s29, 1
        %s406 = scalar_lea.vmem %s2, %s405
        %p407 = pneg %p120
        %p408 = pneg %p117
        %p409 = scmp.lt.s32.totalorder %s29, 1
        %s410 = scalar_select %p409, %s29, 1
        %s411 = scalar_lea.vmem %s3, %s410
        %p412 = pneg %p146
        %p413 = pneg %p143
        %p414 = pneg %p167
        %p415 = pneg %p164
        %p416 = pneg %p188
        %p417 = pneg %p185
        %p418 = pneg %p209
        %p419 = pneg %p206
        %p420 = pneg %p230
        %p421 = pneg %p227
        %p422 = pneg %p251
        %p423 = pneg %p248
        %p424 = pneg %p272
        %p425 = pneg %p269
        %p426 = pneg %p300
        %p427 = pneg %p297
        %s428 = sand.u32 %s287, 1
        %s429 = scalar_lea.sflag [#allocation7], %s428
        %s430 = sand.u32 %s287, 1
        %s431 = smul.addr %s430, 256
        %s432 = scalar_lea.vmem [#allocation6], %s431
        %s433 = smul.u32 32, %s30
        %p434 = scmp.lt.s32.totalorder %s29, 1
        %s435 = scalar_select %p434, %s29, 1
        %p436 = scmp.lt.s32.totalorder %s433, 127
        %s437 = scalar_select %p436, %s433, 127
        %s438 = smul.addr %s435, 128
        %s439 = sadd.s32 %s437, %s438
        %s440 = smul.addr %s439, 8
        %s441 = scalar_lea.vmem %s0, %s440
        %s442 = smul.u32 32, %s30
        %s443 = smul.u32 64, %s31
        %p444 = scmp.lt.s32.totalorder %s29, 1
        %s445 = scalar_select %p444, %s29, 1
        %p446 = scmp.lt.s32.totalorder %s443, 127
        %s447 = scalar_select %p446, %s443, 127
        %s448 = smul.addr %s445, 128
        %s449 = sadd.s32 %s447, %s448
        %s450 = smul.addr %s449, 8
        %s451 = scalar_lea.vmem %s1, %s450
        %s452 = smul.u32 64, %s31
        %p453 = scmp.lt.s32.totalorder %s29, 1
        %s454 = scalar_select %p453, %s29, 1
        %s455 = scalar_lea.vmem %s2, %s454
        %p456 = scmp.lt.s32.totalorder %s29, 1
        %s457 = scalar_select %p456, %s29, 1
        %s458 = scalar_lea.vmem %s3, %s457
        %s459 = smul.u32 32, %s30
        %p461 = scmp.eq.s32.totalorder %s31, 1
        %v462 = vld [vmem:[%s455] sm:$0x1]
        %v463 = vld [vmem:[%s458] sm:$0x1]
        %p464 = scmp.eq.s32.totalorder %s31, 0
        // Predicated region
        $region61: #{memory_efficient_attn_block.3} parent=59 // pred_check
          %p465 = pneg %p464
        $region62: #{memory_efficient_attn_block.3} parent=59 // pred_check_branch
          %467 = sbr.rel (%p465) target = $region64
        $region63: #{memory_efficient_attn_block.3} parent=59 // pred_region
          %v468 = vld [vmem:[%s441] sm:$0xff]
          %v469 = vld [vmem:[%s441 + $0x8] sm:$0xff]
          %v470 = vld [vmem:[%s441 + $0x10] sm:$0xff]
          %v471 = vld [vmem:[%s441 + $0x18] sm:$0xff]
          %v472 = vld [vmem:[%s441 + $0x20] sm:$0xff]
          %v473 = vld [vmem:[%s441 + $0x28] sm:$0xff]
          %v474 = vld [vmem:[%s441 + $0x30] sm:$0xff]
          %v475 = vld [vmem:[%s441 + $0x38] sm:$0xff]
          %v476 = vld [vmem:[%s441 + $0x40] sm:$0xff]
          %v477 = vld [vmem:[%s441 + $0x48] sm:$0xff]
          %v478 = vld [vmem:[%s441 + $0x50] sm:$0xff]
          %v479 = vld [vmem:[%s441 + $0x58] sm:$0xff]
          %v480 = vld [vmem:[%s441 + $0x60] sm:$0xff]
          %v481 = vld [vmem:[%s441 + $0x68] sm:$0xff]
          %v482 = vld [vmem:[%s441 + $0x70] sm:$0xff]
          %v483 = vld [vmem:[%s441 + $0x78] sm:$0xff]
          %v484 = vld [vmem:[%s441 + $0x80] sm:$0xff]
          %v485 = vld [vmem:[%s441 + $0x88] sm:$0xff]
          %v486 = vld [vmem:[%s441 + $0x90] sm:$0xff]
          %v487 = vld [vmem:[%s441 + $0x98] sm:$0xff]
          %v488 = vld [vmem:[%s441 + $0xa0] sm:$0xff]
          %v489 = vld [vmem:[%s441 + $0xa8] sm:$0xff]
          %v490 = vld [vmem:[%s441 + $0xb0] sm:$0xff]
          %v491 = vld [vmem:[%s441 + $0xb8] sm:$0xff]
          %v492 = vld [vmem:[%s441 + $0xc0] sm:$0xff]
          %v493 = vld [vmem:[%s441 + $0xc8] sm:$0xff]
          %v494 = vld [vmem:[%s441 + $0xd0] sm:$0xff]
          %v495 = vld [vmem:[%s441 + $0xd8] sm:$0xff]
          %v496 = vld [vmem:[%s441 + $0xe0] sm:$0xff]
          %v497 = vld [vmem:[%s441 + $0xe8] sm:$0xff]
          %v498 = vld [vmem:[%s441 + $0xf0] sm:$0xff]
          %v499 = vld [vmem:[%s441 + $0xf8] sm:$0xff]
          %v501 = vlaneseq
          %v502 = vshrl.u32 %v501, 7
          %v503 = vsub.s32 0, %v502
          %v504 = vrot.slane %v462, %v503
          %v506 = vmul.f32 %v468, %v504
          %v507 = vmul.f32 %v469, %v504
          %v508 = vmul.f32 %v470, %v504
          %v509 = vmul.f32 %v471, %v504
          %v510 = vmul.f32 %v472, %v504
          %v511 = vmul.f32 %v473, %v504
          %v512 = vmul.f32 %v474, %v504
          %v513 = vmul.f32 %v475, %v504
          %v514 = vmul.f32 %v476, %v504
          %v515 = vmul.f32 %v477, %v504
          %v516 = vmul.f32 %v478, %v504
          %v517 = vmul.f32 %v479, %v504
          %v518 = vmul.f32 %v480, %v504
          %v519 = vmul.f32 %v481, %v504
          %v520 = vmul.f32 %v482, %v504
          %v521 = vmul.f32 %v483, %v504
          %v522 = vmul.f32 %v484, %v504
          %v523 = vmul.f32 %v485, %v504
          %v524 = vmul.f32 %v486, %v504
          %v525 = vmul.f32 %v487, %v504
          %v526 = vmul.f32 %v488, %v504
          %v527 = vmul.f32 %v489, %v504
          %v528 = vmul.f32 %v490, %v504
          %v529 = vmul.f32 %v491, %v504
          %v530 = vmul.f32 %v492, %v504
          %v531 = vmul.f32 %v493, %v504
          %v532 = vmul.f32 %v494, %v504
          %v533 = vmul.f32 %v495, %v504
          %v534 = vmul.f32 %v496, %v504
          %v535 = vmul.f32 %v497, %v504
          %v536 = vmul.f32 %v498, %v504
          %v537 = vmul.f32 %v499, %v504
          %v539 = vlaneseq
          %v540 = vshrl.u32 %v539, 7
          %v541 = vsub.s32 0, %v540
          %v542 = vrot.slane %v463, %v541
          %v544 = vadd.f32 %v506, %v542
          %v545 = vadd.f32 %v507, %v542
          %v546 = vadd.f32 %v508, %v542
          %v547 = vadd.f32 %v509, %v542
          %v548 = vadd.f32 %v510, %v542
          %v549 = vadd.f32 %v511, %v542
          %v550 = vadd.f32 %v512, %v542
          %v551 = vadd.f32 %v513, %v542
          %v552 = vadd.f32 %v514, %v542
          %v553 = vadd.f32 %v515, %v542
          %v554 = vadd.f32 %v516, %v542
          %v555 = vadd.f32 %v517, %v542
          %v556 = vadd.f32 %v518, %v542
          %v557 = vadd.f32 %v519, %v542
          %v558 = vadd.f32 %v520, %v542
          %v559 = vadd.f32 %v521, %v542
          %v560 = vadd.f32 %v522, %v542
          %v561 = vadd.f32 %v523, %v542
          %v562 = vadd.f32 %v524, %v542
          %v563 = vadd.f32 %v525, %v542
          %v564 = vadd.f32 %v526, %v542
          %v565 = vadd.f32 %v527, %v542
          %v566 = vadd.f32 %v528, %v542
          %v567 = vadd.f32 %v529, %v542
          %v568 = vadd.f32 %v530, %v542
          %v569 = vadd.f32 %v531, %v542
          %v570 = vadd.f32 %v532, %v542
          %v571 = vadd.f32 %v533, %v542
          %v572 = vadd.f32 %v534, %v542
          %v573 = vadd.f32 %v535, %v542
          %v574 = vadd.f32 %v536, %v542
          %v575 = vadd.f32 %v537, %v542
          %v576 = vpack.c.bf16 %v545, %v544
          %v577 = vpack.c.bf16 %v547, %v546
          %v578 = vpack.c.bf16 %v549, %v548
          %v579 = vpack.c.bf16 %v551, %v550
          %v580 = vpack.c.bf16 %v553, %v552
          %v581 = vpack.c.bf16 %v555, %v554
          %v582 = vpack.c.bf16 %v557, %v556
          %v583 = vpack.c.bf16 %v559, %v558
          %v584 = vpack.c.bf16 %v561, %v560
          %v585 = vpack.c.bf16 %v563, %v562
          %v586 = vpack.c.bf16 %v565, %v564
          %v587 = vpack.c.bf16 %v567, %v566
          %v588 = vpack.c.bf16 %v569, %v568
          %v589 = vpack.c.bf16 %v571, %v570
          %v590 = vpack.c.bf16 %v573, %v572
          %v591 = vpack.c.bf16 %v575, %v574
          %v592 = vld [vmem:[%s4] sm:$0xf]
          %v593 = vld [vmem:[%s4 + $0x4] sm:$0xf]
          %v594 = vld [vmem:[%s4 + $0x8] sm:$0xf]
          %v595 = vld [vmem:[%s4 + $0xc] sm:$0xf]
          %v596 = vld [vmem:[%s4 + $0x10] sm:$0xf]
          %v597 = vld [vmem:[%s4 + $0x14] sm:$0xf]
          %v598 = vld [vmem:[%s4 + $0x18] sm:$0xf]
          %v599 = vld [vmem:[%s4 + $0x1c] sm:$0xf]
          %v600 = vld [vmem:[%s4 + $0x20] sm:$0xf]
          %v601 = vld [vmem:[%s4 + $0x24] sm:$0xf]
          %v602 = vld [vmem:[%s4 + $0x28] sm:$0xf]
          %v603 = vld [vmem:[%s4 + $0x2c] sm:$0xf]
          %v604 = vld [vmem:[%s4 + $0x30] sm:$0xf]
          %v605 = vld [vmem:[%s4 + $0x34] sm:$0xf]
          %v606 = vld [vmem:[%s4 + $0x38] sm:$0xf]
          %v607 = vld [vmem:[%s4 + $0x3c] sm:$0xf]
          %v608 = vld [vmem:[%s5] sm:$0x1]
          %v610 = vlaneseq
          %v611 = vshrl.u32 %v610, 7
          %v612 = vsub.s32 0, %v611
          %v613 = vrot.slane %v608, %v612
          %v631 = vunpack.c.l.b16 %v592
          %v632 = vunpack.c.l.b16 %v593
          %v633 = vunpack.c.l.b16 %v594
          %v634 = vunpack.c.l.b16 %v595
          %v635 = vunpack.c.l.b16 %v596
          %v636 = vunpack.c.l.b16 %v597
          %v637 = vunpack.c.l.b16 %v598
          %v638 = vunpack.c.l.b16 %v599
          %v639 = vunpack.c.l.b16 %v600
          %v640 = vunpack.c.l.b16 %v601
          %v641 = vunpack.c.l.b16 %v602
          %v642 = vunpack.c.l.b16 %v603
          %v643 = vunpack.c.l.b16 %v604
          %v644 = vunpack.c.l.b16 %v605
          %v645 = vunpack.c.l.b16 %v606
          %v646 = vunpack.c.l.b16 %v607
          %v647 = vpack.c.b16 %v632, %v631
          %v648 = vpack.c.b16 %v634, %v633
          %v649 = vpack.c.b16 %v636, %v635
          %v650 = vpack.c.b16 %v638, %v637
          %v651 = vpack.c.b16 %v640, %v639
          %v652 = vpack.c.b16 %v642, %v641
          %v653 = vpack.c.b16 %v644, %v643
          %v654 = vpack.c.b16 %v646, %v645
          %663 = vmatprep.subr.bf16.mxu0 0
          %664 = vmatpush1.bf16.msra.mxu0 %v647
          %665 = vmatprep.subr.bf16.mxu0 0
          %666 = vmatpush1.bf16.msra.mxu0 %v648
          %667 = vmatprep.subr.bf16.mxu0 0
          %668 = vmatpush1.bf16.msra.mxu0 %v649
          %669 = vmatprep.subr.bf16.mxu0 0
          %670 = vmatpush1.bf16.msra.mxu0 %v650
          %671 = vmatprep.subr.bf16.mxu0 0
          %672 = vmatpush1.bf16.msra.mxu0 %v651
          %673 = vmatprep.subr.bf16.mxu0 0
          %674 = vmatpush1.bf16.msra.mxu0 %v652
          %675 = vmatprep.subr.bf16.mxu0 0
          %676 = vmatpush1.bf16.msra.mxu0 %v653
          %677 = vmatprep.subr.bf16.mxu0 0
          %678 = vmatpush1.bf16.msra.mxu0 %v654
          %679 = vmatprep.subr.bf16.mxu0 0
          %680 = vmatpush1.bf16.msra.mxu0 0
          %681 = vmatprep.subr.bf16.mxu0 0
          %682 = vmatpush1.bf16.msra.mxu0 0
          %683 = vmatprep.subr.bf16.mxu0 0
          %684 = vmatpush1.bf16.msra.mxu0 0
          %685 = vmatprep.subr.bf16.mxu0 0
          %686 = vmatpush1.bf16.msra.mxu0 0
          %687 = vmatprep.subr.bf16.mxu0 0
          %688 = vmatpush1.bf16.msra.mxu0 0
          %689 = vmatprep.subr.bf16.mxu0 0
          %690 = vmatpush1.bf16.msra.mxu0 0
          %691 = vmatprep.subr.bf16.mxu0 0
          %692 = vmatpush1.bf16.msra.mxu0 0
          %693 = vmatprep.subr.bf16.mxu0 0
          %694 = vmatpush1.bf16.msra.mxu0 0
          %695 = vmatprep.mubr.bf16.mxu0 0
          %696 = vmatmul.mubr.bf16.gmra.mrb[0].mxu0 %v576
          %v697 = vpop.f32.mrb[0].mxu0
          %v698 = vadd.f32 %v613, %v697
          %v699 = vpop.f32.mrb[0].mxu0
          %v700 = vpop.f32.mrb[0].mxu0
          %v701 = vadd.f32 %v613, %v700
          %v702 = vpop.f32.mrb[0].mxu0
          %703 = vmatprep.mubr.bf16.mxu0 0
          %704 = vmatmul.mubr.bf16.gmra.mrb[0].mxu0 %v577
          %v705 = vpop.f32.mrb[0].mxu0
          %v706 = vadd.f32 %v613, %v705
          %v707 = vpop.f32.mrb[0].mxu0
          %v708 = vpop.f32.mrb[0].mxu0
          %v709 = vadd.f32 %v613, %v708
          %v710 = vpop.f32.mrb[0].mxu0
          %711 = vmatprep.mubr.bf16.mxu0 0
          %712 = vmatmul.mubr.bf16.gmra.mrb[0].mxu0 %v578
          %v713 = vpop.f32.mrb[0].mxu0
          %v714 = vadd.f32 %v613, %v713
          %v715 = vpop.f32.mrb[0].mxu0
          %v716 = vpop.f32.mrb[0].mxu0
          %v717 = vadd.f32 %v613, %v716
          %v718 = vpop.f32.mrb[0].mxu0
          %719 = vmatprep.mubr.bf16.mxu0 0
          %720 = vmatmul.mubr.bf16.gmra.mrb[0].mxu0 %v579
          %v721 = vpop.f32.mrb[0].mxu0
          %v722 = vadd.f32 %v613, %v721
          %v723 = vpop.f32.mrb[0].mxu0
          %v724 = vpop.f32.mrb[0].mxu0
          %v725 = vadd.f32 %v613, %v724
          %v726 = vpop.f32.mrb[0].mxu0
          %727 = vmatprep.mubr.bf16.mxu0 0
          %728 = vmatmul.mubr.bf16.gmra.mrb[0].mxu0 %v580
          %v729 = vpop.f32.mrb[0].mxu0
          %v730 = vadd.f32 %v613, %v729
          %v731 = vpop.f32.mrb[0].mxu0
          %v732 = vpop.f32.mrb[0].mxu0
          %v733 = vadd.f32 %v613, %v732
          %v734 = vpop.f32.mrb[0].mxu0
          %735 = vmatprep.mubr.bf16.mxu0 0
          %736 = vmatmul.mubr.bf16.gmra.mrb[0].mxu0 %v581
          %v737 = vpop.f32.mrb[0].mxu0
          %v738 = vadd.f32 %v613, %v737
          %v739 = vpop.f32.mrb[0].mxu0
          %v740 = vpop.f32.mrb[0].mxu0
          %v741 = vadd.f32 %v613, %v740
          %v742 = vpop.f32.mrb[0].mxu0
          %743 = vmatprep.mubr.bf16.mxu0 0
          %744 = vmatmul.mubr.bf16.gmra.mrb[0].mxu0 %v582
          %v745 = vpop.f32.mrb[0].mxu0
          %v746 = vadd.f32 %v613, %v745
          %v747 = vpop.f32.mrb[0].mxu0
          %v748 = vpop.f32.mrb[0].mxu0
          %v749 = vadd.f32 %v613, %v748
          %v750 = vpop.f32.mrb[0].mxu0
          %751 = vmatprep.mubr.bf16.mxu0 0
          %752 = vmatmul.mubr.bf16.gmra.mrb[0].mxu0 %v583
          %v753 = vpop.f32.mrb[0].mxu0
          %v754 = vadd.f32 %v613, %v753
          %v755 = vpop.f32.mrb[0].mxu0
          %v756 = vpop.f32.mrb[0].mxu0
          %v757 = vadd.f32 %v613, %v756
          %v758 = vpop.f32.mrb[0].mxu0
          %759 = vmatprep.mubr.bf16.mxu0 0
          %760 = vmatmul.mubr.bf16.gmra.mrb[0].mxu0 %v584
          %v761 = vpop.f32.mrb[0].mxu0
          %v762 = vadd.f32 %v613, %v761
          %v763 = vpop.f32.mrb[0].mxu0
          %v764 = vpop.f32.mrb[0].mxu0
          %v765 = vadd.f32 %v613, %v764
          %v766 = vpop.f32.mrb[0].mxu0
          %767 = vmatprep.mubr.bf16.mxu0 0
          %768 = vmatmul.mubr.bf16.gmra.mrb[0].mxu0 %v585
          %v769 = vpop.f32.mrb[0].mxu0
          %v770 = vadd.f32 %v613, %v769
          %v771 = vpop.f32.mrb[0].mxu0
          %v772 = vpop.f32.mrb[0].mxu0
          %v773 = vadd.f32 %v613, %v772
          %v774 = vpop.f32.mrb[0].mxu0
          %775 = vmatprep.mubr.bf16.mxu0 0
          %776 = vmatmul.mubr.bf16.gmra.mrb[0].mxu0 %v586
          %v777 = vpop.f32.mrb[0].mxu0
          %v778 = vadd.f32 %v613, %v777
          %v779 = vpop.f32.mrb[0].mxu0
          %v780 = vpop.f32.mrb[0].mxu0
          %v781 = vadd.f32 %v613, %v780
          %v782 = vpop.f32.mrb[0].mxu0
          %783 = vmatprep.mubr.bf16.mxu0 0
          %784 = vmatmul.mubr.bf16.gmra.mrb[0].mxu0 %v587
          %v785 = vpop.f32.mrb[0].mxu0
          %v786 = vadd.f32 %v613, %v785
          %v787 = vpop.f32.mrb[0].mxu0
          %v788 = vpop.f32.mrb[0].mxu0
          %v789 = vadd.f32 %v613, %v788
          %v790 = vpop.f32.mrb[0].mxu0
          %791 = vmatprep.mubr.bf16.mxu0 0
          %792 = vmatmul.mubr.bf16.gmra.mrb[0].mxu0 %v588
          %v793 = vpop.f32.mrb[0].mxu0
          %v794 = vadd.f32 %v613, %v793
          %v795 = vpop.f32.mrb[0].mxu0
          %v796 = vpop.f32.mrb[0].mxu0
          %v797 = vadd.f32 %v613, %v796
          %v798 = vpop.f32.mrb[0].mxu0
          %799 = vmatprep.mubr.bf16.mxu0 0
          %800 = vmatmul.mubr.bf16.gmra.mrb[0].mxu0 %v589
          %v801 = vpop.f32.mrb[0].mxu0
          %v802 = vadd.f32 %v613, %v801
          %v803 = vpop.f32.mrb[0].mxu0
          %v804 = vpop.f32.mrb[0].mxu0
          %v805 = vadd.f32 %v613, %v804
          %v806 = vpop.f32.mrb[0].mxu0
          %807 = vmatprep.mubr.bf16.mxu0 0
          %808 = vmatmul.mubr.bf16.gmra.mrb[0].mxu0 %v590
          %v809 = vpop.f32.mrb[0].mxu0
          %v810 = vadd.f32 %v613, %v809
          %v811 = vpop.f32.mrb[0].mxu0
          %v812 = vpop.f32.mrb[0].mxu0
          %v813 = vadd.f32 %v613, %v812
          %v814 = vpop.f32.mrb[0].mxu0
          %815 = vmatprep.mubr.bf16.mxu0 0
          %816 = vmatmul.mubr.bf16.gmra.mrb[0].mxu0 %v591
          %v817 = vpop.f32.mrb[0].mxu0
          %v818 = vadd.f32 %v613, %v817
          %v819 = vpop.f32.mrb[0].mxu0
          %v820 = vpop.f32.mrb[0].mxu0
          %v821 = vadd.f32 %v613, %v820
          %v822 = vpop.f32.mrb[0].mxu0
          %823 = vdwg.mxu0
          %v824 = vmul.f32 %v698, 0.088388346
          %v825 = vmul.f32 %v701, 0.088388346
          %v826 = vmul.f32 %v706, 0.088388346
          %v827 = vmul.f32 %v709, 0.088388346
          %v828 = vmul.f32 %v714, 0.088388346
          %v829 = vmul.f32 %v717, 0.088388346
          %v830 = vmul.f32 %v722, 0.088388346
          %v831 = vmul.f32 %v725, 0.088388346
          %v832 = vmul.f32 %v730, 0.088388346
          %v833 = vmul.f32 %v733, 0.088388346
          %v834 = vmul.f32 %v738, 0.088388346
          %v835 = vmul.f32 %v741, 0.088388346
          %v836 = vmul.f32 %v746, 0.088388346
          %v837 = vmul.f32 %v749, 0.088388346
          %v838 = vmul.f32 %v754, 0.088388346
          %v839 = vmul.f32 %v757, 0.088388346
          %v840 = vmul.f32 %v762, 0.088388346
          %v841 = vmul.f32 %v765, 0.088388346
          %v842 = vmul.f32 %v770, 0.088388346
          %v843 = vmul.f32 %v773, 0.088388346
          %v844 = vmul.f32 %v778, 0.088388346
          %v845 = vmul.f32 %v781, 0.088388346
          %v846 = vmul.f32 %v786, 0.088388346
          %v847 = vmul.f32 %v789, 0.088388346
          %v848 = vmul.f32 %v794, 0.088388346
          %v849 = vmul.f32 %v797, 0.088388346
          %v850 = vmul.f32 %v802, 0.088388346
          %v851 = vmul.f32 %v805, 0.088388346
          %v852 = vmul.f32 %v810, 0.088388346
          %v853 = vmul.f32 %v813, 0.088388346
          %v854 = vmul.f32 %v818, 0.088388346
          %v855 = vmul.f32 %v821, 0.088388346
          %v856 = vpack.c.bf16 %v825, %v824
          %v857 = vpack.c.bf16 %v827, %v826
          %v858 = vpack.c.bf16 %v829, %v828
          %v859 = vpack.c.bf16 %v831, %v830
          %v860 = vpack.c.bf16 %v833, %v832
          %v861 = vpack.c.bf16 %v835, %v834
          %v862 = vpack.c.bf16 %v837, %v836
          %v863 = vpack.c.bf16 %v839, %v838
          %v864 = vpack.c.bf16 %v841, %v840
          %v865 = vpack.c.bf16 %v843, %v842
          %v866 = vpack.c.bf16 %v845, %v844
          %v867 = vpack.c.bf16 %v847, %v846
          %v868 = vpack.c.bf16 %v849, %v848
          %v869 = vpack.c.bf16 %v851, %v850
          %v870 = vpack.c.bf16 %v853, %v852
          %v871 = vpack.c.bf16 %v855, %v854
          %872 = vst [vmem:[#allocation2] sm:$0xff] %v856
          %873 = vst [vmem:[#allocation2 + $0x8] sm:$0xff] %v857
          %874 = vst [vmem:[#allocation2 + $0x10] sm:$0xff] %v858
          %875 = vst [vmem:[#allocation2 + $0x18] sm:$0xff] %v859
          %876 = vst [vmem:[#allocation2 + $0x20] sm:$0xff] %v860
          %877 = vst [vmem:[#allocation2 + $0x28] sm:$0xff] %v861
          %878 = vst [vmem:[#allocation2 + $0x30] sm:$0xff] %v862
          %879 = vst [vmem:[#allocation2 + $0x38] sm:$0xff] %v863
          %880 = vst [vmem:[#allocation2 + $0x40] sm:$0xff] %v864
          %881 = vst [vmem:[#allocation2 + $0x48] sm:$0xff] %v865
          %882 = vst [vmem:[#allocation2 + $0x50] sm:$0xff] %v866
          %883 = vst [vmem:[#allocation2 + $0x58] sm:$0xff] %v867
          %884 = vst [vmem:[#allocation2 + $0x60] sm:$0xff] %v868
          %885 = vst [vmem:[#allocation2 + $0x68] sm:$0xff] %v869
          %886 = vst [vmem:[#allocation2 + $0x70] sm:$0xff] %v870
          %887 = vst [vmem:[#allocation2 + $0x78] sm:$0xff] %v871
          %vm888 = vcmask 7168
          %889 = vst.msk [vmem:[#allocation3] sm:$0xff] %vm888, -inf
          %890 = vst.msk [vmem:[#allocation3 + $0x8] sm:$0xff] %vm888, -inf
          %891 = vst.msk [vmem:[#allocation3 + $0x10] sm:$0xff] %vm888, -inf
          %892 = vst.msk [vmem:[#allocation3 + $0x18] sm:$0xff] %vm888, -inf
          %893 = vst.msk [vmem:[#allocation3 + $0x20] sm:$0xff] %vm888, -inf
          %894 = vst.msk [vmem:[#allocation3 + $0x28] sm:$0xff] %vm888, -inf
          %895 = vst.msk [vmem:[#allocation3 + $0x30] sm:$0xff] %vm888, -inf
          %896 = vst.msk [vmem:[#allocation3 + $0x38] sm:$0xff] %vm888, -inf
          %897 = vst.msk [vmem:[#allocation3 + $0x40] sm:$0xff] %vm888, -inf
          %898 = vst.msk [vmem:[#allocation3 + $0x48] sm:$0xff] %vm888, -inf
          %899 = vst.msk [vmem:[#allocation3 + $0x50] sm:$0xff] %vm888, -inf
          %900 = vst.msk [vmem:[#allocation3 + $0x58] sm:$0xff] %vm888, -inf
          %901 = vst.msk [vmem:[#allocation3 + $0x60] sm:$0xff] %vm888, -inf
          %902 = vst.msk [vmem:[#allocation3 + $0x68] sm:$0xff] %vm888, -inf
          %903 = vst.msk [vmem:[#allocation3 + $0x70] sm:$0xff] %vm888, -inf
          %904 = vst.msk [vmem:[#allocation3 + $0x78] sm:$0xff] %vm888, -inf
          %905 = vst.msk [vmem:[#allocation3 + $0x80] sm:$0xff] %vm888, -inf
          %906 = vst.msk [vmem:[#allocation3 + $0x88] sm:$0xff] %vm888, -inf
          %907 = vst.msk [vmem:[#allocation3 + $0x90] sm:$0xff] %vm888, -inf
          %908 = vst.msk [vmem:[#allocation3 + $0x98] sm:$0xff] %vm888, -inf
          %909 = vst.msk [vmem:[#allocation3 + $0xa0] sm:$0xff] %vm888, -inf
          %910 = vst.msk [vmem:[#allocation3 + $0xa8] sm:$0xff] %vm888, -inf
          %911 = vst.msk [vmem:[#allocation3 + $0xb0] sm:$0xff] %vm888, -inf
          %912 = vst.msk [vmem:[#allocation3 + $0xb8] sm:$0xff] %vm888, -inf
          %913 = vst.msk [vmem:[#allocation3 + $0xc0] sm:$0xff] %vm888, -inf
          %914 = vst.msk [vmem:[#allocation3 + $0xc8] sm:$0xff] %vm888, -inf
          %915 = vst.msk [vmem:[#allocation3 + $0xd0] sm:$0xff] %vm888, -inf
          %916 = vst.msk [vmem:[#allocation3 + $0xd8] sm:$0xff] %vm888, -inf
          %917 = vst.msk [vmem:[#allocation3 + $0xe0] sm:$0xff] %vm888, -inf
          %918 = vst.msk [vmem:[#allocation3 + $0xe8] sm:$0xff] %vm888, -inf
          %919 = vst.msk [vmem:[#allocation3 + $0xf0] sm:$0xff] %vm888, -inf
          %920 = vst.msk [vmem:[#allocation3 + $0xf8] sm:$0xff] %vm888, -inf
          %921 = vst.msk [vmem:[#allocation4] sm:$0xff] %vm888, 0.0
          %922 = vst.msk [vmem:[#allocation4 + $0x8] sm:$0xff] %vm888, 0.0
          %923 = vst.msk [vmem:[#allocation4 + $0x10] sm:$0xff] %vm888, 0.0
          %924 = vst.msk [vmem:[#allocation4 + $0x18] sm:$0xff] %vm888, 0.0
          %925 = vst.msk [vmem:[#allocation4 + $0x20] sm:$0xff] %vm888, 0.0
          %926 = vst.msk [vmem:[#allocation4 + $0x28] sm:$0xff] %vm888, 0.0
          %927 = vst.msk [vmem:[#allocation4 + $0x30] sm:$0xff] %vm888, 0.0
          %928 = vst.msk [vmem:[#allocation4 + $0x38] sm:$0xff] %vm888, 0.0
          %929 = vst.msk [vmem:[#allocation4 + $0x40] sm:$0xff] %vm888, 0.0
          %930 = vst.msk [vmem:[#allocation4 + $0x48] sm:$0xff] %vm888, 0.0
          %931 = vst.msk [vmem:[#allocation4 + $0x50] sm:$0xff] %vm888, 0.0
          %932 = vst.msk [vmem:[#allocation4 + $0x58] sm:$0xff] %vm888, 0.0
          %933 = vst.msk [vmem:[#allocation4 + $0x60] sm:$0xff] %vm888, 0.0
          %934 = vst.msk [vmem:[#allocation4 + $0x68] sm:$0xff] %vm888, 0.0
          %935 = vst.msk [vmem:[#allocation4 + $0x70] sm:$0xff] %vm888, 0.0
          %936 = vst.msk [vmem:[#allocation4 + $0x78] sm:$0xff] %vm888, 0.0
          %937 = vst.msk [vmem:[#allocation4 + $0x80] sm:$0xff] %vm888, 0.0
          %938 = vst.msk [vmem:[#allocation4 + $0x88] sm:$0xff] %vm888, 0.0
          %939 = vst.msk [vmem:[#allocation4 + $0x90] sm:$0xff] %vm888, 0.0
          %940 = vst.msk [vmem:[#allocation4 + $0x98] sm:$0xff] %vm888, 0.0
          %941 = vst.msk [vmem:[#allocation4 + $0xa0] sm:$0xff] %vm888, 0.0
          %942 = vst.msk [vmem:[#allocation4 + $0xa8] sm:$0xff] %vm888, 0.0
          %943 = vst.msk [vmem:[#allocation4 + $0xb0] sm:$0xff] %vm888, 0.0
          %944 = vst.msk [vmem:[#allocation4 + $0xb8] sm:$0xff] %vm888, 0.0
          %945 = vst.msk [vmem:[#allocation4 + $0xc0] sm:$0xff] %vm888, 0.0
          %946 = vst.msk [vmem:[#allocation4 + $0xc8] sm:$0xff] %vm888, 0.0
          %947 = vst.msk [vmem:[#allocation4 + $0xd0] sm:$0xff] %vm888, 0.0
          %948 = vst.msk [vmem:[#allocation4 + $0xd8] sm:$0xff] %vm888, 0.0
          %949 = vst.msk [vmem:[#allocation4 + $0xe0] sm:$0xff] %vm888, 0.0
          %950 = vst.msk [vmem:[#allocation4 + $0xe8] sm:$0xff] %vm888, 0.0
          %951 = vst.msk [vmem:[#allocation4 + $0xf0] sm:$0xff] %vm888, 0.0
          %952 = vst.msk [vmem:[#allocation4 + $0xf8] sm:$0xff] %vm888, 0.0
          %953 = vst [vmem:[#allocation5] sm:$0xff] 0.0
          %954 = vst [vmem:[#allocation5 + $0x8] sm:$0xff] 0.0
          %955 = vst [vmem:[#allocation5 + $0x10] sm:$0xff] 0.0
          %956 = vst [vmem:[#allocation5 + $0x18] sm:$0xff] 0.0
          %957 = vst [vmem:[#allocation5 + $0x20] sm:$0xff] 0.0
          %958 = vst [vmem:[#allocation5 + $0x28] sm:$0xff] 0.0
          %959 = vst [vmem:[#allocation5 + $0x30] sm:$0xff] 0.0
          %960 = vst [vmem:[#allocation5 + $0x38] sm:$0xff] 0.0
          %961 = vst [vmem:[#allocation5 + $0x40] sm:$0xff] 0.0
          %962 = vst [vmem:[#allocation5 + $0x48] sm:$0xff] 0.0
          %963 = vst [vmem:[#allocation5 + $0x50] sm:$0xff] 0.0
          %964 = vst [vmem:[#allocation5 + $0x58] sm:$0xff] 0.0
          %965 = vst [vmem:[#allocation5 + $0x60] sm:$0xff] 0.0
          %966 = vst [vmem:[#allocation5 + $0x68] sm:$0xff] 0.0
          %967 = vst [vmem:[#allocation5 + $0x70] sm:$0xff] 0.0
          %968 = vst [vmem:[#allocation5 + $0x78] sm:$0xff] 0.0
          %969 = vst [vmem:[#allocation5 + $0x80] sm:$0xff] 0.0
          %970 = vst [vmem:[#allocation5 + $0x88] sm:$0xff] 0.0
          %971 = vst [vmem:[#allocation5 + $0x90] sm:$0xff] 0.0
          %972 = vst [vmem:[#allocation5 + $0x98] sm:$0xff] 0.0
          %973 = vst [vmem:[#allocation5 + $0xa0] sm:$0xff] 0.0
          %974 = vst [vmem:[#allocation5 + $0xa8] sm:$0xff] 0.0
          %975 = vst [vmem:[#allocation5 + $0xb0] sm:$0xff] 0.0
          %976 = vst [vmem:[#allocation5 + $0xb8] sm:$0xff] 0.0
          %977 = vst [vmem:[#allocation5 + $0xc0] sm:$0xff] 0.0
          %978 = vst [vmem:[#allocation5 + $0xc8] sm:$0xff] 0.0
          %979 = vst [vmem:[#allocation5 + $0xd0] sm:$0xff] 0.0
          %980 = vst [vmem:[#allocation5 + $0xd8] sm:$0xff] 0.0
          %981 = vst [vmem:[#allocation5 + $0xe0] sm:$0xff] 0.0
          %982 = vst [vmem:[#allocation5 + $0xe8] sm:$0xff] 0.0
          %983 = vst [vmem:[#allocation5 + $0xf0] sm:$0xff] 0.0
          %984 = vst [vmem:[#allocation5 + $0xf8] sm:$0xff] 0.0
        $region64: #{memory_efficient_attn_block.3} parent=59 // pred_fallthru
          _
        %v985 = vld [vmem:[%s451] sm:$0xff]
        %v986 = vld [vmem:[%s451 + $0x8] sm:$0xff]
        %v987 = vld [vmem:[%s451 + $0x10] sm:$0xff]
        %v988 = vld [vmem:[%s451 + $0x18] sm:$0xff]
        %v989 = vld [vmem:[%s451 + $0x20] sm:$0xff]
        %v990 = vld [vmem:[%s451 + $0x28] sm:$0xff]
        %v991 = vld [vmem:[%s451 + $0x30] sm:$0xff]
        %v992 = vld [vmem:[%s451 + $0x38] sm:$0xff]
        %v993 = vld [vmem:[%s451 + $0x40] sm:$0xff]
        %v994 = vld [vmem:[%s451 + $0x48] sm:$0xff]
        %v995 = vld [vmem:[%s451 + $0x50] sm:$0xff]
        %v996 = vld [vmem:[%s451 + $0x58] sm:$0xff]
        %v997 = vld [vmem:[%s451 + $0x60] sm:$0xff]
        %v998 = vld [vmem:[%s451 + $0x68] sm:$0xff]
        %v999 = vld [vmem:[%s451 + $0x70] sm:$0xff]
        %v1000 = vld [vmem:[%s451 + $0x78] sm:$0xff]
        %v1001 = vld [vmem:[%s451 + $0x80] sm:$0xff]
        %v1002 = vld [vmem:[%s451 + $0x88] sm:$0xff]
        %v1003 = vld [vmem:[%s451 + $0x90] sm:$0xff]
        %v1004 = vld [vmem:[%s451 + $0x98] sm:$0xff]
        %v1005 = vld [vmem:[%s451 + $0xa0] sm:$0xff]
        %v1006 = vld [vmem:[%s451 + $0xa8] sm:$0xff]
        %v1007 = vld [vmem:[%s451 + $0xb0] sm:$0xff]
        %v1008 = vld [vmem:[%s451 + $0xb8] sm:$0xff]
        %v1009 = vld [vmem:[%s451 + $0xc0] sm:$0xff]
        %v1010 = vld [vmem:[%s451 + $0xc8] sm:$0xff]
        %v1011 = vld [vmem:[%s451 + $0xd0] sm:$0xff]
        %v1012 = vld [vmem:[%s451 + $0xd8] sm:$0xff]
        %v1013 = vld [vmem:[%s451 + $0xe0] sm:$0xff]
        %v1014 = vld [vmem:[%s451 + $0xe8] sm:$0xff]
        %v1015 = vld [vmem:[%s451 + $0xf0] sm:$0xff]
        %v1016 = vld [vmem:[%s451 + $0xf8] sm:$0xff]
        %v1017 = vld [vmem:[%s451 + $0x100] sm:$0xff]
        %v1018 = vld [vmem:[%s451 + $0x108] sm:$0xff]
        %v1019 = vld [vmem:[%s451 + $0x110] sm:$0xff]
        %v1020 = vld [vmem:[%s451 + $0x118] sm:$0xff]
        %v1021 = vld [vmem:[%s451 + $0x120] sm:$0xff]
        %v1022 = vld [vmem:[%s451 + $0x128] sm:$0xff]
        %v1023 = vld [vmem:[%s451 + $0x130] sm:$0xff]
        %v1024 = vld [vmem:[%s451 + $0x138] sm:$0xff]
        %v1025 = vld [vmem:[%s451 + $0x140] sm:$0xff]
        %v1026 = vld [vmem:[%s451 + $0x148] sm:$0xff]
        %v1027 = vld [vmem:[%s451 + $0x150] sm:$0xff]
        %v1028 = vld [vmem:[%s451 + $0x158] sm:$0xff]
        %v1029 = vld [vmem:[%s451 + $0x160] sm:$0xff]
        %v1030 = vld [vmem:[%s451 + $0x168] sm:$0xff]
        %v1031 = vld [vmem:[%s451 + $0x170] sm:$0xff]
        %v1032 = vld [vmem:[%s451 + $0x178] sm:$0xff]
        %v1033 = vld [vmem:[%s451 + $0x180] sm:$0xff]
        %v1034 = vld [vmem:[%s451 + $0x188] sm:$0xff]
        %v1035 = vld [vmem:[%s451 + $0x190] sm:$0xff]
        %v1036 = vld [vmem:[%s451 + $0x198] sm:$0xff]
        %v1037 = vld [vmem:[%s451 + $0x1a0] sm:$0xff]
        %v1038 = vld [vmem:[%s451 + $0x1a8] sm:$0xff]
        %v1039 = vld [vmem:[%s451 + $0x1b0] sm:$0xff]
        %v1040 = vld [vmem:[%s451 + $0x1b8] sm:$0xff]
        %v1041 = vld [vmem:[%s451 + $0x1c0] sm:$0xff]
        %v1042 = vld [vmem:[%s451 + $0x1c8] sm:$0xff]
        %v1043 = vld [vmem:[%s451 + $0x1d0] sm:$0xff]
        %v1044 = vld [vmem:[%s451 + $0x1d8] sm:$0xff]
        %v1045 = vld [vmem:[%s451 + $0x1e0] sm:$0xff]
        %v1046 = vld [vmem:[%s451 + $0x1e8] sm:$0xff]
        %v1047 = vld [vmem:[%s451 + $0x1f0] sm:$0xff]
        %v1048 = vld [vmem:[%s451 + $0x1f8] sm:$0xff]
        %v1050 = vlaneseq
        %v1051 = vshrl.u32 %v1050, 7
        %v1052 = vsub.s32 0, %v1051
        %v1053 = vrot.slane %v462, %v1052
        %v1055 = vmul.f32 %v985, %v1053
        %v1056 = vmul.f32 %v986, %v1053
        %v1057 = vmul.f32 %v987, %v1053
        %v1058 = vmul.f32 %v988, %v1053
        %v1059 = vmul.f32 %v989, %v1053
        %v1060 = vmul.f32 %v990, %v1053
        %v1061 = vmul.f32 %v991, %v1053
        %v1062 = vmul.f32 %v992, %v1053
        %v1063 = vmul.f32 %v993, %v1053
        %v1064 = vmul.f32 %v994, %v1053
        %v1065 = vmul.f32 %v995, %v1053
        %v1066 = vmul.f32 %v996, %v1053
        %v1067 = vmul.f32 %v997, %v1053
        %v1068 = vmul.f32 %v998, %v1053
        %v1069 = vmul.f32 %v999, %v1053
        %v1070 = vmul.f32 %v1000, %v1053
        %v1071 = vmul.f32 %v1001, %v1053
        %v1072 = vmul.f32 %v1002, %v1053
        %v1073 = vmul.f32 %v1003, %v1053
        %v1074 = vmul.f32 %v1004, %v1053
        %v1075 = vmul.f32 %v1005, %v1053
        %v1076 = vmul.f32 %v1006, %v1053
        %v1077 = vmul.f32 %v1007, %v1053
        %v1078 = vmul.f32 %v1008, %v1053
        %v1079 = vmul.f32 %v1009, %v1053
        %v1080 = vmul.f32 %v1010, %v1053
        %v1081 = vmul.f32 %v1011, %v1053
        %v1082 = vmul.f32 %v1012, %v1053
        %v1083 = vmul.f32 %v1013, %v1053
        %v1084 = vmul.f32 %v1014, %v1053
        %v1085 = vmul.f32 %v1015, %v1053
        %v1086 = vmul.f32 %v1016, %v1053
        %v1087 = vmul.f32 %v1017, %v1053
        %v1088 = vmul.f32 %v1018, %v1053
        %v1089 = vmul.f32 %v1019, %v1053
        %v1090 = vmul.f32 %v1020, %v1053
        %v1091 = vmul.f32 %v1021, %v1053
        %v1092 = vmul.f32 %v1022, %v1053
        %v1093 = vmul.f32 %v1023, %v1053
        %v1094 = vmul.f32 %v1024, %v1053
        %v1095 = vmul.f32 %v1025, %v1053
        %v1096 = vmul.f32 %v1026, %v1053
        %v1097 = vmul.f32 %v1027, %v1053
        %v1098 = vmul.f32 %v1028, %v1053
        %v1099 = vmul.f32 %v1029, %v1053
        %v1100 = vmul.f32 %v1030, %v1053
        %v1101 = vmul.f32 %v1031, %v1053
        %v1102 = vmul.f32 %v1032, %v1053
        %v1103 = vmul.f32 %v1033, %v1053
        %v1104 = vmul.f32 %v1034, %v1053
        %v1105 = vmul.f32 %v1035, %v1053
        %v1106 = vmul.f32 %v1036, %v1053
        %v1107 = vmul.f32 %v1037, %v1053
        %v1108 = vmul.f32 %v1038, %v1053
        %v1109 = vmul.f32 %v1039, %v1053
        %v1110 = vmul.f32 %v1040, %v1053
        %v1111 = vmul.f32 %v1041, %v1053
        %v1112 = vmul.f32 %v1042, %v1053
        %v1113 = vmul.f32 %v1043, %v1053
        %v1114 = vmul.f32 %v1044, %v1053
        %v1115 = vmul.f32 %v1045, %v1053
        %v1116 = vmul.f32 %v1046, %v1053
        %v1117 = vmul.f32 %v1047, %v1053
        %v1118 = vmul.f32 %v1048, %v1053
        %v1120 = vlaneseq
        %v1121 = vshrl.u32 %v1120, 7
        %v1122 = vsub.s32 0, %v1121
        %v1123 = vrot.slane %v463, %v1122
        %v1125 = vadd.f32 %v1055, %v1123
        %v1126 = vadd.f32 %v1056, %v1123
        %v1127 = vadd.f32 %v1057, %v1123
        %v1128 = vadd.f32 %v1058, %v1123
        %v1129 = vadd.f32 %v1059, %v1123
        %v1130 = vadd.f32 %v1060, %v1123
        %v1131 = vadd.f32 %v1061, %v1123
        %v1132 = vadd.f32 %v1062, %v1123
        %v1133 = vadd.f32 %v1063, %v1123
        %v1134 = vadd.f32 %v1064, %v1123
        %v1135 = vadd.f32 %v1065, %v1123
        %v1136 = vadd.f32 %v1066, %v1123
        %v1137 = vadd.f32 %v1067, %v1123
        %v1138 = vadd.f32 %v1068, %v1123
        %v1139 = vadd.f32 %v1069, %v1123
        %v1140 = vadd.f32 %v1070, %v1123
        %v1141 = vadd.f32 %v1071, %v1123
        %v1142 = vadd.f32 %v1072, %v1123
        %v1143 = vadd.f32 %v1073, %v1123
        %v1144 = vadd.f32 %v1074, %v1123
        %v1145 = vadd.f32 %v1075, %v1123
        %v1146 = vadd.f32 %v1076, %v1123
        %v1147 = vadd.f32 %v1077, %v1123
        %v1148 = vadd.f32 %v1078, %v1123
        %v1149 = vadd.f32 %v1079, %v1123
        %v1150 = vadd.f32 %v1080, %v1123
        %v1151 = vadd.f32 %v1081, %v1123
        %v1152 = vadd.f32 %v1082, %v1123
        %v1153 = vadd.f32 %v1083, %v1123
        %v1154 = vadd.f32 %v1084, %v1123
        %v1155 = vadd.f32 %v1085, %v1123
        %v1156 = vadd.f32 %v1086, %v1123
        %v1157 = vadd.f32 %v1087, %v1123
        %v1158 = vadd.f32 %v1088, %v1123
        %v1159 = vadd.f32 %v1089, %v1123
        %v1160 = vadd.f32 %v1090, %v1123
        %v1161 = vadd.f32 %v1091, %v1123
        %v1162 = vadd.f32 %v1092, %v1123
        %v1163 = vadd.f32 %v1093, %v1123
        %v1164 = vadd.f32 %v1094, %v1123
        %v1165 = vadd.f32 %v1095, %v1123
        %v1166 = vadd.f32 %v1096, %v1123
        %v1167 = vadd.f32 %v1097, %v1123
        %v1168 = vadd.f32 %v1098, %v1123
        %v1169 = vadd.f32 %v1099, %v1123
        %v1170 = vadd.f32 %v1100, %v1123
        %v1171 = vadd.f32 %v1101, %v1123
        %v1172 = vadd.f32 %v1102, %v1123
        %v1173 = vadd.f32 %v1103, %v1123
        %v1174 = vadd.f32 %v1104, %v1123
        %v1175 = vadd.f32 %v1105, %v1123
        %v1176 = vadd.f32 %v1106, %v1123
        %v1177 = vadd.f32 %v1107, %v1123
        %v1178 = vadd.f32 %v1108, %v1123
        %v1179 = vadd.f32 %v1109, %v1123
        %v1180 = vadd.f32 %v1110, %v1123
        %v1181 = vadd.f32 %v1111, %v1123
        %v1182 = vadd.f32 %v1112, %v1123
        %v1183 = vadd.f32 %v1113, %v1123
        %v1184 = vadd.f32 %v1114, %v1123
        %v1185 = vadd.f32 %v1115, %v1123
        %v1186 = vadd.f32 %v1116, %v1123
        %v1187 = vadd.f32 %v1117, %v1123
        %v1188 = vadd.f32 %v1118, %v1123
        %v1189 = vpack.c.bf16 %v1126, %v1125
        %v1190 = vpack.c.bf16 %v1128, %v1127
        %v1191 = vpack.c.bf16 %v1130, %v1129
        %v1192 = vpack.c.bf16 %v1132, %v1131
        %v1193 = vpack.c.bf16 %v1134, %v1133
        %v1194 = vpack.c.bf16 %v1136, %v1135
        %v1195 = vpack.c.bf16 %v1138, %v1137
        %v1196 = vpack.c.bf16 %v1140, %v1139
        %v1197 = vpack.c.bf16 %v1142, %v1141
        %v1198 = vpack.c.bf16 %v1144, %v1143
        %v1199 = vpack.c.bf16 %v1146, %v1145
        %v1200 = vpack.c.bf16 %v1148, %v1147
        %v1201 = vpack.c.bf16 %v1150, %v1149
        %v1202 = vpack.c.bf16 %v1152, %v1151
        %v1203 = vpack.c.bf16 %v1154, %v1153
        %v1204 = vpack.c.bf16 %v1156, %v1155
        %v1205 = vpack.c.bf16 %v1158, %v1157
        %v1206 = vpack.c.bf16 %v1160, %v1159
        %v1207 = vpack.c.bf16 %v1162, %v1161
        %v1208 = vpack.c.bf16 %v1164, %v1163
        %v1209 = vpack.c.bf16 %v1166, %v1165
        %v1210 = vpack.c.bf16 %v1168, %v1167
        %v1211 = vpack.c.bf16 %v1170, %v1169
        %v1212 = vpack.c.bf16 %v1172, %v1171
        %v1213 = vpack.c.bf16 %v1174, %v1173
        %v1214 = vpack.c.bf16 %v1176, %v1175
        %v1215 = vpack.c.bf16 %v1178, %v1177
        %v1216 = vpack.c.bf16 %v1180, %v1179
        %v1217 = vpack.c.bf16 %v1182, %v1181
        %v1218 = vpack.c.bf16 %v1184, %v1183
        %v1219 = vpack.c.bf16 %v1186, %v1185
        %v1220 = vpack.c.bf16 %v1188, %v1187
        %v1221 = vld [vmem:[%s6] sm:$0xff]
        %v1222 = vld [vmem:[%s6 + $0x8] sm:$0xff]
        %v1223 = vld [vmem:[%s6 + $0x10] sm:$0xff]
        %v1224 = vld [vmem:[%s6 + $0x18] sm:$0xff]
        %v1225 = vld [vmem:[%s6 + $0x20] sm:$0xff]
        %v1226 = vld [vmem:[%s6 + $0x28] sm:$0xff]
        %v1227 = vld [vmem:[%s6 + $0x30] sm:$0xff]
        %v1228 = vld [vmem:[%s6 + $0x38] sm:$0xff]
        %v1229 = vld [vmem:[%s6 + $0x40] sm:$0xff]
        %v1230 = vld [vmem:[%s6 + $0x48] sm:$0xff]
        %v1231 = vld [vmem:[%s6 + $0x50] sm:$0xff]
        %v1232 = vld [vmem:[%s6 + $0x58] sm:$0xff]
        %v1233 = vld [vmem:[%s6 + $0x60] sm:$0xff]
        %v1234 = vld [vmem:[%s6 + $0x68] sm:$0xff]
        %v1235 = vld [vmem:[%s6 + $0x70] sm:$0xff]
        %v1236 = vld [vmem:[%s6 + $0x78] sm:$0xff]
        %v1237 = vld [vmem:[%s7] sm:$0x3]
        %v1239 = vlaneseq
        %v1240 = vshrl.u32 %v1239, 7
        %v1241 = vsub.s32 0, %v1240
        %v1242 = vrot.slane %v1237, %v1241
        %v1243 = vlaneseq
        %v1244 = vshrl.u32 %v1243, 7
        %v1245 = vsub.s32 1, %v1244
        %v1246 = vrot.slane %v1237, %v1245
        %v1265 = vunpack.c.l.b16 %v1221
        %v1266 = vunpack.c.h.b16 %v1221
        %v1267 = vunpack.c.l.b16 %v1222
        %v1268 = vunpack.c.h.b16 %v1222
        %v1269 = vunpack.c.l.b16 %v1223
        %v1270 = vunpack.c.h.b16 %v1223
        %v1271 = vunpack.c.l.b16 %v1224
        %v1272 = vunpack.c.h.b16 %v1224
        %v1273 = vunpack.c.l.b16 %v1225
        %v1274 = vunpack.c.h.b16 %v1225
        %v1275 = vunpack.c.l.b16 %v1226
        %v1276 = vunpack.c.h.b16 %v1226
        %v1277 = vunpack.c.l.b16 %v1227
        %v1278 = vunpack.c.h.b16 %v1227
        %v1279 = vunpack.c.l.b16 %v1228
        %v1280 = vunpack.c.h.b16 %v1228
        %v1281 = vunpack.c.l.b16 %v1229
        %v1282 = vunpack.c.h.b16 %v1229
        %v1283 = vunpack.c.l.b16 %v1230
        %v1284 = vunpack.c.h.b16 %v1230
        %v1285 = vunpack.c.l.b16 %v1231
        %v1286 = vunpack.c.h.b16 %v1231
        %v1287 = vunpack.c.l.b16 %v1232
        %v1288 = vunpack.c.h.b16 %v1232
        %v1289 = vunpack.c.l.b16 %v1233
        %v1290 = vunpack.c.h.b16 %v1233
        %v1291 = vunpack.c.l.b16 %v1234
        %v1292 = vunpack.c.h.b16 %v1234
        %v1293 = vunpack.c.l.b16 %v1235
        %v1294 = vunpack.c.h.b16 %v1235
        %v1295 = vunpack.c.l.b16 %v1236
        %v1296 = vunpack.c.h.b16 %v1236
        %v1297 = vpack.c.b16 %v1267, %v1265
        %v1298 = vpack.c.b16 %v1268, %v1266
        %v1299 = vpack.c.b16 %v1271, %v1269
        %v1300 = vpack.c.b16 %v1272, %v1270
        %v1301 = vpack.c.b16 %v1275, %v1273
        %v1302 = vpack.c.b16 %v1276, %v1274
        %v1303 = vpack.c.b16 %v1279, %v1277
        %v1304 = vpack.c.b16 %v1280, %v1278
        %v1305 = vpack.c.b16 %v1283, %v1281
        %v1306 = vpack.c.b16 %v1284, %v1282
        %v1307 = vpack.c.b16 %v1287, %v1285
        %v1308 = vpack.c.b16 %v1288, %v1286
        %v1309 = vpack.c.b16 %v1291, %v1289
        %v1310 = vpack.c.b16 %v1292, %v1290
        %v1311 = vpack.c.b16 %v1295, %v1293
        %v1312 = vpack.c.b16 %v1296, %v1294
        %1329 = vmatprep.subr.bf16.mxu0 %v1298
        %1330 = vmatpush1.bf16.msra.mxu0 %v1297
        %1331 = vmatprep.subr.bf16.mxu0 %v1300
        %1332 = vmatpush1.bf16.msra.mxu0 %v1299
        %1333 = vmatprep.subr.bf16.mxu0 %v1302
        %1334 = vmatpush1.bf16.msra.mxu0 %v1301
        %1335 = vmatprep.subr.bf16.mxu0 %v1304
        %1336 = vmatpush1.bf16.msra.mxu0 %v1303
        %1337 = vmatprep.subr.bf16.mxu0 %v1306
        %1338 = vmatpush1.bf16.msra.mxu0 %v1305
        %1339 = vmatprep.subr.bf16.mxu0 %v1308
        %1340 = vmatpush1.bf16.msra.mxu0 %v1307
        %1341 = vmatprep.subr.bf16.mxu0 %v1310
        %1342 = vmatpush1.bf16.msra.mxu0 %v1309
        %1343 = vmatprep.subr.bf16.mxu0 %v1312
        %1344 = vmatpush1.bf16.msra.mxu0 %v1311
        %1345 = vmatprep.subr.bf16.mxu0 0
        %1346 = vmatpush1.bf16.msra.mxu0 0
        %1347 = vmatprep.subr.bf16.mxu0 0
        %1348 = vmatpush1.bf16.msra.mxu0 0
        %1349 = vmatprep.subr.bf16.mxu0 0
        %1350 = vmatpush1.bf16.msra.mxu0 0
        %1351 = vmatprep.subr.bf16.mxu0 0
        %1352 = vmatpush1.bf16.msra.mxu0 0
        %1353 = vmatprep.subr.bf16.mxu0 0
        %1354 = vmatpush1.bf16.msra.mxu0 0
        %1355 = vmatprep.subr.bf16.mxu0 0
        %1356 = vmatpush1.bf16.msra.mxu0 0
        %1357 = vmatprep.subr.bf16.mxu0 0
        %1358 = vmatpush1.bf16.msra.mxu0 0
        %1359 = vmatprep.subr.bf16.mxu0 0
        %1360 = vmatpush1.bf16.msra.mxu0 0
        %1361 = vmatprep.mubr.bf16.mxu0 0
        %1362 = vmatmul.mubr.bf16.gmra.mrb[0].mxu0 %v1189
        %v1363 = vpop.f32.mrb[0].mxu0
        %v1364 = vadd.f32 %v1242, %v1363
        %v1365 = vpop.f32.mrb[0].mxu0
        %v1366 = vadd.f32 %v1246, %v1365
        %v1367 = vpop.f32.mrb[0].mxu0
        %v1368 = vadd.f32 %v1242, %v1367
        %v1369 = vpop.f32.mrb[0].mxu0
        %v1370 = vadd.f32 %v1246, %v1369
        %1371 = vmatprep.mubr.bf16.mxu0 0
        %1372 = vmatmul.mubr.bf16.gmra.mrb[0].mxu0 %v1190
        %v1373 = vpop.f32.mrb[0].mxu0
        %v1374 = vadd.f32 %v1242, %v1373
        %v1375 = vpop.f32.mrb[0].mxu0
        %v1376 = vadd.f32 %v1246, %v1375
        %v1377 = vpop.f32.mrb[0].mxu0
        %v1378 = vadd.f32 %v1242, %v1377
        %v1379 = vpop.f32.mrb[0].mxu0
        %v1380 = vadd.f32 %v1246, %v1379
        %1381 = vmatprep.mubr.bf16.mxu0 0
        %1382 = vmatmul.mubr.bf16.gmra.mrb[0].mxu0 %v1191
        %v1383 = vpop.f32.mrb[0].mxu0
        %v1384 = vadd.f32 %v1242, %v1383
        %v1385 = vpop.f32.mrb[0].mxu0
        %v1386 = vadd.f32 %v1246, %v1385
        %v1387 = vpop.f32.mrb[0].mxu0
        %v1388 = vadd.f32 %v1242, %v1387
        %v1389 = vpop.f32.mrb[0].mxu0
        %v1390 = vadd.f32 %v1246, %v1389
        %1391 = vmatprep.mubr.bf16.mxu0 0
        %1392 = vmatmul.mubr.bf16.gmra.mrb[0].mxu0 %v1192
        %v1393 = vpop.f32.mrb[0].mxu0
        %v1394 = vadd.f32 %v1242, %v1393
        %v1395 = vpop.f32.mrb[0].mxu0
        %v1396 = vadd.f32 %v1246, %v1395
        %v1397 = vpop.f32.mrb[0].mxu0
        %v1398 = vadd.f32 %v1242, %v1397
        %v1399 = vpop.f32.mrb[0].mxu0
        %v1400 = vadd.f32 %v1246, %v1399
        %1401 = vmatprep.mubr.bf16.mxu0 0
        %1402 = vmatmul.mubr.bf16.gmra.mrb[0].mxu0 %v1193
        %v1403 = vpop.f32.mrb[0].mxu0
        %v1404 = vadd.f32 %v1242, %v1403
        %v1405 = vpop.f32.mrb[0].mxu0
        %v1406 = vadd.f32 %v1246, %v1405
        %v1407 = vpop.f32.mrb[0].mxu0
        %v1408 = vadd.f32 %v1242, %v1407
        %v1409 = vpop.f32.mrb[0].mxu0
        %v1410 = vadd.f32 %v1246, %v1409
        %1411 = vmatprep.mubr.bf16.mxu0 0
        %1412 = vmatmul.mubr.bf16.gmra.mrb[0].mxu0 %v1194
        %v1413 = vpop.f32.mrb[0].mxu0
        %v1414 = vadd.f32 %v1242, %v1413
        %v1415 = vpop.f32.mrb[0].mxu0
        %v1416 = vadd.f32 %v1246, %v1415
        %v1417 = vpop.f32.mrb[0].mxu0
        %v1418 = vadd.f32 %v1242, %v1417
        %v1419 = vpop.f32.mrb[0].mxu0
        %v1420 = vadd.f32 %v1246, %v1419
        %1421 = vmatprep.mubr.bf16.mxu0 0
        %1422 = vmatmul.mubr.bf16.gmra.mrb[0].mxu0 %v1195
        %v1423 = vpop.f32.mrb[0].mxu0
        %v1424 = vadd.f32 %v1242, %v1423
        %v1425 = vpop.f32.mrb[0].mxu0
        %v1426 = vadd.f32 %v1246, %v1425
        %v1427 = vpop.f32.mrb[0].mxu0
        %v1428 = vadd.f32 %v1242, %v1427
        %v1429 = vpop.f32.mrb[0].mxu0
        %v1430 = vadd.f32 %v1246, %v1429
        %1431 = vmatprep.mubr.bf16.mxu0 0
        %1432 = vmatmul.mubr.bf16.gmra.mrb[0].mxu0 %v1196
        %v1433 = vpop.f32.mrb[0].mxu0
        %v1434 = vadd.f32 %v1242, %v1433
        %v1435 = vpop.f32.mrb[0].mxu0
        %v1436 = vadd.f32 %v1246, %v1435
        %v1437 = vpop.f32.mrb[0].mxu0
        %v1438 = vadd.f32 %v1242, %v1437
        %v1439 = vpop.f32.mrb[0].mxu0
        %v1440 = vadd.f32 %v1246, %v1439
        %1441 = vmatprep.mubr.bf16.mxu0 0
        %1442 = vmatmul.mubr.bf16.gmra.mrb[0].mxu0 %v1197
        %v1443 = vpop.f32.mrb[0].mxu0
        %v1444 = vadd.f32 %v1242, %v1443
        %v1445 = vpop.f32.mrb[0].mxu0
        %v1446 = vadd.f32 %v1246, %v1445
        %v1447 = vpop.f32.mrb[0].mxu0
        %v1448 = vadd.f32 %v1242, %v1447
        %v1449 = vpop.f32.mrb[0].mxu0
        %v1450 = vadd.f32 %v1246, %v1449
        %1451 = vmatprep.mubr.bf16.mxu0 0
        %1452 = vmatmul.mubr.bf16.gmra.mrb[0].mxu0 %v1198
        %v1453 = vpop.f32.mrb[0].mxu0
        %v1454 = vadd.f32 %v1242, %v1453
        %v1455 = vpop.f32.mrb[0].mxu0
        %v1456 = vadd.f32 %v1246, %v1455
        %v1457 = vpop.f32.mrb[0].mxu0
        %v1458 = vadd.f32 %v1242, %v1457
        %v1459 = vpop.f32.mrb[0].mxu0
        %v1460 = vadd.f32 %v1246, %v1459
        %1461 = vmatprep.mubr.bf16.mxu0 0
        %1462 = vmatmul.mubr.bf16.gmra.mrb[0].mxu0 %v1199
        %v1463 = vpop.f32.mrb[0].mxu0
        %v1464 = vadd.f32 %v1242, %v1463
        %v1465 = vpop.f32.mrb[0].mxu0
        %v1466 = vadd.f32 %v1246, %v1465
        %v1467 = vpop.f32.mrb[0].mxu0
        %v1468 = vadd.f32 %v1242, %v1467
        %v1469 = vpop.f32.mrb[0].mxu0
        %v1470 = vadd.f32 %v1246, %v1469
        %1471 = vmatprep.mubr.bf16.mxu0 0
        %1472 = vmatmul.mubr.bf16.gmra.mrb[0].mxu0 %v1200
        %v1473 = vpop.f32.mrb[0].mxu0
        %v1474 = vadd.f32 %v1242, %v1473
        %v1475 = vpop.f32.mrb[0].mxu0
        %v1476 = vadd.f32 %v1246, %v1475
        %v1477 = vpop.f32.mrb[0].mxu0
        %v1478 = vadd.f32 %v1242, %v1477
        %v1479 = vpop.f32.mrb[0].mxu0
        %v1480 = vadd.f32 %v1246, %v1479
        %1481 = vmatprep.mubr.bf16.mxu0 0
        %1482 = vmatmul.mubr.bf16.gmra.mrb[0].mxu0 %v1201
        %v1483 = vpop.f32.mrb[0].mxu0
        %v1484 = vadd.f32 %v1242, %v1483
        %v1485 = vpop.f32.mrb[0].mxu0
        %v1486 = vadd.f32 %v1246, %v1485
        %v1487 = vpop.f32.mrb[0].mxu0
        %v1488 = vadd.f32 %v1242, %v1487
        %v1489 = vpop.f32.mrb[0].mxu0
        %v1490 = vadd.f32 %v1246, %v1489
        %1491 = vmatprep.mubr.bf16.mxu0 0
        %1492 = vmatmul.mubr.bf16.gmra.mrb[0].mxu0 %v1202
        %v1493 = vpop.f32.mrb[0].mxu0
        %v1494 = vadd.f32 %v1242, %v1493
        %v1495 = vpop.f32.mrb[0].mxu0
        %v1496 = vadd.f32 %v1246, %v1495
        %v1497 = vpop.f32.mrb[0].mxu0
        %v1498 = vadd.f32 %v1242, %v1497
        %v1499 = vpop.f32.mrb[0].mxu0
        %v1500 = vadd.f32 %v1246, %v1499
        %1501 = vmatprep.mubr.bf16.mxu0 0
        %1502 = vmatmul.mubr.bf16.gmra.mrb[0].mxu0 %v1203
        %v1503 = vpop.f32.mrb[0].mxu0
        %v1504 = vadd.f32 %v1242, %v1503
        %v1505 = vpop.f32.mrb[0].mxu0
        %v1506 = vadd.f32 %v1246, %v1505
        %v1507 = vpop.f32.mrb[0].mxu0
        %v1508 = vadd.f32 %v1242, %v1507
        %v1509 = vpop.f32.mrb[0].mxu0
        %v1510 = vadd.f32 %v1246, %v1509
        %1511 = vmatprep.mubr.bf16.mxu0 0
        %1512 = vmatmul.mubr.bf16.gmra.mrb[0].mxu0 %v1204
        %v1513 = vpop.f32.mrb[0].mxu0
        %v1514 = vadd.f32 %v1242, %v1513
        %v1515 = vpop.f32.mrb[0].mxu0
        %v1516 = vadd.f32 %v1246, %v1515
        %v1517 = vpop.f32.mrb[0].mxu0
        %v1518 = vadd.f32 %v1242, %v1517
        %v1519 = vpop.f32.mrb[0].mxu0
        %v1520 = vadd.f32 %v1246, %v1519
        %1521 = vmatprep.mubr.bf16.mxu0 0
        %1522 = vmatmul.mubr.bf16.gmra.mrb[0].mxu0 %v1205
        %v1523 = vpop.f32.mrb[0].mxu0
        %v1524 = vadd.f32 %v1242, %v1523
        %v1525 = vpop.f32.mrb[0].mxu0
        %v1526 = vadd.f32 %v1246, %v1525
        %v1527 = vpop.f32.mrb[0].mxu0
        %v1528 = vadd.f32 %v1242, %v1527
        %v1529 = vpop.f32.mrb[0].mxu0
        %v1530 = vadd.f32 %v1246, %v1529
        %1531 = vmatprep.mubr.bf16.mxu0 0
        %1532 = vmatmul.mubr.bf16.gmra.mrb[0].mxu0 %v1206
        %v1533 = vpop.f32.mrb[0].mxu0
        %v1534 = vadd.f32 %v1242, %v1533
        %v1535 = vpop.f32.mrb[0].mxu0
        %v1536 = vadd.f32 %v1246, %v1535
        %v1537 = vpop.f32.mrb[0].mxu0
        %v1538 = vadd.f32 %v1242, %v1537
        %v1539 = vpop.f32.mrb[0].mxu0
        %v1540 = vadd.f32 %v1246, %v1539
        %1541 = vmatprep.mubr.bf16.mxu0 0
        %1542 = vmatmul.mubr.bf16.gmra.mrb[0].mxu0 %v1207
        %v1543 = vpop.f32.mrb[0].mxu0
        %v1544 = vadd.f32 %v1242, %v1543
        %v1545 = vpop.f32.mrb[0].mxu0
        %v1546 = vadd.f32 %v1246, %v1545
        %v1547 = vpop.f32.mrb[0].mxu0
        %v1548 = vadd.f32 %v1242, %v1547
        %v1549 = vpop.f32.mrb[0].mxu0
        %v1550 = vadd.f32 %v1246, %v1549
        %1551 = vmatprep.mubr.bf16.mxu0 0
        %1552 = vmatmul.mubr.bf16.gmra.mrb[0].mxu0 %v1208
        %v1553 = vpop.f32.mrb[0].mxu0
        %v1554 = vadd.f32 %v1242, %v1553
        %v1555 = vpop.f32.mrb[0].mxu0
        %v1556 = vadd.f32 %v1246, %v1555
        %v1557 = vpop.f32.mrb[0].mxu0
        %v1558 = vadd.f32 %v1242, %v1557
        %v1559 = vpop.f32.mrb[0].mxu0
        %v1560 = vadd.f32 %v1246, %v1559
        %1561 = vmatprep.mubr.bf16.mxu0 0
        %1562 = vmatmul.mubr.bf16.gmra.mrb[0].mxu0 %v1209
        %v1563 = vpop.f32.mrb[0].mxu0
        %v1564 = vadd.f32 %v1242, %v1563
        %v1565 = vpop.f32.mrb[0].mxu0
        %v1566 = vadd.f32 %v1246, %v1565
        %v1567 = vpop.f32.mrb[0].mxu0
        %v1568 = vadd.f32 %v1242, %v1567
        %v1569 = vpop.f32.mrb[0].mxu0
        %v1570 = vadd.f32 %v1246, %v1569
        %1571 = vmatprep.mubr.bf16.mxu0 0
        %1572 = vmatmul.mubr.bf16.gmra.mrb[0].mxu0 %v1210
        %v1573 = vpop.f32.mrb[0].mxu0
        %v1574 = vadd.f32 %v1242, %v1573
        %v1575 = vpop.f32.mrb[0].mxu0
        %v1576 = vadd.f32 %v1246, %v1575
        %v1577 = vpop.f32.mrb[0].mxu0
        %v1578 = vadd.f32 %v1242, %v1577
        %v1579 = vpop.f32.mrb[0].mxu0
        %v1580 = vadd.f32 %v1246, %v1579
        %1581 = vmatprep.mubr.bf16.mxu0 0
        %1582 = vmatmul.mubr.bf16.gmra.mrb[0].mxu0 %v1211
        %v1583 = vpop.f32.mrb[0].mxu0
        %v1584 = vadd.f32 %v1242, %v1583
        %v1585 = vpop.f32.mrb[0].mxu0
        %v1586 = vadd.f32 %v1246, %v1585
        %v1587 = vpop.f32.mrb[0].mxu0
        %v1588 = vadd.f32 %v1242, %v1587
        %v1589 = vpop.f32.mrb[0].mxu0
        %v1590 = vadd.f32 %v1246, %v1589
        %1591 = vmatprep.mubr.bf16.mxu0 0
        %1592 = vmatmul.mubr.bf16.gmra.mrb[0].mxu0 %v1212
        %v1593 = vpop.f32.mrb[0].mxu0
        %v1594 = vadd.f32 %v1242, %v1593
        %v1595 = vpop.f32.mrb[0].mxu0
        %v1596 = vadd.f32 %v1246, %v1595
        %v1597 = vpop.f32.mrb[0].mxu0
        %v1598 = vadd.f32 %v1242, %v1597
        %v1599 = vpop.f32.mrb[0].mxu0
        %v1600 = vadd.f32 %v1246, %v1599
        %1601 = vmatprep.mubr.bf16.mxu0 0
        %1602 = vmatmul.mubr.bf16.gmra.mrb[0].mxu0 %v1213
        %v1603 = vpop.f32.mrb[0].mxu0
        %v1604 = vadd.f32 %v1242, %v1603
        %v1605 = vpop.f32.mrb[0].mxu0
        %v1606 = vadd.f32 %v1246, %v1605
        %v1607 = vpop.f32.mrb[0].mxu0
        %v1608 = vadd.f32 %v1242, %v1607
        %v1609 = vpop.f32.mrb[0].mxu0
        %v1610 = vadd.f32 %v1246, %v1609
        %1611 = vmatprep.mubr.bf16.mxu0 0
        %1612 = vmatmul.mubr.bf16.gmra.mrb[0].mxu0 %v1214
        %v1613 = vpop.f32.mrb[0].mxu0
        %v1614 = vadd.f32 %v1242, %v1613
        %v1615 = vpop.f32.mrb[0].mxu0
        %v1616 = vadd.f32 %v1246, %v1615
        %v1617 = vpop.f32.mrb[0].mxu0
        %v1618 = vadd.f32 %v1242, %v1617
        %v1619 = vpop.f32.mrb[0].mxu0
        %v1620 = vadd.f32 %v1246, %v1619
        %1621 = vmatprep.mubr.bf16.mxu0 0
        %1622 = vmatmul.mubr.bf16.gmra.mrb[0].mxu0 %v1215
        %v1623 = vpop.f32.mrb[0].mxu0
        %v1624 = vadd.f32 %v1242, %v1623
        %v1625 = vpop.f32.mrb[0].mxu0
        %v1626 = vadd.f32 %v1246, %v1625
        %v1627 = vpop.f32.mrb[0].mxu0
        %v1628 = vadd.f32 %v1242, %v1627
        %v1629 = vpop.f32.mrb[0].mxu0
        %v1630 = vadd.f32 %v1246, %v1629
        %1631 = vmatprep.mubr.bf16.mxu0 0
        %1632 = vmatmul.mubr.bf16.gmra.mrb[0].mxu0 %v1216
        %v1633 = vpop.f32.mrb[0].mxu0
        %v1634 = vadd.f32 %v1242, %v1633
        %v1635 = vpop.f32.mrb[0].mxu0
        %v1636 = vadd.f32 %v1246, %v1635
        %v1637 = vpop.f32.mrb[0].mxu0
        %v1638 = vadd.f32 %v1242, %v1637
        %v1639 = vpop.f32.mrb[0].mxu0
        %v1640 = vadd.f32 %v1246, %v1639
        %1641 = vmatprep.mubr.bf16.mxu0 0
        %1642 = vmatmul.mubr.bf16.gmra.mrb[0].mxu0 %v1217
        %v1643 = vpop.f32.mrb[0].mxu0
        %v1644 = vadd.f32 %v1242, %v1643
        %v1645 = vpop.f32.mrb[0].mxu0
        %v1646 = vadd.f32 %v1246, %v1645
        %v1647 = vpop.f32.mrb[0].mxu0
        %v1648 = vadd.f32 %v1242, %v1647
        %v1649 = vpop.f32.mrb[0].mxu0
        %v1650 = vadd.f32 %v1246, %v1649
        %1651 = vmatprep.mubr.bf16.mxu0 0
        %1652 = vmatmul.mubr.bf16.gmra.mrb[0].mxu0 %v1218
        %v1653 = vpop.f32.mrb[0].mxu0
        %v1654 = vadd.f32 %v1242, %v1653
        %v1655 = vpop.f32.mrb[0].mxu0
        %v1656 = vadd.f32 %v1246, %v1655
        %v1657 = vpop.f32.mrb[0].mxu0
        %v1658 = vadd.f32 %v1242, %v1657
        %v1659 = vpop.f32.mrb[0].mxu0
        %v1660 = vadd.f32 %v1246, %v1659
        %1661 = vmatprep.mubr.bf16.mxu0 0
        %1662 = vmatmul.mubr.bf16.gmra.mrb[0].mxu0 %v1219
        %v1663 = vpop.f32.mrb[0].mxu0
        %v1664 = vadd.f32 %v1242, %v1663
        %v1665 = vpop.f32.mrb[0].mxu0
        %v1666 = vadd.f32 %v1246, %v1665
        %v1667 = vpop.f32.mrb[0].mxu0
        %v1668 = vadd.f32 %v1242, %v1667
        %v1669 = vpop.f32.mrb[0].mxu0
        %v1670 = vadd.f32 %v1246, %v1669
        %1671 = vmatprep.mubr.bf16.mxu0 0
        %1672 = vmatmul.mubr.bf16.gmra.mrb[0].mxu0 %v1220
        %v1673 = vpop.f32.mrb[0].mxu0
        %v1674 = vadd.f32 %v1242, %v1673
        %v1675 = vpop.f32.mrb[0].mxu0
        %v1676 = vadd.f32 %v1246, %v1675
        %v1677 = vpop.f32.mrb[0].mxu0
        %v1678 = vadd.f32 %v1242, %v1677
        %v1679 = vpop.f32.mrb[0].mxu0
        %v1680 = vadd.f32 %v1246, %v1679
        %1681 = vdwg.mxu0
        %v1682 = vpack.c.bf16 %v1368, %v1364
        %v1683 = vpack.c.bf16 %v1378, %v1374
        %v1684 = vpack.c.bf16 %v1388, %v1384
        %v1685 = vpack.c.bf16 %v1398, %v1394
        %v1686 = vpack.c.bf16 %v1408, %v1404
        %v1687 = vpack.c.bf16 %v1418, %v1414
        %v1688 = vpack.c.bf16 %v1428, %v1424
        %v1689 = vpack.c.bf16 %v1438, %v1434
        %v1690 = vpack.c.bf16 %v1448, %v1444
        %v1691 = vpack.c.bf16 %v1458, %v1454
        %v1692 = vpack.c.bf16 %v1468, %v1464
        %v1693 = vpack.c.bf16 %v1478, %v1474
        %v1694 = vpack.c.bf16 %v1488, %v1484
        %v1695 = vpack.c.bf16 %v1498, %v1494
        %v1696 = vpack.c.bf16 %v1508, %v1504
        %v1697 = vpack.c.bf16 %v1518, %v1514
        %v1698 = vpack.c.bf16 %v1528, %v1524
        %v1699 = vpack.c.bf16 %v1538, %v1534
        %v1700 = vpack.c.bf16 %v1548, %v1544
        %v1701 = vpack.c.bf16 %v1558, %v1554
        %v1702 = vpack.c.bf16 %v1568, %v1564
        %v1703 = vpack.c.bf16 %v1578, %v1574
        %v1704 = vpack.c.bf16 %v1588, %v1584
        %v1705 = vpack.c.bf16 %v1598, %v1594
        %v1706 = vpack.c.bf16 %v1608, %v1604
        %v1707 = vpack.c.bf16 %v1618, %v1614
        %v1708 = vpack.c.bf16 %v1628, %v1624
        %v1709 = vpack.c.bf16 %v1638, %v1634
        %v1710 = vpack.c.bf16 %v1648, %v1644
        %v1711 = vpack.c.bf16 %v1658, %v1654
        %v1712 = vpack.c.bf16 %v1668, %v1664
        %v1713 = vpack.c.bf16 %v1678, %v1674
        %v1714 = vpack.c.bf16 %v1370, %v1366
        %v1715 = vpack.c.bf16 %v1380, %v1376
        %v1716 = vpack.c.bf16 %v1390, %v1386
        %v1717 = vpack.c.bf16 %v1400, %v1396
        %v1718 = vpack.c.bf16 %v1410, %v1406
        %v1719 = vpack.c.bf16 %v1420, %v1416
        %v1720 = vpack.c.bf16 %v1430, %v1426
        %v1721 = vpack.c.bf16 %v1440, %v1436
        %v1722 = vpack.c.bf16 %v1450, %v1446
        %v1723 = vpack.c.bf16 %v1460, %v1456
        %v1724 = vpack.c.bf16 %v1470, %v1466
        %v1725 = vpack.c.bf16 %v1480, %v1476
        %v1726 = vpack.c.bf16 %v1490, %v1486
        %v1727 = vpack.c.bf16 %v1500, %v1496
        %v1728 = vpack.c.bf16 %v1510, %v1506
        %v1729 = vpack.c.bf16 %v1520, %v1516
        %v1730 = vpack.c.bf16 %v1530, %v1526
        %v1731 = vpack.c.bf16 %v1540, %v1536
        %v1732 = vpack.c.bf16 %v1550, %v1546
        %v1733 = vpack.c.bf16 %v1560, %v1556
        %v1734 = vpack.c.bf16 %v1570, %v1566
        %v1735 = vpack.c.bf16 %v1580, %v1576
        %v1736 = vpack.c.bf16 %v1590, %v1586
        %v1737 = vpack.c.bf16 %v1600, %v1596
        %v1738 = vpack.c.bf16 %v1610, %v1606
        %v1739 = vpack.c.bf16 %v1620, %v1616
        %v1740 = vpack.c.bf16 %v1630, %v1626
        %v1741 = vpack.c.bf16 %v1640, %v1636
        %v1742 = vpack.c.bf16 %v1650, %v1646
        %v1743 = vpack.c.bf16 %v1660, %v1656
        %v1744 = vpack.c.bf16 %v1670, %v1666
        %v1745 = vpack.c.bf16 %v1680, %v1676
        %v1746 = vld [vmem:[#allocation2] sm:$0xff]
        %v1747 = vld [vmem:[#allocation2 + $0x8] sm:$0xff]
        %v1748 = vld [vmem:[#allocation2 + $0x10] sm:$0xff]
        %v1749 = vld [vmem:[#allocation2 + $0x18] sm:$0xff]
        %v1750 = vld [vmem:[#allocation2 + $0x20] sm:$0xff]
        %v1751 = vld [vmem:[#allocation2 + $0x28] sm:$0xff]
        %v1752 = vld [vmem:[#allocation2 + $0x30] sm:$0xff]
        %v1753 = vld [vmem:[#allocation2 + $0x38] sm:$0xff]
        %v1754 = vld [vmem:[#allocation2 + $0x40] sm:$0xff]
        %v1755 = vld [vmem:[#allocation2 + $0x48] sm:$0xff]
        %v1756 = vld [vmem:[#allocation2 + $0x50] sm:$0xff]
        %v1757 = vld [vmem:[#allocation2 + $0x58] sm:$0xff]
        %v1758 = vld [vmem:[#allocation2 + $0x60] sm:$0xff]
        %v1759 = vld [vmem:[#allocation2 + $0x68] sm:$0xff]
        %v1760 = vld [vmem:[#allocation2 + $0x70] sm:$0xff]
        %v1761 = vld [vmem:[#allocation2 + $0x78] sm:$0xff]
        %1762 = vmatprep.subr.bf16.mxu0 0
        %1763 = vmatpush1.bf16.xpose.msra.mxu0 %v1682
        %1764 = vmatprep.subr.bf16.mxu0 0
        %1765 = vmatpush1.bf16.xpose.msra.mxu0 %v1683
        %1766 = vmatprep.subr.bf16.mxu0 0
        %1767 = vmatpush1.bf16.xpose.msra.mxu0 %v1684
        %1768 = vmatprep.subr.bf16.mxu0 0
        %1769 = vmatpush1.bf16.xpose.msra.mxu0 %v1685
        %1770 = vmatprep.subr.bf16.mxu0 0
        %1771 = vmatpush1.bf16.xpose.msra.mxu0 %v1686
        %1772 = vmatprep.subr.bf16.mxu0 0
        %1773 = vmatpush1.bf16.xpose.msra.mxu0 %v1687
        %1774 = vmatprep.subr.bf16.mxu0 0
        %1775 = vmatpush1.bf16.xpose.msra.mxu0 %v1688
        %1776 = vmatprep.subr.bf16.mxu0 0
        %1777 = vmatpush1.bf16.xpose.msra.mxu0 %v1689
        %1778 = vmatprep.subr.bf16.mxu0 0
        %1779 = vmatpush1.bf16.xpose.msra.mxu0 %v1690
        %1780 = vmatprep.subr.bf16.mxu0 0
        %1781 = vmatpush1.bf16.xpose.msra.mxu0 %v1691
        %1782 = vmatprep.subr.bf16.mxu0 0
        %1783 = vmatpush1.bf16.xpose.msra.mxu0 %v1692
        %1784 = vmatprep.subr.bf16.mxu0 0
        %1785 = vmatpush1.bf16.xpose.msra.mxu0 %v1693
        %1786 = vmatprep.subr.bf16.mxu0 0
        %1787 = vmatpush1.bf16.xpose.msra.mxu0 %v1694
        %1788 = vmatprep.subr.bf16.mxu0 0
        %1789 = vmatpush1.bf16.xpose.msra.mxu0 %v1695
        %1790 = vmatprep.subr.bf16.mxu0 0
        %1791 = vmatpush1.bf16.xpose.msra.mxu0 %v1696
        %1792 = vmatprep.subr.bf16.mxu0 0
        %1793 = vmatpush1.bf16.xpose.msra.mxu0 %v1697
        %1794 = vmatprep.mubr.bf16.mxu0 0
        %1795 = vmatmul.mubr.bf16.gmra.mrb[0].mxu0 %v1746
        %v1796 = vpop.f32.mrb[0].mxu0
        %v1797 = vadd.f32 0.0, %v1796
        %v1798 = vpop.f32.mrb[0].mxu0
        %v1799 = vadd.f32 0.0, %v1798
        %v1800 = vpop.f32.mrb[0].mxu0
        %v1801 = vadd.f32 0.0, %v1800
        %v1802 = vpop.f32.mrb[0].mxu0
        %v1803 = vadd.f32 0.0, %v1802
        %1804 = vmatprep.mubr.bf16.mxu0 0
        %1805 = vmatmul.mubr.bf16.gmra.mrb[0].mxu0 %v1747
        %v1806 = vpop.f32.mrb[0].mxu0
        %v1807 = vadd.f32 0.0, %v1806
        %v1808 = vpop.f32.mrb[0].mxu0
        %v1809 = vadd.f32 0.0, %v1808
        %v1810 = vpop.f32.mrb[0].mxu0
        %v1811 = vadd.f32 0.0, %v1810
        %v1812 = vpop.f32.mrb[0].mxu0
        %v1813 = vadd.f32 0.0, %v1812
        %1814 = vmatprep.mubr.bf16.mxu0 0
        %1815 = vmatmul.mubr.bf16.gmra.mrb[0].mxu0 %v1748
        %v1816 = vpop.f32.mrb[0].mxu0
        %v1817 = vadd.f32 0.0, %v1816
        %v1818 = vpop.f32.mrb[0].mxu0
        %v1819 = vadd.f32 0.0, %v1818
        %v1820 = vpop.f32.mrb[0].mxu0
        %v1821 = vadd.f32 0.0, %v1820
        %v1822 = vpop.f32.mrb[0].mxu0
        %v1823 = vadd.f32 0.0, %v1822
        %1824 = vmatprep.mubr.bf16.mxu0 0
        %1825 = vmatmul.mubr.bf16.gmra.mrb[0].mxu0 %v1749
        %v1826 = vpop.f32.mrb[0].mxu0
        %v1827 = vadd.f32 0.0, %v1826
        %v1828 = vpop.f32.mrb[0].mxu0
        %v1829 = vadd.f32 0.0, %v1828
        %v1830 = vpop.f32.mrb[0].mxu0
        %v1831 = vadd.f32 0.0, %v1830
        %v1832 = vpop.f32.mrb[0].mxu0
        %v1833 = vadd.f32 0.0, %v1832
        %1834 = vmatprep.mubr.bf16.mxu0 0
        %1835 = vmatmul.mubr.bf16.gmra.mrb[0].mxu0 %v1750
        %v1836 = vpop.f32.mrb[0].mxu0
        %v1837 = vadd.f32 0.0, %v1836
        %v1838 = vpop.f32.mrb[0].mxu0
        %v1839 = vadd.f32 0.0, %v1838
        %v1840 = vpop.f32.mrb[0].mxu0
        %v1841 = vadd.f32 0.0, %v1840
        %v1842 = vpop.f32.mrb[0].mxu0
        %v1843 = vadd.f32 0.0, %v1842
        %1844 = vmatprep.mubr.bf16.mxu0 0
        %1845 = vmatmul.mubr.bf16.gmra.mrb[0].mxu0 %v1751
        %v1846 = vpop.f32.mrb[0].mxu0
        %v1847 = vadd.f32 0.0, %v1846
        %v1848 = vpop.f32.mrb[0].mxu0
        %v1849 = vadd.f32 0.0, %v1848
        %v1850 = vpop.f32.mrb[0].mxu0
        %v1851 = vadd.f32 0.0, %v1850
        %v1852 = vpop.f32.mrb[0].mxu0
        %v1853 = vadd.f32 0.0, %v1852
        %1854 = vmatprep.mubr.bf16.mxu0 0
        %1855 = vmatmul.mubr.bf16.gmra.mrb[0].mxu0 %v1752
        %v1856 = vpop.f32.mrb[0].mxu0
        %v1857 = vadd.f32 0.0, %v1856
        %v1858 = vpop.f32.mrb[0].mxu0
        %v1859 = vadd.f32 0.0, %v1858
        %v1860 = vpop.f32.mrb[0].mxu0
        %v1861 = vadd.f32 0.0, %v1860
        %v1862 = vpop.f32.mrb[0].mxu0
        %v1863 = vadd.f32 0.0, %v1862
        %1864 = vmatprep.mubr.bf16.mxu0 0
        %1865 = vmatmul.mubr.bf16.gmra.mrb[0].mxu0 %v1753
        %v1866 = vpop.f32.mrb[0].mxu0
        %v1867 = vadd.f32 0.0, %v1866
        %v1868 = vpop.f32.mrb[0].mxu0
        %v1869 = vadd.f32 0.0, %v1868
        %v1870 = vpop.f32.mrb[0].mxu0
        %v1871 = vadd.f32 0.0, %v1870
        %v1872 = vpop.f32.mrb[0].mxu0
        %v1873 = vadd.f32 0.0, %v1872
        %1874 = vmatprep.mubr.bf16.mxu0 0
        %1875 = vmatmul.mubr.bf16.gmra.mrb[0].mxu0 %v1754
        %v1876 = vpop.f32.mrb[0].mxu0
        %v1877 = vadd.f32 0.0, %v1876
        %v1878 = vpop.f32.mrb[0].mxu0
        %v1879 = vadd.f32 0.0, %v1878
        %v1880 = vpop.f32.mrb[0].mxu0
        %v1881 = vadd.f32 0.0, %v1880
        %v1882 = vpop.f32.mrb[0].mxu0
        %v1883 = vadd.f32 0.0, %v1882
        %1884 = vmatprep.mubr.bf16.mxu0 0
        %1885 = vmatmul.mubr.bf16.gmra.mrb[0].mxu0 %v1755
        %v1886 = vpop.f32.mrb[0].mxu0
        %v1887 = vadd.f32 0.0, %v1886
        %v1888 = vpop.f32.mrb[0].mxu0
        %v1889 = vadd.f32 0.0, %v1888
        %v1890 = vpop.f32.mrb[0].mxu0
        %v1891 = vadd.f32 0.0, %v1890
        %v1892 = vpop.f32.mrb[0].mxu0
        %v1893 = vadd.f32 0.0, %v1892
        %1894 = vmatprep.mubr.bf16.mxu0 0
        %1895 = vmatmul.mubr.bf16.gmra.mrb[0].mxu0 %v1756
        %v1896 = vpop.f32.mrb[0].mxu0
        %v1897 = vadd.f32 0.0, %v1896
        %v1898 = vpop.f32.mrb[0].mxu0
        %v1899 = vadd.f32 0.0, %v1898
        %v1900 = vpop.f32.mrb[0].mxu0
        %v1901 = vadd.f32 0.0, %v1900
        %v1902 = vpop.f32.mrb[0].mxu0
        %v1903 = vadd.f32 0.0, %v1902
        %1904 = vmatprep.mubr.bf16.mxu0 0
        %1905 = vmatmul.mubr.bf16.gmra.mrb[0].mxu0 %v1757
        %v1906 = vpop.f32.mrb[0].mxu0
        %v1907 = vadd.f32 0.0, %v1906
        %v1908 = vpop.f32.mrb[0].mxu0
        %v1909 = vadd.f32 0.0, %v1908
        %v1910 = vpop.f32.mrb[0].mxu0
        %v1911 = vadd.f32 0.0, %v1910
        %v1912 = vpop.f32.mrb[0].mxu0
        %v1913 = vadd.f32 0.0, %v1912
        %1914 = vmatprep.mubr.bf16.mxu0 0
        %1915 = vmatmul.mubr.bf16.gmra.mrb[0].mxu0 %v1758
        %v1916 = vpop.f32.mrb[0].mxu0
        %v1917 = vadd.f32 0.0, %v1916
        %v1918 = vpop.f32.mrb[0].mxu0
        %v1919 = vadd.f32 0.0, %v1918
        %v1920 = vpop.f32.mrb[0].mxu0
        %v1921 = vadd.f32 0.0, %v1920
        %v1922 = vpop.f32.mrb[0].mxu0
        %v1923 = vadd.f32 0.0, %v1922
        %1924 = vmatprep.mubr.bf16.mxu0 0
        %1925 = vmatmul.mubr.bf16.gmra.mrb[0].mxu0 %v1759
        %v1926 = vpop.f32.mrb[0].mxu0
        %v1927 = vadd.f32 0.0, %v1926
        %v1928 = vpop.f32.mrb[0].mxu0
        %v1929 = vadd.f32 0.0, %v1928
        %v1930 = vpop.f32.mrb[0].mxu0
        %v1931 = vadd.f32 0.0, %v1930
        %v1932 = vpop.f32.mrb[0].mxu0
        %v1933 = vadd.f32 0.0, %v1932
        %1934 = vmatprep.mubr.bf16.mxu0 0
        %1935 = vmatmul.mubr.bf16.gmra.mrb[0].mxu0 %v1760
        %v1936 = vpop.f32.mrb[0].mxu0
        %v1937 = vadd.f32 0.0, %v1936
        %v1938 = vpop.f32.mrb[0].mxu0
        %v1939 = vadd.f32 0.0, %v1938
        %v1940 = vpop.f32.mrb[0].mxu0
        %v1941 = vadd.f32 0.0, %v1940
        %v1942 = vpop.f32.mrb[0].mxu0
        %v1943 = vadd.f32 0.0, %v1942
        %1944 = vmatprep.mubr.bf16.mxu0 0
        %1945 = vmatmul.mubr.bf16.gmra.mrb[0].mxu0 %v1761
        %v1946 = vpop.f32.mrb[0].mxu0
        %v1947 = vadd.f32 0.0, %v1946
        %v1948 = vpop.f32.mrb[0].mxu0
        %v1949 = vadd.f32 0.0, %v1948
        %v1950 = vpop.f32.mrb[0].mxu0
        %v1951 = vadd.f32 0.0, %v1950
        %v1952 = vpop.f32.mrb[0].mxu0
        %v1953 = vadd.f32 0.0, %v1952
        %1954 = vdwg.mxu0
        %1955 = vmatprep.subr.bf16.mxu0 0
        %1956 = vmatpush1.bf16.xpose.msra.mxu0 %v1698
        %1957 = vmatprep.subr.bf16.mxu0 0
        %1958 = vmatpush1.bf16.xpose.msra.mxu0 %v1699
        %1959 = vmatprep.subr.bf16.mxu0 0
        %1960 = vmatpush1.bf16.xpose.msra.mxu0 %v1700
        %1961 = vmatprep.subr.bf16.mxu0 0
        %1962 = vmatpush1.bf16.xpose.msra.mxu0 %v1701
        %1963 = vmatprep.subr.bf16.mxu0 0
        %1964 = vmatpush1.bf16.xpose.msra.mxu0 %v1702
        %1965 = vmatprep.subr.bf16.mxu0 0
        %1966 = vmatpush1.bf16.xpose.msra.mxu0 %v1703
        %1967 = vmatprep.subr.bf16.mxu0 0
        %1968 = vmatpush1.bf16.xpose.msra.mxu0 %v1704
        %1969 = vmatprep.subr.bf16.mxu0 0
        %1970 = vmatpush1.bf16.xpose.msra.mxu0 %v1705
        %1971 = vmatprep.subr.bf16.mxu0 0
        %1972 = vmatpush1.bf16.xpose.msra.mxu0 %v1706
        %1973 = vmatprep.subr.bf16.mxu0 0
        %1974 = vmatpush1.bf16.xpose.msra.mxu0 %v1707
        %1975 = vmatprep.subr.bf16.mxu0 0
        %1976 = vmatpush1.bf16.xpose.msra.mxu0 %v1708
        %1977 = vmatprep.subr.bf16.mxu0 0
        %1978 = vmatpush1.bf16.xpose.msra.mxu0 %v1709
        %1979 = vmatprep.subr.bf16.mxu0 0
        %1980 = vmatpush1.bf16.xpose.msra.mxu0 %v1710
        %1981 = vmatprep.subr.bf16.mxu0 0
        %1982 = vmatpush1.bf16.xpose.msra.mxu0 %v1711
        %1983 = vmatprep.subr.bf16.mxu0 0
        %1984 = vmatpush1.bf16.xpose.msra.mxu0 %v1712
        %1985 = vmatprep.subr.bf16.mxu0 0
        %1986 = vmatpush1.bf16.xpose.msra.mxu0 %v1713
        %1987 = vmatprep.mubr.bf16.mxu0 0
        %1988 = vmatmul.mubr.bf16.gmra.mrb[0].mxu0 %v1746
        %v1989 = vpop.f32.mrb[0].mxu0
        %v1990 = vadd.f32 0.0, %v1989
        %v1991 = vpop.f32.mrb[0].mxu0
        %v1992 = vadd.f32 0.0, %v1991
        %v1993 = vpop.f32.mrb[0].mxu0
        %v1994 = vadd.f32 0.0, %v1993
        %v1995 = vpop.f32.mrb[0].mxu0
        %v1996 = vadd.f32 0.0, %v1995
        %1997 = vmatprep.mubr.bf16.mxu0 0
        %1998 = vmatmul.mubr.bf16.gmra.mrb[0].mxu0 %v1747
        %v1999 = vpop.f32.mrb[0].mxu0
        %v2000 = vadd.f32 0.0, %v1999
        %v2001 = vpop.f32.mrb[0].mxu0
        %v2002 = vadd.f32 0.0, %v2001
        %v2003 = vpop.f32.mrb[0].mxu0
        %v2004 = vadd.f32 0.0, %v2003
        %v2005 = vpop.f32.mrb[0].mxu0
        %v2006 = vadd.f32 0.0, %v2005
        %2007 = vmatprep.mubr.bf16.mxu0 0
        %2008 = vmatmul.mubr.bf16.gmra.mrb[0].mxu0 %v1748
        %v2009 = vpop.f32.mrb[0].mxu0
        %v2010 = vadd.f32 0.0, %v2009
        %v2011 = vpop.f32.mrb[0].mxu0
        %v2012 = vadd.f32 0.0, %v2011
        %v2013 = vpop.f32.mrb[0].mxu0
        %v2014 = vadd.f32 0.0, %v2013
        %v2015 = vpop.f32.mrb[0].mxu0
        %v2016 = vadd.f32 0.0, %v2015
        %2017 = vmatprep.mubr.bf16.mxu0 0
        %2018 = vmatmul.mubr.bf16.gmra.mrb[0].mxu0 %v1749
        %v2019 = vpop.f32.mrb[0].mxu0
        %v2020 = vadd.f32 0.0, %v2019
        %v2021 = vpop.f32.mrb[0].mxu0
        %v2022 = vadd.f32 0.0, %v2021
        %v2023 = vpop.f32.mrb[0].mxu0
        %v2024 = vadd.f32 0.0, %v2023
        %v2025 = vpop.f32.mrb[0].mxu0
        %v2026 = vadd.f32 0.0, %v2025
        %2027 = vmatprep.mubr.bf16.mxu0 0
        %2028 = vmatmul.mubr.bf16.gmra.mrb[0].mxu0 %v1750
        %v2029 = vpop.f32.mrb[0].mxu0
        %v2030 = vadd.f32 0.0, %v2029
        %v2031 = vpop.f32.mrb[0].mxu0
        %v2032 = vadd.f32 0.0, %v2031
        %v2033 = vpop.f32.mrb[0].mxu0
        %v2034 = vadd.f32 0.0, %v2033
        %v2035 = vpop.f32.mrb[0].mxu0
        %v2036 = vadd.f32 0.0, %v2035
        %2037 = vmatprep.mubr.bf16.mxu0 0
        %2038 = vmatmul.mubr.bf16.gmra.mrb[0].mxu0 %v1751
        %v2039 = vpop.f32.mrb[0].mxu0
        %v2040 = vadd.f32 0.0, %v2039
        %v2041 = vpop.f32.mrb[0].mxu0
        %v2042 = vadd.f32 0.0, %v2041
        %v2043 = vpop.f32.mrb[0].mxu0
        %v2044 = vadd.f32 0.0, %v2043
        %v2045 = vpop.f32.mrb[0].mxu0
        %v2046 = vadd.f32 0.0, %v2045
        %2047 = vmatprep.mubr.bf16.mxu0 0
        %2048 = vmatmul.mubr.bf16.gmra.mrb[0].mxu0 %v1752
        %v2049 = vpop.f32.mrb[0].mxu0
        %v2050 = vadd.f32 0.0, %v2049
        %v2051 = vpop.f32.mrb[0].mxu0
        %v2052 = vadd.f32 0.0, %v2051
        %v2053 = vpop.f32.mrb[0].mxu0
        %v2054 = vadd.f32 0.0, %v2053
        %v2055 = vpop.f32.mrb[0].mxu0
        %v2056 = vadd.f32 0.0, %v2055
        %2057 = vmatprep.mubr.bf16.mxu0 0
        %2058 = vmatmul.mubr.bf16.gmra.mrb[0].mxu0 %v1753
        %v2059 = vpop.f32.mrb[0].mxu0
        %v2060 = vadd.f32 0.0, %v2059
        %v2061 = vpop.f32.mrb[0].mxu0
        %v2062 = vadd.f32 0.0, %v2061
        %v2063 = vpop.f32.mrb[0].mxu0
        %v2064 = vadd.f32 0.0, %v2063
        %v2065 = vpop.f32.mrb[0].mxu0
        %v2066 = vadd.f32 0.0, %v2065
        %2067 = vmatprep.mubr.bf16.mxu0 0
        %2068 = vmatmul.mubr.bf16.gmra.mrb[0].mxu0 %v1754
        %v2069 = vpop.f32.mrb[0].mxu0
        %v2070 = vadd.f32 0.0, %v2069
        %v2071 = vpop.f32.mrb[0].mxu0
        %v2072 = vadd.f32 0.0, %v2071
        %v2073 = vpop.f32.mrb[0].mxu0
        %v2074 = vadd.f32 0.0, %v2073
        %v2075 = vpop.f32.mrb[0].mxu0
        %v2076 = vadd.f32 0.0, %v2075
        %2077 = vmatprep.mubr.bf16.mxu0 0
        %2078 = vmatmul.mubr.bf16.gmra.mrb[0].mxu0 %v1755
        %v2079 = vpop.f32.mrb[0].mxu0
        %v2080 = vadd.f32 0.0, %v2079
        %v2081 = vpop.f32.mrb[0].mxu0
        %v2082 = vadd.f32 0.0, %v2081
        %v2083 = vpop.f32.mrb[0].mxu0
        %v2084 = vadd.f32 0.0, %v2083
        %v2085 = vpop.f32.mrb[0].mxu0
        %v2086 = vadd.f32 0.0, %v2085
        %2087 = vmatprep.mubr.bf16.mxu0 0
        %2088 = vmatmul.mubr.bf16.gmra.mrb[0].mxu0 %v1756
        %v2089 = vpop.f32.mrb[0].mxu0
        %v2090 = vadd.f32 0.0, %v2089
        %v2091 = vpop.f32.mrb[0].mxu0
        %v2092 = vadd.f32 0.0, %v2091
        %v2093 = vpop.f32.mrb[0].mxu0
        %v2094 = vadd.f32 0.0, %v2093
        %v2095 = vpop.f32.mrb[0].mxu0
        %v2096 = vadd.f32 0.0, %v2095
        %2097 = vmatprep.mubr.bf16.mxu0 0
        %2098 = vmatmul.mubr.bf16.gmra.mrb[0].mxu0 %v1757
        %v2099 = vpop.f32.mrb[0].mxu0
        %v2100 = vadd.f32 0.0, %v2099
        %v2101 = vpop.f32.mrb[0].mxu0
        %v2102 = vadd.f32 0.0, %v2101
        %v2103 = vpop.f32.mrb[0].mxu0
        %v2104 = vadd.f32 0.0, %v2103
        %v2105 = vpop.f32.mrb[0].mxu0
        %v2106 = vadd.f32 0.0, %v2105
        %2107 = vmatprep.mubr.bf16.mxu0 0
        %2108 = vmatmul.mubr.bf16.gmra.mrb[0].mxu0 %v1758
        %v2109 = vpop.f32.mrb[0].mxu0
        %v2110 = vadd.f32 0.0, %v2109
        %v2111 = vpop.f32.mrb[0].mxu0
        %v2112 = vadd.f32 0.0, %v2111
        %v2113 = vpop.f32.mrb[0].mxu0
        %v2114 = vadd.f32 0.0, %v2113
        %v2115 = vpop.f32.mrb[0].mxu0
        %v2116 = vadd.f32 0.0, %v2115
        %2117 = vmatprep.mubr.bf16.mxu0 0
        %2118 = vmatmul.mubr.bf16.gmra.mrb[0].mxu0 %v1759
        %v2119 = vpop.f32.mrb[0].mxu0
        %v2120 = vadd.f32 0.0, %v2119
        %v2121 = vpop.f32.mrb[0].mxu0
        %v2122 = vadd.f32 0.0, %v2121
        %v2123 = vpop.f32.mrb[0].mxu0
        %v2124 = vadd.f32 0.0, %v2123
        %v2125 = vpop.f32.mrb[0].mxu0
        %v2126 = vadd.f32 0.0, %v2125
        %2127 = vmatprep.mubr.bf16.mxu0 0
        %2128 = vmatmul.mubr.bf16.gmra.mrb[0].mxu0 %v1760
        %v2129 = vpop.f32.mrb[0].mxu0
        %v2130 = vadd.f32 0.0, %v2129
        %v2131 = vpop.f32.mrb[0].mxu0
        %v2132 = vadd.f32 0.0, %v2131
        %v2133 = vpop.f32.mrb[0].mxu0
        %v2134 = vadd.f32 0.0, %v2133
        %v2135 = vpop.f32.mrb[0].mxu0
        %v2136 = vadd.f32 0.0, %v2135
        %2137 = vmatprep.mubr.bf16.mxu0 0
        %2138 = vmatmul.mubr.bf16.gmra.mrb[0].mxu0 %v1761
        %v2139 = vpop.f32.mrb[0].mxu0
        %v2140 = vadd.f32 0.0, %v2139
        %v2141 = vpop.f32.mrb[0].mxu0
        %v2142 = vadd.f32 0.0, %v2141
        %v2143 = vpop.f32.mrb[0].mxu0
        %v2144 = vadd.f32 0.0, %v2143
        %v2145 = vpop.f32.mrb[0].mxu0
        %v2146 = vadd.f32 0.0, %v2145
        %2147 = vdwg.mxu0
        %v2148 = vld [vmem:[#allocation3] sm:$0xff]
        %v2149 = vld [vmem:[#allocation3 + $0x8] sm:$0xff]
        %v2150 = vld [vmem:[#allocation3 + $0x10] sm:$0xff]
        %v2151 = vld [vmem:[#allocation3 + $0x18] sm:$0xff]
        %v2152 = vld [vmem:[#allocation3 + $0x20] sm:$0xff]
        %v2153 = vld [vmem:[#allocation3 + $0x28] sm:$0xff]
        %v2154 = vld [vmem:[#allocation3 + $0x30] sm:$0xff]
        %v2155 = vld [vmem:[#allocation3 + $0x38] sm:$0xff]
        %v2156 = vld [vmem:[#allocation3 + $0x40] sm:$0xff]
        %v2157 = vld [vmem:[#allocation3 + $0x48] sm:$0xff]
        %v2158 = vld [vmem:[#allocation3 + $0x50] sm:$0xff]
        %v2159 = vld [vmem:[#allocation3 + $0x58] sm:$0xff]
        %v2160 = vld [vmem:[#allocation3 + $0x60] sm:$0xff]
        %v2161 = vld [vmem:[#allocation3 + $0x68] sm:$0xff]
        %v2162 = vld [vmem:[#allocation3 + $0x70] sm:$0xff]
        %v2163 = vld [vmem:[#allocation3 + $0x78] sm:$0xff]
        %v2164 = vld [vmem:[#allocation3 + $0x80] sm:$0xff]
        %v2165 = vld [vmem:[#allocation3 + $0x88] sm:$0xff]
        %v2166 = vld [vmem:[#allocation3 + $0x90] sm:$0xff]
        %v2167 = vld [vmem:[#allocation3 + $0x98] sm:$0xff]
        %v2168 = vld [vmem:[#allocation3 + $0xa0] sm:$0xff]
        %v2169 = vld [vmem:[#allocation3 + $0xa8] sm:$0xff]
        %v2170 = vld [vmem:[#allocation3 + $0xb0] sm:$0xff]
        %v2171 = vld [vmem:[#allocation3 + $0xb8] sm:$0xff]
        %v2172 = vld [vmem:[#allocation3 + $0xc0] sm:$0xff]
        %v2173 = vld [vmem:[#allocation3 + $0xc8] sm:$0xff]
        %v2174 = vld [vmem:[#allocation3 + $0xd0] sm:$0xff]
        %v2175 = vld [vmem:[#allocation3 + $0xd8] sm:$0xff]
        %v2176 = vld [vmem:[#allocation3 + $0xe0] sm:$0xff]
        %v2177 = vld [vmem:[#allocation3 + $0xe8] sm:$0xff]
        %v2178 = vld [vmem:[#allocation3 + $0xf0] sm:$0xff]
        %v2179 = vld [vmem:[#allocation3 + $0xf8] sm:$0xff]
        %v2180 = vmax.f32 %v1797, %v1799
        %v2181 = vmax.f32 %v2180, %v1990
        %v2182 = vmax.f32 %v2181, %v1992
        %2183 = vmax.xlane.f32.xlu0 %v2182
        %v2184 = vpop.xlane.xlu0 %2183
        %v2185 = vmax.f32 %v1801, %v1803
        %v2186 = vmax.f32 %v2185, %v1994
        %v2187 = vmax.f32 %v2186, %v1996
        %2188 = vmax.xlane.f32.xlu0 %v2187
        %v2189 = vpop.xlane.xlu0 %2188
        %v2190 = vmax.f32 %v1807, %v1809
        %v2191 = vmax.f32 %v2190, %v2000
        %v2192 = vmax.f32 %v2191, %v2002
        %2193 = vmax.xlane.f32.xlu0 %v2192
        %v2194 = vpop.xlane.xlu0 %2193
        %v2195 = vmax.f32 %v1811, %v1813
        %v2196 = vmax.f32 %v2195, %v2004
        %v2197 = vmax.f32 %v2196, %v2006
        %2198 = vmax.xlane.f32.xlu0 %v2197
        %v2199 = vpop.xlane.xlu0 %2198
        %v2200 = vmax.f32 %v1817, %v1819
        %v2201 = vmax.f32 %v2200, %v2010
        %v2202 = vmax.f32 %v2201, %v2012
        %2203 = vmax.xlane.f32.xlu0 %v2202
        %v2204 = vpop.xlane.xlu0 %2203
        %v2205 = vmax.f32 %v1821, %v1823
        %v2206 = vmax.f32 %v2205, %v2014
        %v2207 = vmax.f32 %v2206, %v2016
        %2208 = vmax.xlane.f32.xlu0 %v2207
        %v2209 = vpop.xlane.xlu0 %2208
        %v2210 = vmax.f32 %v1827, %v1829
        %v2211 = vmax.f32 %v2210, %v2020
        %v2212 = vmax.f32 %v2211, %v2022
        %2213 = vmax.xlane.f32.xlu0 %v2212
        %v2214 = vpop.xlane.xlu0 %2213
        %v2215 = vmax.f32 %v1831, %v1833
        %v2216 = vmax.f32 %v2215, %v2024
        %v2217 = vmax.f32 %v2216, %v2026
        %2218 = vmax.xlane.f32.xlu0 %v2217
        %v2219 = vpop.xlane.xlu0 %2218
        %v2220 = vmax.f32 %v1837, %v1839
        %v2221 = vmax.f32 %v2220, %v2030
        %v2222 = vmax.f32 %v2221, %v2032
        %2223 = vmax.xlane.f32.xlu0 %v2222
        %v2224 = vpop.xlane.xlu0 %2223
        %v2225 = vmax.f32 %v1841, %v1843
        %v2226 = vmax.f32 %v2225, %v2034
        %v2227 = vmax.f32 %v2226, %v2036
        %2228 = vmax.xlane.f32.xlu0 %v2227
        %v2229 = vpop.xlane.xlu0 %2228
        %v2230 = vmax.f32 %v1847, %v1849
        %v2231 = vmax.f32 %v2230, %v2040
        %v2232 = vmax.f32 %v2231, %v2042
        %2233 = vmax.xlane.f32.xlu0 %v2232
        %v2234 = vpop.xlane.xlu0 %2233
        %v2235 = vmax.f32 %v1851, %v1853
        %v2236 = vmax.f32 %v2235, %v2044
        %v2237 = vmax.f32 %v2236, %v2046
        %2238 = vmax.xlane.f32.xlu0 %v2237
        %v2239 = vpop.xlane.xlu0 %2238
        %v2240 = vmax.f32 %v1857, %v1859
        %v2241 = vmax.f32 %v2240, %v2050
        %v2242 = vmax.f32 %v2241, %v2052
        %2243 = vmax.xlane.f32.xlu0 %v2242
        %v2244 = vpop.xlane.xlu0 %2243
        %v2245 = vmax.f32 %v1861, %v1863
        %v2246 = vmax.f32 %v2245, %v2054
        %v2247 = vmax.f32 %v2246, %v2056
        %2248 = vmax.xlane.f32.xlu0 %v2247
        %v2249 = vpop.xlane.xlu0 %2248
        %v2250 = vmax.f32 %v1867, %v1869
        %v2251 = vmax.f32 %v2250, %v2060
        %v2252 = vmax.f32 %v2251, %v2062
        %2253 = vmax.xlane.f32.xlu0 %v2252
        %v2254 = vpop.xlane.xlu0 %2253
        %v2255 = vmax.f32 %v1871, %v1873
        %v2256 = vmax.f32 %v2255, %v2064
        %v2257 = vmax.f32 %v2256, %v2066
        %2258 = vmax.xlane.f32.xlu0 %v2257
        %v2259 = vpop.xlane.xlu0 %2258
        %v2260 = vmax.f32 %v1877, %v1879
        %v2261 = vmax.f32 %v2260, %v2070
        %v2262 = vmax.f32 %v2261, %v2072
        %2263 = vmax.xlane.f32.xlu0 %v2262
        %v2264 = vpop.xlane.xlu0 %2263
        %v2265 = vmax.f32 %v1881, %v1883
        %v2266 = vmax.f32 %v2265, %v2074
        %v2267 = vmax.f32 %v2266, %v2076
        %2268 = vmax.xlane.f32.xlu0 %v2267
        %v2269 = vpop.xlane.xlu0 %2268
        %v2270 = vmax.f32 %v1887, %v1889
        %v2271 = vmax.f32 %v2270, %v2080
        %v2272 = vmax.f32 %v2271, %v2082
        %2273 = vmax.xlane.f32.xlu0 %v2272
        %v2274 = vpop.xlane.xlu0 %2273
        %v2275 = vmax.f32 %v1891, %v1893
        %v2276 = vmax.f32 %v2275, %v2084
        %v2277 = vmax.f32 %v2276, %v2086
        %2278 = vmax.xlane.f32.xlu0 %v2277
        %v2279 = vpop.xlane.xlu0 %2278
        %v2280 = vmax.f32 %v1897, %v1899
        %v2281 = vmax.f32 %v2280, %v2090
        %v2282 = vmax.f32 %v2281, %v2092
        %2283 = vmax.xlane.f32.xlu0 %v2282
        %v2284 = vpop.xlane.xlu0 %2283
        %v2285 = vmax.f32 %v1901, %v1903
        %v2286 = vmax.f32 %v2285, %v2094
        %v2287 = vmax.f32 %v2286, %v2096
        %2288 = vmax.xlane.f32.xlu0 %v2287
        %v2289 = vpop.xlane.xlu0 %2288
        %v2290 = vmax.f32 %v1907, %v1909
        %v2291 = vmax.f32 %v2290, %v2100
        %v2292 = vmax.f32 %v2291, %v2102
        %2293 = vmax.xlane.f32.xlu0 %v2292
        %v2294 = vpop.xlane.xlu0 %2293
        %v2295 = vmax.f32 %v1911, %v1913
        %v2296 = vmax.f32 %v2295, %v2104
        %v2297 = vmax.f32 %v2296, %v2106
        %2298 = vmax.xlane.f32.xlu0 %v2297
        %v2299 = vpop.xlane.xlu0 %2298
        %v2300 = vmax.f32 %v1917, %v1919
        %v2301 = vmax.f32 %v2300, %v2110
        %v2302 = vmax.f32 %v2301, %v2112
        %2303 = vmax.xlane.f32.xlu0 %v2302
        %v2304 = vpop.xlane.xlu0 %2303
        %v2305 = vmax.f32 %v1921, %v1923
        %v2306 = vmax.f32 %v2305, %v2114
        %v2307 = vmax.f32 %v2306, %v2116
        %2308 = vmax.xlane.f32.xlu0 %v2307
        %v2309 = vpop.xlane.xlu0 %2308
        %v2310 = vmax.f32 %v1927, %v1929
        %v2311 = vmax.f32 %v2310, %v2120
        %v2312 = vmax.f32 %v2311, %v2122
        %2313 = vmax.xlane.f32.xlu0 %v2312
        %v2314 = vpop.xlane.xlu0 %2313
        %v2315 = vmax.f32 %v1931, %v1933
        %v2316 = vmax.f32 %v2315, %v2124
        %v2317 = vmax.f32 %v2316, %v2126
        %2318 = vmax.xlane.f32.xlu0 %v2317
        %v2319 = vpop.xlane.xlu0 %2318
        %v2320 = vmax.f32 %v1937, %v1939
        %v2321 = vmax.f32 %v2320, %v2130
        %v2322 = vmax.f32 %v2321, %v2132
        %2323 = vmax.xlane.f32.xlu0 %v2322
        %v2324 = vpop.xlane.xlu0 %2323
        %v2325 = vmax.f32 %v1941, %v1943
        %v2326 = vmax.f32 %v2325, %v2134
        %v2327 = vmax.f32 %v2326, %v2136
        %2328 = vmax.xlane.f32.xlu0 %v2327
        %v2329 = vpop.xlane.xlu0 %2328
        %v2330 = vmax.f32 %v1947, %v1949
        %v2331 = vmax.f32 %v2330, %v2140
        %v2332 = vmax.f32 %v2331, %v2142
        %2333 = vmax.xlane.f32.xlu0 %v2332
        %v2334 = vpop.xlane.xlu0 %2333
        %v2335 = vmax.f32 %v1951, %v1953
        %v2336 = vmax.f32 %v2335, %v2144
        %v2337 = vmax.f32 %v2336, %v2146
        %2338 = vmax.xlane.f32.xlu0 %v2337
        %v2339 = vpop.xlane.xlu0 %2338
        %v2340 = vmax.f32 %v2148, %v2184
        %v2341 = vmax.f32 %v2149, %v2189
        %v2342 = vmax.f32 %v2150, %v2194
        %v2343 = vmax.f32 %v2151, %v2199
        %v2344 = vmax.f32 %v2152, %v2204
        %v2345 = vmax.f32 %v2153, %v2209
        %v2346 = vmax.f32 %v2154, %v2214
        %v2347 = vmax.f32 %v2155, %v2219
        %v2348 = vmax.f32 %v2156, %v2224
        %v2349 = vmax.f32 %v2157, %v2229
        %v2350 = vmax.f32 %v2158, %v2234
        %v2351 = vmax.f32 %v2159, %v2239
        %v2352 = vmax.f32 %v2160, %v2244
        %v2353 = vmax.f32 %v2161, %v2249
        %v2354 = vmax.f32 %v2162, %v2254
        %v2355 = vmax.f32 %v2163, %v2259
        %v2356 = vmax.f32 %v2164, %v2264
        %v2357 = vmax.f32 %v2165, %v2269
        %v2358 = vmax.f32 %v2166, %v2274
        %v2359 = vmax.f32 %v2167, %v2279
        %v2360 = vmax.f32 %v2168, %v2284
        %v2361 = vmax.f32 %v2169, %v2289
        %v2362 = vmax.f32 %v2170, %v2294
        %v2363 = vmax.f32 %v2171, %v2299
        %v2364 = vmax.f32 %v2172, %v2304
        %v2365 = vmax.f32 %v2173, %v2309
        %v2366 = vmax.f32 %v2174, %v2314
        %v2367 = vmax.f32 %v2175, %v2319
        %v2368 = vmax.f32 %v2176, %v2324
        %v2369 = vmax.f32 %v2177, %v2329
        %v2370 = vmax.f32 %v2178, %v2334
        %v2371 = vmax.f32 %v2179, %v2339
        %v2372 = vsub.f32 %v2148, %v2340
        %v2373 = vsub.f32 %v2149, %v2341
        %v2374 = vsub.f32 %v2150, %v2342
        %v2375 = vsub.f32 %v2151, %v2343
        %v2376 = vsub.f32 %v2152, %v2344
        %v2377 = vsub.f32 %v2153, %v2345
        %v2378 = vsub.f32 %v2154, %v2346
        %v2379 = vsub.f32 %v2155, %v2347
        %v2380 = vsub.f32 %v2156, %v2348
        %v2381 = vsub.f32 %v2157, %v2349
        %v2382 = vsub.f32 %v2158, %v2350
        %v2383 = vsub.f32 %v2159, %v2351
        %v2384 = vsub.f32 %v2160, %v2352
        %v2385 = vsub.f32 %v2161, %v2353
        %v2386 = vsub.f32 %v2162, %v2354
        %v2387 = vsub.f32 %v2163, %v2355
        %v2388 = vsub.f32 %v2164, %v2356
        %v2389 = vsub.f32 %v2165, %v2357
        %v2390 = vsub.f32 %v2166, %v2358
        %v2391 = vsub.f32 %v2167, %v2359
        %v2392 = vsub.f32 %v2168, %v2360
        %v2393 = vsub.f32 %v2169, %v2361
        %v2394 = vsub.f32 %v2170, %v2362
        %v2395 = vsub.f32 %v2171, %v2363
        %v2396 = vsub.f32 %v2172, %v2364
        %v2397 = vsub.f32 %v2173, %v2365
        %v2398 = vsub.f32 %v2174, %v2366
        %v2399 = vsub.f32 %v2175, %v2367
        %v2400 = vsub.f32 %v2176, %v2368
        %v2401 = vsub.f32 %v2177, %v2369
        %v2402 = vsub.f32 %v2178, %v2370
        %v2403 = vsub.f32 %v2179, %v2371
        %v2404 = vmul.f32 %v2372, 1.442695
        %v2405 = vpow.pop %v2404
        %v2406 = vmul.f32 %v2373, 1.442695
        %v2407 = vpow.pop %v2406
        %v2408 = vmul.f32 %v2374, 1.442695
        %v2409 = vpow.pop %v2408
        %v2410 = vmul.f32 %v2375, 1.442695
        %v2411 = vpow.pop %v2410
        %v2412 = vmul.f32 %v2376, 1.442695
        %v2413 = vpow.pop %v2412
        %v2414 = vmul.f32 %v2377, 1.442695
        %v2415 = vpow.pop %v2414
        %v2416 = vmul.f32 %v2378, 1.442695
        %v2417 = vpow.pop %v2416
        %v2418 = vmul.f32 %v2379, 1.442695
        %v2419 = vpow.pop %v2418
        %v2420 = vmul.f32 %v2380, 1.442695
        %v2421 = vpow.pop %v2420
        %v2422 = vmul.f32 %v2381, 1.442695
        %v2423 = vpow.pop %v2422
        %v2424 = vmul.f32 %v2382, 1.442695
        %v2425 = vpow.pop %v2424
        %v2426 = vmul.f32 %v2383, 1.442695
        %v2427 = vpow.pop %v2426
        %v2428 = vmul.f32 %v2384, 1.442695
        %v2429 = vpow.pop %v2428
        %v2430 = vmul.f32 %v2385, 1.442695
        %v2431 = vpow.pop %v2430
        %v2432 = vmul.f32 %v2386, 1.442695
        %v2433 = vpow.pop %v2432
        %v2434 = vmul.f32 %v2387, 1.442695
        %v2435 = vpow.pop %v2434
        %v2436 = vmul.f32 %v2388, 1.442695
        %v2437 = vpow.pop %v2436
        %v2438 = vmul.f32 %v2389, 1.442695
        %v2439 = vpow.pop %v2438
        %v2440 = vmul.f32 %v2390, 1.442695
        %v2441 = vpow.pop %v2440
        %v2442 = vmul.f32 %v2391, 1.442695
        %v2443 = vpow.pop %v2442
        %v2444 = vmul.f32 %v2392, 1.442695
        %v2445 = vpow.pop %v2444
        %v2446 = vmul.f32 %v2393, 1.442695
        %v2447 = vpow.pop %v2446
        %v2448 = vmul.f32 %v2394, 1.442695
        %v2449 = vpow.pop %v2448
        %v2450 = vmul.f32 %v2395, 1.442695
        %v2451 = vpow.pop %v2450
        %v2452 = vmul.f32 %v2396, 1.442695
        %v2453 = vpow.pop %v2452
        %v2454 = vmul.f32 %v2397, 1.442695
        %v2455 = vpow.pop %v2454
        %v2456 = vmul.f32 %v2398, 1.442695
        %v2457 = vpow.pop %v2456
        %v2458 = vmul.f32 %v2399, 1.442695
        %v2459 = vpow.pop %v2458
        %v2460 = vmul.f32 %v2400, 1.442695
        %v2461 = vpow.pop %v2460
        %v2462 = vmul.f32 %v2401, 1.442695
        %v2463 = vpow.pop %v2462
        %v2464 = vmul.f32 %v2402, 1.442695
        %v2465 = vpow.pop %v2464
        %v2466 = vmul.f32 %v2403, 1.442695
        %v2467 = vpow.pop %v2466
        %2469 = vset.pattern.permute.xlu0 0
        %2470 = vperm.xlu0 %2469, %v2340
        %v2471 = vpop.permute.xlu0 %2470
        %2474 = vset.pattern.permute.xlu0 0
        %2475 = vperm.xlu0 %2474, %v2341
        %v2476 = vpop.permute.xlu0 %2475
        %2479 = vset.pattern.permute.xlu0 0
        %2480 = vperm.xlu0 %2479, %v2342
        %v2481 = vpop.permute.xlu0 %2480
        %2484 = vset.pattern.permute.xlu0 0
        %2485 = vperm.xlu0 %2484, %v2343
        %v2486 = vpop.permute.xlu0 %2485
        %2489 = vset.pattern.permute.xlu0 0
        %2490 = vperm.xlu0 %2489, %v2344
        %v2491 = vpop.permute.xlu0 %2490
        %2494 = vset.pattern.permute.xlu0 0
        %2495 = vperm.xlu0 %2494, %v2345
        %v2496 = vpop.permute.xlu0 %2495
        %2499 = vset.pattern.permute.xlu0 0
        %2500 = vperm.xlu0 %2499, %v2346
        %v2501 = vpop.permute.xlu0 %2500
        %2504 = vset.pattern.permute.xlu0 0
        %2505 = vperm.xlu0 %2504, %v2347
        %v2506 = vpop.permute.xlu0 %2505
        %2509 = vset.pattern.permute.xlu0 0
        %2510 = vperm.xlu0 %2509, %v2348
        %v2511 = vpop.permute.xlu0 %2510
        %2514 = vset.pattern.permute.xlu0 0
        %2515 = vperm.xlu0 %2514, %v2349
        %v2516 = vpop.permute.xlu0 %2515
        %2519 = vset.pattern.permute.xlu0 0
        %2520 = vperm.xlu0 %2519, %v2350
        %v2521 = vpop.permute.xlu0 %2520
        %2524 = vset.pattern.permute.xlu0 0
        %2525 = vperm.xlu0 %2524, %v2351
        %v2526 = vpop.permute.xlu0 %2525
        %2529 = vset.pattern.permute.xlu0 0
        %2530 = vperm.xlu0 %2529, %v2352
        %v2531 = vpop.permute.xlu0 %2530
        %2534 = vset.pattern.permute.xlu0 0
        %2535 = vperm.xlu0 %2534, %v2353
        %v2536 = vpop.permute.xlu0 %2535
        %2539 = vset.pattern.permute.xlu0 0
        %2540 = vperm.xlu0 %2539, %v2354
        %v2541 = vpop.permute.xlu0 %2540
        %2544 = vset.pattern.permute.xlu0 0
        %2545 = vperm.xlu0 %2544, %v2355
        %v2546 = vpop.permute.xlu0 %2545
        %2549 = vset.pattern.permute.xlu0 0
        %2550 = vperm.xlu0 %2549, %v2356
        %v2551 = vpop.permute.xlu0 %2550
        %2554 = vset.pattern.permute.xlu0 0
        %2555 = vperm.xlu0 %2554, %v2357
        %v2556 = vpop.permute.xlu0 %2555
        %2559 = vset.pattern.permute.xlu0 0
        %2560 = vperm.xlu0 %2559, %v2358
        %v2561 = vpop.permute.xlu0 %2560
        %2564 = vset.pattern.permute.xlu0 0
        %2565 = vperm.xlu0 %2564, %v2359
        %v2566 = vpop.permute.xlu0 %2565
        %2569 = vset.pattern.permute.xlu0 0
        %2570 = vperm.xlu0 %2569, %v2360
        %v2571 = vpop.permute.xlu0 %2570
        %2574 = vset.pattern.permute.xlu0 0
        %2575 = vperm.xlu0 %2574, %v2361
        %v2576 = vpop.permute.xlu0 %2575
        %2579 = vset.pattern.permute.xlu0 0
        %2580 = vperm.xlu0 %2579, %v2362
        %v2581 = vpop.permute.xlu0 %2580
        %2584 = vset.pattern.permute.xlu0 0
        %2585 = vperm.xlu0 %2584, %v2363
        %v2586 = vpop.permute.xlu0 %2585
        %2589 = vset.pattern.permute.xlu0 0
        %2590 = vperm.xlu0 %2589, %v2364
        %v2591 = vpop.permute.xlu0 %2590
        %2594 = vset.pattern.permute.xlu0 0
        %2595 = vperm.xlu0 %2594, %v2365
        %v2596 = vpop.permute.xlu0 %2595
        %2599 = vset.pattern.permute.xlu0 0
        %2600 = vperm.xlu0 %2599, %v2366
        %v2601 = vpop.permute.xlu0 %2600
        %2604 = vset.pattern.permute.xlu0 0
        %2605 = vperm.xlu0 %2604, %v2367
        %v2606 = vpop.permute.xlu0 %2605
        %2609 = vset.pattern.permute.xlu0 0
        %2610 = vperm.xlu0 %2609, %v2368
        %v2611 = vpop.permute.xlu0 %2610
        %2614 = vset.pattern.permute.xlu0 0
        %2615 = vperm.xlu0 %2614, %v2369
        %v2616 = vpop.permute.xlu0 %2615
        %2619 = vset.pattern.permute.xlu0 0
        %2620 = vperm.xlu0 %2619, %v2370
        %v2621 = vpop.permute.xlu0 %2620
        %2624 = vset.pattern.permute.xlu0 0
        %2625 = vperm.xlu0 %2624, %v2371
        %v2626 = vpop.permute.xlu0 %2625
        %v2628 = vsub.f32 %v1797, %v2471
        %v2629 = vsub.f32 %v1799, %v2471
        %v2630 = vsub.f32 %v1990, %v2471
        %v2631 = vsub.f32 %v1992, %v2471
        %v2632 = vsub.f32 %v1801, %v2476
        %v2633 = vsub.f32 %v1803, %v2476
        %v2634 = vsub.f32 %v1994, %v2476
        %v2635 = vsub.f32 %v1996, %v2476
        %v2636 = vsub.f32 %v1807, %v2481
        %v2637 = vsub.f32 %v1809, %v2481
        %v2638 = vsub.f32 %v2000, %v2481
        %v2639 = vsub.f32 %v2002, %v2481
        %v2640 = vsub.f32 %v1811, %v2486
        %v2641 = vsub.f32 %v1813, %v2486
        %v2642 = vsub.f32 %v2004, %v2486
        %v2643 = vsub.f32 %v2006, %v2486
        %v2644 = vsub.f32 %v1817, %v2491
        %v2645 = vsub.f32 %v1819, %v2491
        %v2646 = vsub.f32 %v2010, %v2491
        %v2647 = vsub.f32 %v2012, %v2491
        %v2648 = vsub.f32 %v1821, %v2496
        %v2649 = vsub.f32 %v1823, %v2496
        %v2650 = vsub.f32 %v2014, %v2496
        %v2651 = vsub.f32 %v2016, %v2496
        %v2652 = vsub.f32 %v1827, %v2501
        %v2653 = vsub.f32 %v1829, %v2501
        %v2654 = vsub.f32 %v2020, %v2501
        %v2655 = vsub.f32 %v2022, %v2501
        %v2656 = vsub.f32 %v1831, %v2506
        %v2657 = vsub.f32 %v1833, %v2506
        %v2658 = vsub.f32 %v2024, %v2506
        %v2659 = vsub.f32 %v2026, %v2506
        %v2660 = vsub.f32 %v1837, %v2511
        %v2661 = vsub.f32 %v1839, %v2511
        %v2662 = vsub.f32 %v2030, %v2511
        %v2663 = vsub.f32 %v2032, %v2511
        %v2664 = vsub.f32 %v1841, %v2516
        %v2665 = vsub.f32 %v1843, %v2516
        %v2666 = vsub.f32 %v2034, %v2516
        %v2667 = vsub.f32 %v2036, %v2516
        %v2668 = vsub.f32 %v1847, %v2521
        %v2669 = vsub.f32 %v1849, %v2521
        %v2670 = vsub.f32 %v2040, %v2521
        %v2671 = vsub.f32 %v2042, %v2521
        %v2672 = vsub.f32 %v1851, %v2526
        %v2673 = vsub.f32 %v1853, %v2526
        %v2674 = vsub.f32 %v2044, %v2526
        %v2675 = vsub.f32 %v2046, %v2526
        %v2676 = vsub.f32 %v1857, %v2531
        %v2677 = vsub.f32 %v1859, %v2531
        %v2678 = vsub.f32 %v2050, %v2531
        %v2679 = vsub.f32 %v2052, %v2531
        %v2680 = vsub.f32 %v1861, %v2536
        %v2681 = vsub.f32 %v1863, %v2536
        %v2682 = vsub.f32 %v2054, %v2536
        %v2683 = vsub.f32 %v2056, %v2536
        %v2684 = vsub.f32 %v1867, %v2541
        %v2685 = vsub.f32 %v1869, %v2541
        %v2686 = vsub.f32 %v2060, %v2541
        %v2687 = vsub.f32 %v2062, %v2541
        %v2688 = vsub.f32 %v1871, %v2546
        %v2689 = vsub.f32 %v1873, %v2546
        %v2690 = vsub.f32 %v2064, %v2546
        %v2691 = vsub.f32 %v2066, %v2546
        %v2692 = vsub.f32 %v1877, %v2551
        %v2693 = vsub.f32 %v1879, %v2551
        %v2694 = vsub.f32 %v2070, %v2551
        %v2695 = vsub.f32 %v2072, %v2551
        %v2696 = vsub.f32 %v1881, %v2556
        %v2697 = vsub.f32 %v1883, %v2556
        %v2698 = vsub.f32 %v2074, %v2556
        %v2699 = vsub.f32 %v2076, %v2556
        %v2700 = vsub.f32 %v1887, %v2561
        %v2701 = vsub.f32 %v1889, %v2561
        %v2702 = vsub.f32 %v2080, %v2561
        %v2703 = vsub.f32 %v2082, %v2561
        %v2704 = vsub.f32 %v1891, %v2566
        %v2705 = vsub.f32 %v1893, %v2566
        %v2706 = vsub.f32 %v2084, %v2566
        %v2707 = vsub.f32 %v2086, %v2566
        %v2708 = vsub.f32 %v1897, %v2571
        %v2709 = vsub.f32 %v1899, %v2571
        %v2710 = vsub.f32 %v2090, %v2571
        %v2711 = vsub.f32 %v2092, %v2571
        %v2712 = vsub.f32 %v1901, %v2576
        %v2713 = vsub.f32 %v1903, %v2576
        %v2714 = vsub.f32 %v2094, %v2576
        %v2715 = vsub.f32 %v2096, %v2576
        %v2716 = vsub.f32 %v1907, %v2581
        %v2717 = vsub.f32 %v1909, %v2581
        %v2718 = vsub.f32 %v2100, %v2581
        %v2719 = vsub.f32 %v2102, %v2581
        %v2720 = vsub.f32 %v1911, %v2586
        %v2721 = vsub.f32 %v1913, %v2586
        %v2722 = vsub.f32 %v2104, %v2586
        %v2723 = vsub.f32 %v2106, %v2586
        %v2724 = vsub.f32 %v1917, %v2591
        %v2725 = vsub.f32 %v1919, %v2591
        %v2726 = vsub.f32 %v2110, %v2591
        %v2727 = vsub.f32 %v2112, %v2591
        %v2728 = vsub.f32 %v1921, %v2596
        %v2729 = vsub.f32 %v1923, %v2596
        %v2730 = vsub.f32 %v2114, %v2596
        %v2731 = vsub.f32 %v2116, %v2596
        %v2732 = vsub.f32 %v1927, %v2601
        %v2733 = vsub.f32 %v1929, %v2601
        %v2734 = vsub.f32 %v2120, %v2601
        %v2735 = vsub.f32 %v2122, %v2601
        %v2736 = vsub.f32 %v1931, %v2606
        %v2737 = vsub.f32 %v1933, %v2606
        %v2738 = vsub.f32 %v2124, %v2606
        %v2739 = vsub.f32 %v2126, %v2606
        %v2740 = vsub.f32 %v1937, %v2611
        %v2741 = vsub.f32 %v1939, %v2611
        %v2742 = vsub.f32 %v2130, %v2611
        %v2743 = vsub.f32 %v2132, %v2611
        %v2744 = vsub.f32 %v1941, %v2616
        %v2745 = vsub.f32 %v1943, %v2616
        %v2746 = vsub.f32 %v2134, %v2616
        %v2747 = vsub.f32 %v2136, %v2616
        %v2748 = vsub.f32 %v1947, %v2621
        %v2749 = vsub.f32 %v1949, %v2621
        %v2750 = vsub.f32 %v2140, %v2621
        %v2751 = vsub.f32 %v2142, %v2621
        %v2752 = vsub.f32 %v1951, %v2626
        %v2753 = vsub.f32 %v1953, %v2626
        %v2754 = vsub.f32 %v2144, %v2626
        %v2755 = vsub.f32 %v2146, %v2626
        %v2756 = vmul.f32 %v2628, 1.442695
        %v2757 = vpow.pop %v2756
        %v2758 = vmul.f32 %v2629, 1.442695
        %v2759 = vpow.pop %v2758
        %v2760 = vmul.f32 %v2630, 1.442695
        %v2761 = vpow.pop %v2760
        %v2762 = vmul.f32 %v2631, 1.442695
        %v2763 = vpow.pop %v2762
        %v2764 = vmul.f32 %v2632, 1.442695
        %v2765 = vpow.pop %v2764
        %v2766 = vmul.f32 %v2633, 1.442695
        %v2767 = vpow.pop %v2766
        %v2768 = vmul.f32 %v2634, 1.442695
        %v2769 = vpow.pop %v2768
        %v2770 = vmul.f32 %v2635, 1.442695
        %v2771 = vpow.pop %v2770
        %v2772 = vmul.f32 %v2636, 1.442695
        %v2773 = vpow.pop %v2772
        %v2774 = vmul.f32 %v2637, 1.442695
        %v2775 = vpow.pop %v2774
        %v2776 = vmul.f32 %v2638, 1.442695
        %v2777 = vpow.pop %v2776
        %v2778 = vmul.f32 %v2639, 1.442695
        %v2779 = vpow.pop %v2778
        %v2780 = vmul.f32 %v2640, 1.442695
        %v2781 = vpow.pop %v2780
        %v2782 = vmul.f32 %v2641, 1.442695
        %v2783 = vpow.pop %v2782
        %v2784 = vmul.f32 %v2642, 1.442695
        %v2785 = vpow.pop %v2784
        %v2786 = vmul.f32 %v2643, 1.442695
        %v2787 = vpow.pop %v2786
        %v2788 = vmul.f32 %v2644, 1.442695
        %v2789 = vpow.pop %v2788
        %v2790 = vmul.f32 %v2645, 1.442695
        %v2791 = vpow.pop %v2790
        %v2792 = vmul.f32 %v2646, 1.442695
        %v2793 = vpow.pop %v2792
        %v2794 = vmul.f32 %v2647, 1.442695
        %v2795 = vpow.pop %v2794
        %v2796 = vmul.f32 %v2648, 1.442695
        %v2797 = vpow.pop %v2796
        %v2798 = vmul.f32 %v2649, 1.442695
        %v2799 = vpow.pop %v2798
        %v2800 = vmul.f32 %v2650, 1.442695
        %v2801 = vpow.pop %v2800
        %v2802 = vmul.f32 %v2651, 1.442695
        %v2803 = vpow.pop %v2802
        %v2804 = vmul.f32 %v2652, 1.442695
        %v2805 = vpow.pop %v2804
        %v2806 = vmul.f32 %v2653, 1.442695
        %v2807 = vpow.pop %v2806
        %v2808 = vmul.f32 %v2654, 1.442695
        %v2809 = vpow.pop %v2808
        %v2810 = vmul.f32 %v2655, 1.442695
        %v2811 = vpow.pop %v2810
        %v2812 = vmul.f32 %v2656, 1.442695
        %v2813 = vpow.pop %v2812
        %v2814 = vmul.f32 %v2657, 1.442695
        %v2815 = vpow.pop %v2814
        %v2816 = vmul.f32 %v2658, 1.442695
        %v2817 = vpow.pop %v2816
        %v2818 = vmul.f32 %v2659, 1.442695
        %v2819 = vpow.pop %v2818
        %v2820 = vmul.f32 %v2660, 1.442695
        %v2821 = vpow.pop %v2820
        %v2822 = vmul.f32 %v2661, 1.442695
        %v2823 = vpow.pop %v2822
        %v2824 = vmul.f32 %v2662, 1.442695
        %v2825 = vpow.pop %v2824
        %v2826 = vmul.f32 %v2663, 1.442695
        %v2827 = vpow.pop %v2826
        %v2828 = vmul.f32 %v2664, 1.442695
        %v2829 = vpow.pop %v2828
        %v2830 = vmul.f32 %v2665, 1.442695
        %v2831 = vpow.pop %v2830
        %v2832 = vmul.f32 %v2666, 1.442695
        %v2833 = vpow.pop %v2832
        %v2834 = vmul.f32 %v2667, 1.442695
        %v2835 = vpow.pop %v2834
        %v2836 = vmul.f32 %v2668, 1.442695
        %v2837 = vpow.pop %v2836
        %v2838 = vmul.f32 %v2669, 1.442695
        %v2839 = vpow.pop %v2838
        %v2840 = vmul.f32 %v2670, 1.442695
        %v2841 = vpow.pop %v2840
        %v2842 = vmul.f32 %v2671, 1.442695
        %v2843 = vpow.pop %v2842
        %v2844 = vmul.f32 %v2672, 1.442695
        %v2845 = vpow.pop %v2844
        %v2846 = vmul.f32 %v2673, 1.442695
        %v2847 = vpow.pop %v2846
        %v2848 = vmul.f32 %v2674, 1.442695
        %v2849 = vpow.pop %v2848
        %v2850 = vmul.f32 %v2675, 1.442695
        %v2851 = vpow.pop %v2850
        %v2852 = vmul.f32 %v2676, 1.442695
        %v2853 = vpow.pop %v2852
        %v2854 = vmul.f32 %v2677, 1.442695
        %v2855 = vpow.pop %v2854
        %v2856 = vmul.f32 %v2678, 1.442695
        %v2857 = vpow.pop %v2856
        %v2858 = vmul.f32 %v2679, 1.442695
        %v2859 = vpow.pop %v2858
        %v2860 = vmul.f32 %v2680, 1.442695
        %v2861 = vpow.pop %v2860
        %v2862 = vmul.f32 %v2681, 1.442695
        %v2863 = vpow.pop %v2862
        %v2864 = vmul.f32 %v2682, 1.442695
        %v2865 = vpow.pop %v2864
        %v2866 = vmul.f32 %v2683, 1.442695
        %v2867 = vpow.pop %v2866
        %v2868 = vmul.f32 %v2684, 1.442695
        %v2869 = vpow.pop %v2868
        %v2870 = vmul.f32 %v2685, 1.442695
        %v2871 = vpow.pop %v2870
        %v2872 = vmul.f32 %v2686, 1.442695
        %v2873 = vpow.pop %v2872
        %v2874 = vmul.f32 %v2687, 1.442695
        %v2875 = vpow.pop %v2874
        %v2876 = vmul.f32 %v2688, 1.442695
        %v2877 = vpow.pop %v2876
        %v2878 = vmul.f32 %v2689, 1.442695
        %v2879 = vpow.pop %v2878
        %v2880 = vmul.f32 %v2690, 1.442695
        %v2881 = vpow.pop %v2880
        %v2882 = vmul.f32 %v2691, 1.442695
        %v2883 = vpow.pop %v2882
        %v2884 = vmul.f32 %v2692, 1.442695
        %v2885 = vpow.pop %v2884
        %v2886 = vmul.f32 %v2693, 1.442695
        %v2887 = vpow.pop %v2886
        %v2888 = vmul.f32 %v2694, 1.442695
        %v2889 = vpow.pop %v2888
        %v2890 = vmul.f32 %v2695, 1.442695
        %v2891 = vpow.pop %v2890
        %v2892 = vmul.f32 %v2696, 1.442695
        %v2893 = vpow.pop %v2892
        %v2894 = vmul.f32 %v2697, 1.442695
        %v2895 = vpow.pop %v2894
        %v2896 = vmul.f32 %v2698, 1.442695
        %v2897 = vpow.pop %v2896
        %v2898 = vmul.f32 %v2699, 1.442695
        %v2899 = vpow.pop %v2898
        %v2900 = vmul.f32 %v2700, 1.442695
        %v2901 = vpow.pop %v2900
        %v2902 = vmul.f32 %v2701, 1.442695
        %v2903 = vpow.pop %v2902
        %v2904 = vmul.f32 %v2702, 1.442695
        %v2905 = vpow.pop %v2904
        %v2906 = vmul.f32 %v2703, 1.442695
        %v2907 = vpow.pop %v2906
        %v2908 = vmul.f32 %v2704, 1.442695
        %v2909 = vpow.pop %v2908
        %v2910 = vmul.f32 %v2705, 1.442695
        %v2911 = vpow.pop %v2910
        %v2912 = vmul.f32 %v2706, 1.442695
        %v2913 = vpow.pop %v2912
        %v2914 = vmul.f32 %v2707, 1.442695
        %v2915 = vpow.pop %v2914
        %v2916 = vmul.f32 %v2708, 1.442695
        %v2917 = vpow.pop %v2916
        %v2918 = vmul.f32 %v2709, 1.442695
        %v2919 = vpow.pop %v2918
        %v2920 = vmul.f32 %v2710, 1.442695
        %v2921 = vpow.pop %v2920
        %v2922 = vmul.f32 %v2711, 1.442695
        %v2923 = vpow.pop %v2922
        %v2924 = vmul.f32 %v2712, 1.442695
        %v2925 = vpow.pop %v2924
        %v2926 = vmul.f32 %v2713, 1.442695
        %v2927 = vpow.pop %v2926
        %v2928 = vmul.f32 %v2714, 1.442695
        %v2929 = vpow.pop %v2928
        %v2930 = vmul.f32 %v2715, 1.442695
        %v2931 = vpow.pop %v2930
        %v2932 = vmul.f32 %v2716, 1.442695
        %v2933 = vpow.pop %v2932
        %v2934 = vmul.f32 %v2717, 1.442695
        %v2935 = vpow.pop %v2934
        %v2936 = vmul.f32 %v2718, 1.442695
        %v2937 = vpow.pop %v2936
        %v2938 = vmul.f32 %v2719, 1.442695
        %v2939 = vpow.pop %v2938
        %v2940 = vmul.f32 %v2720, 1.442695
        %v2941 = vpow.pop %v2940
        %v2942 = vmul.f32 %v2721, 1.442695
        %v2943 = vpow.pop %v2942
        %v2944 = vmul.f32 %v2722, 1.442695
        %v2945 = vpow.pop %v2944
        %v2946 = vmul.f32 %v2723, 1.442695
        %v2947 = vpow.pop %v2946
        %v2948 = vmul.f32 %v2724, 1.442695
        %v2949 = vpow.pop %v2948
        %v2950 = vmul.f32 %v2725, 1.442695
        %v2951 = vpow.pop %v2950
        %v2952 = vmul.f32 %v2726, 1.442695
        %v2953 = vpow.pop %v2952
        %v2954 = vmul.f32 %v2727, 1.442695
        %v2955 = vpow.pop %v2954
        %v2956 = vmul.f32 %v2728, 1.442695
        %v2957 = vpow.pop %v2956
        %v2958 = vmul.f32 %v2729, 1.442695
        %v2959 = vpow.pop %v2958
        %v2960 = vmul.f32 %v2730, 1.442695
        %v2961 = vpow.pop %v2960
        %v2962 = vmul.f32 %v2731, 1.442695
        %v2963 = vpow.pop %v2962
        %v2964 = vmul.f32 %v2732, 1.442695
        %v2965 = vpow.pop %v2964
        %v2966 = vmul.f32 %v2733, 1.442695
        %v2967 = vpow.pop %v2966
        %v2968 = vmul.f32 %v2734, 1.442695
        %v2969 = vpow.pop %v2968
        %v2970 = vmul.f32 %v2735, 1.442695
        %v2971 = vpow.pop %v2970
        %v2972 = vmul.f32 %v2736, 1.442695
        %v2973 = vpow.pop %v2972
        %v2974 = vmul.f32 %v2737, 1.442695
        %v2975 = vpow.pop %v2974
        %v2976 = vmul.f32 %v2738, 1.442695
        %v2977 = vpow.pop %v2976
        %v2978 = vmul.f32 %v2739, 1.442695
        %v2979 = vpow.pop %v2978
        %v2980 = vmul.f32 %v2740, 1.442695
        %v2981 = vpow.pop %v2980
        %v2982 = vmul.f32 %v2741, 1.442695
        %v2983 = vpow.pop %v2982
        %v2984 = vmul.f32 %v2742, 1.442695
        %v2985 = vpow.pop %v2984
        %v2986 = vmul.f32 %v2743, 1.442695
        %v2987 = vpow.pop %v2986
        %v2988 = vmul.f32 %v2744, 1.442695
        %v2989 = vpow.pop %v2988
        %v2990 = vmul.f32 %v2745, 1.442695
        %v2991 = vpow.pop %v2990
        %v2992 = vmul.f32 %v2746, 1.442695
        %v2993 = vpow.pop %v2992
        %v2994 = vmul.f32 %v2747, 1.442695
        %v2995 = vpow.pop %v2994
        %v2996 = vmul.f32 %v2748, 1.442695
        %v2997 = vpow.pop %v2996
        %v2998 = vmul.f32 %v2749, 1.442695
        %v2999 = vpow.pop %v2998
        %v3000 = vmul.f32 %v2750, 1.442695
        %v3001 = vpow.pop %v3000
        %v3002 = vmul.f32 %v2751, 1.442695
        %v3003 = vpow.pop %v3002
        %v3004 = vmul.f32 %v2752, 1.442695
        %v3005 = vpow.pop %v3004
        %v3006 = vmul.f32 %v2753, 1.442695
        %v3007 = vpow.pop %v3006
        %v3008 = vmul.f32 %v2754, 1.442695
        %v3009 = vpow.pop %v3008
        %v3010 = vmul.f32 %v2755, 1.442695
        %v3011 = vpow.pop %v3010
        %v3012 = vld [vmem:[#allocation4] sm:$0xff]
        %v3013 = vld [vmem:[#allocation4 + $0x8] sm:$0xff]
        %v3014 = vld [vmem:[#allocation4 + $0x10] sm:$0xff]
        %v3015 = vld [vmem:[#allocation4 + $0x18] sm:$0xff]
        %v3016 = vld [vmem:[#allocation4 + $0x20] sm:$0xff]
        %v3017 = vld [vmem:[#allocation4 + $0x28] sm:$0xff]
        %v3018 = vld [vmem:[#allocation4 + $0x30] sm:$0xff]
        %v3019 = vld [vmem:[#allocation4 + $0x38] sm:$0xff]
        %v3020 = vld [vmem:[#allocation4 + $0x40] sm:$0xff]
        %v3021 = vld [vmem:[#allocation4 + $0x48] sm:$0xff]
        %v3022 = vld [vmem:[#allocation4 + $0x50] sm:$0xff]
        %v3023 = vld [vmem:[#allocation4 + $0x58] sm:$0xff]
        %v3024 = vld [vmem:[#allocation4 + $0x60] sm:$0xff]
        %v3025 = vld [vmem:[#allocation4 + $0x68] sm:$0xff]
        %v3026 = vld [vmem:[#allocation4 + $0x70] sm:$0xff]
        %v3027 = vld [vmem:[#allocation4 + $0x78] sm:$0xff]
        %v3028 = vld [vmem:[#allocation4 + $0x80] sm:$0xff]
        %v3029 = vld [vmem:[#allocation4 + $0x88] sm:$0xff]
        %v3030 = vld [vmem:[#allocation4 + $0x90] sm:$0xff]
        %v3031 = vld [vmem:[#allocation4 + $0x98] sm:$0xff]
        %v3032 = vld [vmem:[#allocation4 + $0xa0] sm:$0xff]
        %v3033 = vld [vmem:[#allocation4 + $0xa8] sm:$0xff]
        %v3034 = vld [vmem:[#allocation4 + $0xb0] sm:$0xff]
        %v3035 = vld [vmem:[#allocation4 + $0xb8] sm:$0xff]
        %v3036 = vld [vmem:[#allocation4 + $0xc0] sm:$0xff]
        %v3037 = vld [vmem:[#allocation4 + $0xc8] sm:$0xff]
        %v3038 = vld [vmem:[#allocation4 + $0xd0] sm:$0xff]
        %v3039 = vld [vmem:[#allocation4 + $0xd8] sm:$0xff]
        %v3040 = vld [vmem:[#allocation4 + $0xe0] sm:$0xff]
        %v3041 = vld [vmem:[#allocation4 + $0xe8] sm:$0xff]
        %v3042 = vld [vmem:[#allocation4 + $0xf0] sm:$0xff]
        %v3043 = vld [vmem:[#allocation4 + $0xf8] sm:$0xff]
        %v3044 = vmul.f32 %v2405, %v3012
        %v3045 = vmul.f32 %v2407, %v3013
        %v3046 = vmul.f32 %v2409, %v3014
        %v3047 = vmul.f32 %v2411, %v3015
        %v3048 = vmul.f32 %v2413, %v3016
        %v3049 = vmul.f32 %v2415, %v3017
        %v3050 = vmul.f32 %v2417, %v3018
        %v3051 = vmul.f32 %v2419, %v3019
        %v3052 = vmul.f32 %v2421, %v3020
        %v3053 = vmul.f32 %v2423, %v3021
        %v3054 = vmul.f32 %v2425, %v3022
        %v3055 = vmul.f32 %v2427, %v3023
        %v3056 = vmul.f32 %v2429, %v3024
        %v3057 = vmul.f32 %v2431, %v3025
        %v3058 = vmul.f32 %v2433, %v3026
        %v3059 = vmul.f32 %v2435, %v3027
        %v3060 = vmul.f32 %v2437, %v3028
        %v3061 = vmul.f32 %v2439, %v3029
        %v3062 = vmul.f32 %v2441, %v3030
        %v3063 = vmul.f32 %v2443, %v3031
        %v3064 = vmul.f32 %v2445, %v3032
        %v3065 = vmul.f32 %v2447, %v3033
        %v3066 = vmul.f32 %v2449, %v3034
        %v3067 = vmul.f32 %v2451, %v3035
        %v3068 = vmul.f32 %v2453, %v3036
        %v3069 = vmul.f32 %v2455, %v3037
        %v3070 = vmul.f32 %v2457, %v3038
        %v3071 = vmul.f32 %v2459, %v3039
        %v3072 = vmul.f32 %v2461, %v3040
        %v3073 = vmul.f32 %v2463, %v3041
        %v3074 = vmul.f32 %v2465, %v3042
        %v3075 = vmul.f32 %v2467, %v3043
        %v3076 = vadd.f32 %v2757, %v2759
        %v3077 = vadd.f32 %v3076, %v2761
        %v3078 = vadd.f32 %v3077, %v2763
        %3079 = vadd.xlane.f32.xlu0 %v3078
        %v3080 = vpop.xlane.xlu0 %3079
        %v3081 = vadd.f32 %v2765, %v2767
        %v3082 = vadd.f32 %v3081, %v2769
        %v3083 = vadd.f32 %v3082, %v2771
        %3084 = vadd.xlane.f32.xlu0 %v3083
        %v3085 = vpop.xlane.xlu0 %3084
        %v3086 = vadd.f32 %v2773, %v2775
        %v3087 = vadd.f32 %v3086, %v2777
        %v3088 = vadd.f32 %v3087, %v2779
        %3089 = vadd.xlane.f32.xlu0 %v3088
        %v3090 = vpop.xlane.xlu0 %3089
        %v3091 = vadd.f32 %v2781, %v2783
        %v3092 = vadd.f32 %v3091, %v2785
        %v3093 = vadd.f32 %v3092, %v2787
        %3094 = vadd.xlane.f32.xlu0 %v3093
        %v3095 = vpop.xlane.xlu0 %3094
        %v3096 = vadd.f32 %v2789, %v2791
        %v3097 = vadd.f32 %v3096, %v2793
        %v3098 = vadd.f32 %v3097, %v2795
        %3099 = vadd.xlane.f32.xlu0 %v3098
        %v3100 = vpop.xlane.xlu0 %3099
        %v3101 = vadd.f32 %v2797, %v2799
        %v3102 = vadd.f32 %v3101, %v2801
        %v3103 = vadd.f32 %v3102, %v2803
        %3104 = vadd.xlane.f32.xlu0 %v3103
        %v3105 = vpop.xlane.xlu0 %3104
        %v3106 = vadd.f32 %v2805, %v2807
        %v3107 = vadd.f32 %v3106, %v2809
        %v3108 = vadd.f32 %v3107, %v2811
        %3109 = vadd.xlane.f32.xlu0 %v3108
        %v3110 = vpop.xlane.xlu0 %3109
        %v3111 = vadd.f32 %v2813, %v2815
        %v3112 = vadd.f32 %v3111, %v2817
        %v3113 = vadd.f32 %v3112, %v2819
        %3114 = vadd.xlane.f32.xlu0 %v3113
        %v3115 = vpop.xlane.xlu0 %3114
        %v3116 = vadd.f32 %v2821, %v2823
        %v3117 = vadd.f32 %v3116, %v2825
        %v3118 = vadd.f32 %v3117, %v2827
        %3119 = vadd.xlane.f32.xlu0 %v3118
        %v3120 = vpop.xlane.xlu0 %3119
        %v3121 = vadd.f32 %v2829, %v2831
        %v3122 = vadd.f32 %v3121, %v2833
        %v3123 = vadd.f32 %v3122, %v2835
        %3124 = vadd.xlane.f32.xlu0 %v3123
        %v3125 = vpop.xlane.xlu0 %3124
        %v3126 = vadd.f32 %v2837, %v2839
        %v3127 = vadd.f32 %v3126, %v2841
        %v3128 = vadd.f32 %v3127, %v2843
        %3129 = vadd.xlane.f32.xlu0 %v3128
        %v3130 = vpop.xlane.xlu0 %3129
        %v3131 = vadd.f32 %v2845, %v2847
        %v3132 = vadd.f32 %v3131, %v2849
        %v3133 = vadd.f32 %v3132, %v2851
        %3134 = vadd.xlane.f32.xlu0 %v3133
        %v3135 = vpop.xlane.xlu0 %3134
        %v3136 = vadd.f32 %v2853, %v2855
        %v3137 = vadd.f32 %v3136, %v2857
        %v3138 = vadd.f32 %v3137, %v2859
        %3139 = vadd.xlane.f32.xlu0 %v3138
        %v3140 = vpop.xlane.xlu0 %3139
        %v3141 = vadd.f32 %v2861, %v2863
        %v3142 = vadd.f32 %v3141, %v2865
        %v3143 = vadd.f32 %v3142, %v2867
        %3144 = vadd.xlane.f32.xlu0 %v3143
        %v3145 = vpop.xlane.xlu0 %3144
        %v3146 = vadd.f32 %v2869, %v2871
        %v3147 = vadd.f32 %v3146, %v2873
        %v3148 = vadd.f32 %v3147, %v2875
        %3149 = vadd.xlane.f32.xlu0 %v3148
        %v3150 = vpop.xlane.xlu0 %3149
        %v3151 = vadd.f32 %v2877, %v2879
        %v3152 = vadd.f32 %v3151, %v2881
        %v3153 = vadd.f32 %v3152, %v2883
        %3154 = vadd.xlane.f32.xlu0 %v3153
        %v3155 = vpop.xlane.xlu0 %3154
        %v3156 = vadd.f32 %v2885, %v2887
        %v3157 = vadd.f32 %v3156, %v2889
        %v3158 = vadd.f32 %v3157, %v2891
        %3159 = vadd.xlane.f32.xlu0 %v3158
        %v3160 = vpop.xlane.xlu0 %3159
        %v3161 = vadd.f32 %v2893, %v2895
        %v3162 = vadd.f32 %v3161, %v2897
        %v3163 = vadd.f32 %v3162, %v2899
        %3164 = vadd.xlane.f32.xlu0 %v3163
        %v3165 = vpop.xlane.xlu0 %3164
        %v3166 = vadd.f32 %v2901, %v2903
        %v3167 = vadd.f32 %v3166, %v2905
        %v3168 = vadd.f32 %v3167, %v2907
        %3169 = vadd.xlane.f32.xlu0 %v3168
        %v3170 = vpop.xlane.xlu0 %3169
        %v3171 = vadd.f32 %v2909, %v2911
        %v3172 = vadd.f32 %v3171, %v2913
        %v3173 = vadd.f32 %v3172, %v2915
        %3174 = vadd.xlane.f32.xlu0 %v3173
        %v3175 = vpop.xlane.xlu0 %3174
        %v3176 = vadd.f32 %v2917, %v2919
        %v3177 = vadd.f32 %v3176, %v2921
        %v3178 = vadd.f32 %v3177, %v2923
        %3179 = vadd.xlane.f32.xlu0 %v3178
        %v3180 = vpop.xlane.xlu0 %3179
        %v3181 = vadd.f32 %v2925, %v2927
        %v3182 = vadd.f32 %v3181, %v2929
        %v3183 = vadd.f32 %v3182, %v2931
        %3184 = vadd.xlane.f32.xlu0 %v3183
        %v3185 = vpop.xlane.xlu0 %3184
        %v3186 = vadd.f32 %v2933, %v2935
        %v3187 = vadd.f32 %v3186, %v2937
        %v3188 = vadd.f32 %v3187, %v2939
        %3189 = vadd.xlane.f32.xlu0 %v3188
        %v3190 = vpop.xlane.xlu0 %3189
        %v3191 = vadd.f32 %v2941, %v2943
        %v3192 = vadd.f32 %v3191, %v2945
        %v3193 = vadd.f32 %v3192, %v2947
        %3194 = vadd.xlane.f32.xlu0 %v3193
        %v3195 = vpop.xlane.xlu0 %3194
        %v3196 = vadd.f32 %v2949, %v2951
        %v3197 = vadd.f32 %v3196, %v2953
        %v3198 = vadd.f32 %v3197, %v2955
        %3199 = vadd.xlane.f32.xlu0 %v3198
        %v3200 = vpop.xlane.xlu0 %3199
        %v3201 = vadd.f32 %v2957, %v2959
        %v3202 = vadd.f32 %v3201, %v2961
        %v3203 = vadd.f32 %v3202, %v2963
        %3204 = vadd.xlane.f32.xlu0 %v3203
        %v3205 = vpop.xlane.xlu0 %3204
        %v3206 = vadd.f32 %v2965, %v2967
        %v3207 = vadd.f32 %v3206, %v2969
        %v3208 = vadd.f32 %v3207, %v2971
        %3209 = vadd.xlane.f32.xlu0 %v3208
        %v3210 = vpop.xlane.xlu0 %3209
        %v3211 = vadd.f32 %v2973, %v2975
        %v3212 = vadd.f32 %v3211, %v2977
        %v3213 = vadd.f32 %v3212, %v2979
        %3214 = vadd.xlane.f32.xlu0 %v3213
        %v3215 = vpop.xlane.xlu0 %3214
        %v3216 = vadd.f32 %v2981, %v2983
        %v3217 = vadd.f32 %v3216, %v2985
        %v3218 = vadd.f32 %v3217, %v2987
        %3219 = vadd.xlane.f32.xlu0 %v3218
        %v3220 = vpop.xlane.xlu0 %3219
        %v3221 = vadd.f32 %v2989, %v2991
        %v3222 = vadd.f32 %v3221, %v2993
        %v3223 = vadd.f32 %v3222, %v2995
        %3224 = vadd.xlane.f32.xlu0 %v3223
        %v3225 = vpop.xlane.xlu0 %3224
        %v3226 = vadd.f32 %v2997, %v2999
        %v3227 = vadd.f32 %v3226, %v3001
        %v3228 = vadd.f32 %v3227, %v3003
        %3229 = vadd.xlane.f32.xlu0 %v3228
        %v3230 = vpop.xlane.xlu0 %3229
        %v3231 = vadd.f32 %v3005, %v3007
        %v3232 = vadd.f32 %v3231, %v3009
        %v3233 = vadd.f32 %v3232, %v3011
        %3234 = vadd.xlane.f32.xlu0 %v3233
        %v3235 = vpop.xlane.xlu0 %3234
        %v3236 = vadd.f32 %v3044, %v3080
        %v3237 = vadd.f32 %v3045, %v3085
        %v3238 = vadd.f32 %v3046, %v3090
        %v3239 = vadd.f32 %v3047, %v3095
        %v3240 = vadd.f32 %v3048, %v3100
        %v3241 = vadd.f32 %v3049, %v3105
        %v3242 = vadd.f32 %v3050, %v3110
        %v3243 = vadd.f32 %v3051, %v3115
        %v3244 = vadd.f32 %v3052, %v3120
        %v3245 = vadd.f32 %v3053, %v3125
        %v3246 = vadd.f32 %v3054, %v3130
        %v3247 = vadd.f32 %v3055, %v3135
        %v3248 = vadd.f32 %v3056, %v3140
        %v3249 = vadd.f32 %v3057, %v3145
        %v3250 = vadd.f32 %v3058, %v3150
        %v3251 = vadd.f32 %v3059, %v3155
        %v3252 = vadd.f32 %v3060, %v3160
        %v3253 = vadd.f32 %v3061, %v3165
        %v3254 = vadd.f32 %v3062, %v3170
        %v3255 = vadd.f32 %v3063, %v3175
        %v3256 = vadd.f32 %v3064, %v3180
        %v3257 = vadd.f32 %v3065, %v3185
        %v3258 = vadd.f32 %v3066, %v3190
        %v3259 = vadd.f32 %v3067, %v3195
        %v3260 = vadd.f32 %v3068, %v3200
        %v3261 = vadd.f32 %v3069, %v3205
        %v3262 = vadd.f32 %v3070, %v3210
        %v3263 = vadd.f32 %v3071, %v3215
        %v3264 = vadd.f32 %v3072, %v3220
        %v3265 = vadd.f32 %v3073, %v3225
        %v3266 = vadd.f32 %v3074, %v3230
        %v3267 = vadd.f32 %v3075, %v3235
        %vm3268 = vcmask 7168
        %3269 = vst.msk [vmem:[#allocation4] sm:$0xff] %vm3268, %v3236
        %3270 = vst.msk [vmem:[#allocation4 + $0x8] sm:$0xff] %vm3268, %v3237
        %3271 = vst.msk [vmem:[#allocation4 + $0x10] sm:$0xff] %vm3268, %v3238
        %3272 = vst.msk [vmem:[#allocation4 + $0x18] sm:$0xff] %vm3268, %v3239
        %3273 = vst.msk [vmem:[#allocation4 + $0x20] sm:$0xff] %vm3268, %v3240
        %3274 = vst.msk [vmem:[#allocation4 + $0x28] sm:$0xff] %vm3268, %v3241
        %3275 = vst.msk [vmem:[#allocation4 + $0x30] sm:$0xff] %vm3268, %v3242
        %3276 = vst.msk [vmem:[#allocation4 + $0x38] sm:$0xff] %vm3268, %v3243
        %3277 = vst.msk [vmem:[#allocation4 + $0x40] sm:$0xff] %vm3268, %v3244
        %3278 = vst.msk [vmem:[#allocation4 + $0x48] sm:$0xff] %vm3268, %v3245
        %3279 = vst.msk [vmem:[#allocation4 + $0x50] sm:$0xff] %vm3268, %v3246
        %3280 = vst.msk [vmem:[#allocation4 + $0x58] sm:$0xff] %vm3268, %v3247
        %3281 = vst.msk [vmem:[#allocation4 + $0x60] sm:$0xff] %vm3268, %v3248
        %3282 = vst.msk [vmem:[#allocation4 + $0x68] sm:$0xff] %vm3268, %v3249
        %3283 = vst.msk [vmem:[#allocation4 + $0x70] sm:$0xff] %vm3268, %v3250
        %3284 = vst.msk [vmem:[#allocation4 + $0x78] sm:$0xff] %vm3268, %v3251
        %3285 = vst.msk [vmem:[#allocation4 + $0x80] sm:$0xff] %vm3268, %v3252
        %3286 = vst.msk [vmem:[#allocation4 + $0x88] sm:$0xff] %vm3268, %v3253
        %3287 = vst.msk [vmem:[#allocation4 + $0x90] sm:$0xff] %vm3268, %v3254
        %3288 = vst.msk [vmem:[#allocation4 + $0x98] sm:$0xff] %vm3268, %v3255
        %3289 = vst.msk [vmem:[#allocation4 + $0xa0] sm:$0xff] %vm3268, %v3256
        %3290 = vst.msk [vmem:[#allocation4 + $0xa8] sm:$0xff] %vm3268, %v3257
        %3291 = vst.msk [vmem:[#allocation4 + $0xb0] sm:$0xff] %vm3268, %v3258
        %3292 = vst.msk [vmem:[#allocation4 + $0xb8] sm:$0xff] %vm3268, %v3259
        %3293 = vst.msk [vmem:[#allocation4 + $0xc0] sm:$0xff] %vm3268, %v3260
        %3294 = vst.msk [vmem:[#allocation4 + $0xc8] sm:$0xff] %vm3268, %v3261
        %3295 = vst.msk [vmem:[#allocation4 + $0xd0] sm:$0xff] %vm3268, %v3262
        %3296 = vst.msk [vmem:[#allocation4 + $0xd8] sm:$0xff] %vm3268, %v3263
        %3297 = vst.msk [vmem:[#allocation4 + $0xe0] sm:$0xff] %vm3268, %v3264
        %3298 = vst.msk [vmem:[#allocation4 + $0xe8] sm:$0xff] %vm3268, %v3265
        %3299 = vst.msk [vmem:[#allocation4 + $0xf0] sm:$0xff] %vm3268, %v3266
        %3300 = vst.msk [vmem:[#allocation4 + $0xf8] sm:$0xff] %vm3268, %v3267
        %v3301 = vld [vmem:[#allocation5] sm:$0xff]
        %v3302 = vld [vmem:[#allocation5 + $0x8] sm:$0xff]
        %v3303 = vld [vmem:[#allocation5 + $0x10] sm:$0xff]
        %v3304 = vld [vmem:[#allocation5 + $0x18] sm:$0xff]
        %v3305 = vld [vmem:[#allocation5 + $0x20] sm:$0xff]
        %v3306 = vld [vmem:[#allocation5 + $0x28] sm:$0xff]
        %v3307 = vld [vmem:[#allocation5 + $0x30] sm:$0xff]
        %v3308 = vld [vmem:[#allocation5 + $0x38] sm:$0xff]
        %v3309 = vld [vmem:[#allocation5 + $0x40] sm:$0xff]
        %v3310 = vld [vmem:[#allocation5 + $0x48] sm:$0xff]
        %v3311 = vld [vmem:[#allocation5 + $0x50] sm:$0xff]
        %v3312 = vld [vmem:[#allocation5 + $0x58] sm:$0xff]
        %v3313 = vld [vmem:[#allocation5 + $0x60] sm:$0xff]
        %v3314 = vld [vmem:[#allocation5 + $0x68] sm:$0xff]
        %v3315 = vld [vmem:[#allocation5 + $0x70] sm:$0xff]
        %v3316 = vld [vmem:[#allocation5 + $0x78] sm:$0xff]
        %v3317 = vld [vmem:[#allocation5 + $0x80] sm:$0xff]
        %v3318 = vld [vmem:[#allocation5 + $0x88] sm:$0xff]
        %v3319 = vld [vmem:[#allocation5 + $0x90] sm:$0xff]
        %v3320 = vld [vmem:[#allocation5 + $0x98] sm:$0xff]
        %v3321 = vld [vmem:[#allocation5 + $0xa0] sm:$0xff]
        %v3322 = vld [vmem:[#allocation5 + $0xa8] sm:$0xff]
        %v3323 = vld [vmem:[#allocation5 + $0xb0] sm:$0xff]
        %v3324 = vld [vmem:[#allocation5 + $0xb8] sm:$0xff]
        %v3325 = vld [vmem:[#allocation5 + $0xc0] sm:$0xff]
        %v3326 = vld [vmem:[#allocation5 + $0xc8] sm:$0xff]
        %v3327 = vld [vmem:[#allocation5 + $0xd0] sm:$0xff]
        %v3328 = vld [vmem:[#allocation5 + $0xd8] sm:$0xff]
        %v3329 = vld [vmem:[#allocation5 + $0xe0] sm:$0xff]
        %v3330 = vld [vmem:[#allocation5 + $0xe8] sm:$0xff]
        %v3331 = vld [vmem:[#allocation5 + $0xf0] sm:$0xff]
        %v3332 = vld [vmem:[#allocation5 + $0xf8] sm:$0xff]
        %3334 = vset.pattern.permute.xlu0 0
        %3335 = vperm.xlu0 %3334, %v2405
        %v3336 = vpop.permute.xlu0 %3335
        %3339 = vset.pattern.permute.xlu0 0
        %3340 = vperm.xlu0 %3339, %v2407
        %v3341 = vpop.permute.xlu0 %3340
        %3344 = vset.pattern.permute.xlu0 0
        %3345 = vperm.xlu0 %3344, %v2409
        %v3346 = vpop.permute.xlu0 %3345
        %3349 = vset.pattern.permute.xlu0 0
        %3350 = vperm.xlu0 %3349, %v2411
        %v3351 = vpop.permute.xlu0 %3350
        %3354 = vset.pattern.permute.xlu0 0
        %3355 = vperm.xlu0 %3354, %v2413
        %v3356 = vpop.permute.xlu0 %3355
        %3359 = vset.pattern.permute.xlu0 0
        %3360 = vperm.xlu0 %3359, %v2415
        %v3361 = vpop.permute.xlu0 %3360
        %3364 = vset.pattern.permute.xlu0 0
        %3365 = vperm.xlu0 %3364, %v2417
        %v3366 = vpop.permute.xlu0 %3365
        %3369 = vset.pattern.permute.xlu0 0
        %3370 = vperm.xlu0 %3369, %v2419
        %v3371 = vpop.permute.xlu0 %3370
        %3374 = vset.pattern.permute.xlu0 0
        %3375 = vperm.xlu0 %3374, %v2421
        %v3376 = vpop.permute.xlu0 %3375
        %3379 = vset.pattern.permute.xlu0 0
        %3380 = vperm.xlu0 %3379, %v2423
        %v3381 = vpop.permute.xlu0 %3380
        %3384 = vset.pattern.permute.xlu0 0
        %3385 = vperm.xlu0 %3384, %v2425
        %v3386 = vpop.permute.xlu0 %3385
        %3389 = vset.pattern.permute.xlu0 0
        %3390 = vperm.xlu0 %3389, %v2427
        %v3391 = vpop.permute.xlu0 %3390
        %3394 = vset.pattern.permute.xlu0 0
        %3395 = vperm.xlu0 %3394, %v2429
        %v3396 = vpop.permute.xlu0 %3395
        %3399 = vset.pattern.permute.xlu0 0
        %3400 = vperm.xlu0 %3399, %v2431
        %v3401 = vpop.permute.xlu0 %3400
        %3404 = vset.pattern.permute.xlu0 0
        %3405 = vperm.xlu0 %3404, %v2433
        %v3406 = vpop.permute.xlu0 %3405
        %3409 = vset.pattern.permute.xlu0 0
        %3410 = vperm.xlu0 %3409, %v2435
        %v3411 = vpop.permute.xlu0 %3410
        %3414 = vset.pattern.permute.xlu0 0
        %3415 = vperm.xlu0 %3414, %v2437
        %v3416 = vpop.permute.xlu0 %3415
        %3419 = vset.pattern.permute.xlu0 0
        %3420 = vperm.xlu0 %3419, %v2439
        %v3421 = vpop.permute.xlu0 %3420
        %3424 = vset.pattern.permute.xlu0 0
        %3425 = vperm.xlu0 %3424, %v2441
        %v3426 = vpop.permute.xlu0 %3425
        %3429 = vset.pattern.permute.xlu0 0
        %3430 = vperm.xlu0 %3429, %v2443
        %v3431 = vpop.permute.xlu0 %3430
        %3434 = vset.pattern.permute.xlu0 0
        %3435 = vperm.xlu0 %3434, %v2445
        %v3436 = vpop.permute.xlu0 %3435
        %3439 = vset.pattern.permute.xlu0 0
        %3440 = vperm.xlu0 %3439, %v2447
        %v3441 = vpop.permute.xlu0 %3440
        %3444 = vset.pattern.permute.xlu0 0
        %3445 = vperm.xlu0 %3444, %v2449
        %v3446 = vpop.permute.xlu0 %3445
        %3449 = vset.pattern.permute.xlu0 0
        %3450 = vperm.xlu0 %3449, %v2451
        %v3451 = vpop.permute.xlu0 %3450
        %3454 = vset.pattern.permute.xlu0 0
        %3455 = vperm.xlu0 %3454, %v2453
        %v3456 = vpop.permute.xlu0 %3455
        %3459 = vset.pattern.permute.xlu0 0
        %3460 = vperm.xlu0 %3459, %v2455
        %v3461 = vpop.permute.xlu0 %3460
        %3464 = vset.pattern.permute.xlu0 0
        %3465 = vperm.xlu0 %3464, %v2457
        %v3466 = vpop.permute.xlu0 %3465
        %3469 = vset.pattern.permute.xlu0 0
        %3470 = vperm.xlu0 %3469, %v2459
        %v3471 = vpop.permute.xlu0 %3470
        %3474 = vset.pattern.permute.xlu0 0
        %3475 = vperm.xlu0 %3474, %v2461
        %v3476 = vpop.permute.xlu0 %3475
        %3479 = vset.pattern.permute.xlu0 0
        %3480 = vperm.xlu0 %3479, %v2463
        %v3481 = vpop.permute.xlu0 %3480
        %3484 = vset.pattern.permute.xlu0 0
        %3485 = vperm.xlu0 %3484, %v2465
        %v3486 = vpop.permute.xlu0 %3485
        %3489 = vset.pattern.permute.xlu0 0
        %3490 = vperm.xlu0 %3489, %v2467
        %v3491 = vpop.permute.xlu0 %3490
        %v3493 = vmul.f32 %v3336, %v3301
        %v3494 = vmul.f32 %v3341, %v3302
        %v3495 = vmul.f32 %v3346, %v3303
        %v3496 = vmul.f32 %v3351, %v3304
        %v3497 = vmul.f32 %v3356, %v3305
        %v3498 = vmul.f32 %v3361, %v3306
        %v3499 = vmul.f32 %v3366, %v3307
        %v3500 = vmul.f32 %v3371, %v3308
        %v3501 = vmul.f32 %v3376, %v3309
        %v3502 = vmul.f32 %v3381, %v3310
        %v3503 = vmul.f32 %v3386, %v3311
        %v3504 = vmul.f32 %v3391, %v3312
        %v3505 = vmul.f32 %v3396, %v3313
        %v3506 = vmul.f32 %v3401, %v3314
        %v3507 = vmul.f32 %v3406, %v3315
        %v3508 = vmul.f32 %v3411, %v3316
        %v3509 = vmul.f32 %v3416, %v3317
        %v3510 = vmul.f32 %v3421, %v3318
        %v3511 = vmul.f32 %v3426, %v3319
        %v3512 = vmul.f32 %v3431, %v3320
        %v3513 = vmul.f32 %v3436, %v3321
        %v3514 = vmul.f32 %v3441, %v3322
        %v3515 = vmul.f32 %v3446, %v3323
        %v3516 = vmul.f32 %v3451, %v3324
        %v3517 = vmul.f32 %v3456, %v3325
        %v3518 = vmul.f32 %v3461, %v3326
        %v3519 = vmul.f32 %v3466, %v3327
        %v3520 = vmul.f32 %v3471, %v3328
        %v3521 = vmul.f32 %v3476, %v3329
        %v3522 = vmul.f32 %v3481, %v3330
        %v3523 = vmul.f32 %v3486, %v3331
        %v3524 = vmul.f32 %v3491, %v3332
        %v3525 = vpack.c.bf16 %v2765, %v2757
        %v3526 = vpack.c.bf16 %v2767, %v2759
        %v3527 = vpack.c.bf16 %v2769, %v2761
        %v3528 = vpack.c.bf16 %v2771, %v2763
        %v3529 = vpack.c.bf16 %v2781, %v2773
        %v3530 = vpack.c.bf16 %v2783, %v2775
        %v3531 = vpack.c.bf16 %v2785, %v2777
        %v3532 = vpack.c.bf16 %v2787, %v2779
        %v3533 = vpack.c.bf16 %v2797, %v2789
        %v3534 = vpack.c.bf16 %v2799, %v2791
        %v3535 = vpack.c.bf16 %v2801, %v2793
        %v3536 = vpack.c.bf16 %v2803, %v2795
        %v3537 = vpack.c.bf16 %v2813, %v2805
        %v3538 = vpack.c.bf16 %v2815, %v2807
        %v3539 = vpack.c.bf16 %v2817, %v2809
        %v3540 = vpack.c.bf16 %v2819, %v2811
        %v3541 = vpack.c.bf16 %v2829, %v2821
        %v3542 = vpack.c.bf16 %v2831, %v2823
        %v3543 = vpack.c.bf16 %v2833, %v2825
        %v3544 = vpack.c.bf16 %v2835, %v2827
        %v3545 = vpack.c.bf16 %v2845, %v2837
        %v3546 = vpack.c.bf16 %v2847, %v2839
        %v3547 = vpack.c.bf16 %v2849, %v2841
        %v3548 = vpack.c.bf16 %v2851, %v2843
        %v3549 = vpack.c.bf16 %v2861, %v2853
        %v3550 = vpack.c.bf16 %v2863, %v2855
        %v3551 = vpack.c.bf16 %v2865, %v2857
        %v3552 = vpack.c.bf16 %v2867, %v2859
        %v3553 = vpack.c.bf16 %v2877, %v2869
        %v3554 = vpack.c.bf16 %v2879, %v2871
        %v3555 = vpack.c.bf16 %v2881, %v2873
        %v3556 = vpack.c.bf16 %v2883, %v2875
        %v3557 = vpack.c.bf16 %v2893, %v2885
        %v3558 = vpack.c.bf16 %v2895, %v2887
        %v3559 = vpack.c.bf16 %v2897, %v2889
        %v3560 = vpack.c.bf16 %v2899, %v2891
        %v3561 = vpack.c.bf16 %v2909, %v2901
        %v3562 = vpack.c.bf16 %v2911, %v2903
        %v3563 = vpack.c.bf16 %v2913, %v2905
        %v3564 = vpack.c.bf16 %v2915, %v2907
        %v3565 = vpack.c.bf16 %v2925, %v2917
        %v3566 = vpack.c.bf16 %v2927, %v2919
        %v3567 = vpack.c.bf16 %v2929, %v2921
        %v3568 = vpack.c.bf16 %v2931, %v2923
        %v3569 = vpack.c.bf16 %v2941, %v2933
        %v3570 = vpack.c.bf16 %v2943, %v2935
        %v3571 = vpack.c.bf16 %v2945, %v2937
        %v3572 = vpack.c.bf16 %v2947, %v2939
        %v3573 = vpack.c.bf16 %v2957, %v2949
        %v3574 = vpack.c.bf16 %v2959, %v2951
        %v3575 = vpack.c.bf16 %v2961, %v2953
        %v3576 = vpack.c.bf16 %v2963, %v2955
        %v3577 = vpack.c.bf16 %v2973, %v2965
        %v3578 = vpack.c.bf16 %v2975, %v2967
        %v3579 = vpack.c.bf16 %v2977, %v2969
        %v3580 = vpack.c.bf16 %v2979, %v2971
        %v3581 = vpack.c.bf16 %v2989, %v2981
        %v3582 = vpack.c.bf16 %v2991, %v2983
        %v3583 = vpack.c.bf16 %v2993, %v2985
        %v3584 = vpack.c.bf16 %v2995, %v2987
        %v3585 = vpack.c.bf16 %v3005, %v2997
        %v3586 = vpack.c.bf16 %v3007, %v2999
        %v3587 = vpack.c.bf16 %v3009, %v3001
        %v3588 = vpack.c.bf16 %v3011, %v3003
        %3589 = vmatprep.subr.bf16.mxu0 0
        %3590 = vmatpush1.bf16.msra.mxu0 %v1714
        %3591 = vmatprep.subr.bf16.mxu0 0
        %3592 = vmatpush1.bf16.msra.mxu0 %v1715
        %3593 = vmatprep.subr.bf16.mxu0 0
        %3594 = vmatpush1.bf16.msra.mxu0 %v1716
        %3595 = vmatprep.subr.bf16.mxu0 0
        %3596 = vmatpush1.bf16.msra.mxu0 %v1717
        %3597 = vmatprep.subr.bf16.mxu0 0
        %3598 = vmatpush1.bf16.msra.mxu0 %v1718
        %3599 = vmatprep.subr.bf16.mxu0 0
        %3600 = vmatpush1.bf16.msra.mxu0 %v1719
        %3601 = vmatprep.subr.bf16.mxu0 0
        %3602 = vmatpush1.bf16.msra.mxu0 %v1720
        %3603 = vmatprep.subr.bf16.mxu0 0
        %3604 = vmatpush1.bf16.msra.mxu0 %v1721
        %3605 = vmatprep.subr.bf16.mxu0 0
        %3606 = vmatpush1.bf16.msra.mxu0 %v1722
        %3607 = vmatprep.subr.bf16.mxu0 0
        %3608 = vmatpush1.bf16.msra.mxu0 %v1723
        %3609 = vmatprep.subr.bf16.mxu0 0
        %3610 = vmatpush1.bf16.msra.mxu0 %v1724
        %3611 = vmatprep.subr.bf16.mxu0 0
        %3612 = vmatpush1.bf16.msra.mxu0 %v1725
        %3613 = vmatprep.subr.bf16.mxu0 0
        %3614 = vmatpush1.bf16.msra.mxu0 %v1726
        %3615 = vmatprep.subr.bf16.mxu0 0
        %3616 = vmatpush1.bf16.msra.mxu0 %v1727
        %3617 = vmatprep.subr.bf16.mxu0 0
        %3618 = vmatpush1.bf16.msra.mxu0 %v1728
        %3619 = vmatprep.subr.bf16.mxu0 0
        %3620 = vmatpush1.bf16.msra.mxu0 %v1729
        %3621 = vmatprep.mubr.bf16.mxu0 %v3526
        %3622 = vmatmul.mubr.bf16.gmra.mrb[0].mxu0 %v3525
        %v3623 = vpop.f32.mrb[0].mxu0
        %v3624 = vadd.f32 0.0, %v3623
        %v3625 = vpop.f32.mrb[0].mxu0
        %v3626 = vpop.f32.mrb[0].mxu0
        %v3627 = vadd.f32 0.0, %v3626
        %v3628 = vpop.f32.mrb[0].mxu0
        %3629 = vmatprep.mubr.bf16.mxu0 %v3530
        %3630 = vmatmul.mubr.bf16.gmra.mrb[0].mxu0 %v3529
        %v3631 = vpop.f32.mrb[0].mxu0
        %v3632 = vadd.f32 0.0, %v3631
        %v3633 = vpop.f32.mrb[0].mxu0
        %v3634 = vpop.f32.mrb[0].mxu0
        %v3635 = vadd.f32 0.0, %v3634
        %v3636 = vpop.f32.mrb[0].mxu0
        %3637 = vmatprep.mubr.bf16.mxu0 %v3534
        %3638 = vmatmul.mubr.bf16.gmra.mrb[0].mxu0 %v3533
        %v3639 = vpop.f32.mrb[0].mxu0
        %v3640 = vadd.f32 0.0, %v3639
        %v3641 = vpop.f32.mrb[0].mxu0
        %v3642 = vpop.f32.mrb[0].mxu0
        %v3643 = vadd.f32 0.0, %v3642
        %v3644 = vpop.f32.mrb[0].mxu0
        %3645 = vmatprep.mubr.bf16.mxu0 %v3538
        %3646 = vmatmul.mubr.bf16.gmra.mrb[0].mxu0 %v3537
        %v3647 = vpop.f32.mrb[0].mxu0
        %v3648 = vadd.f32 0.0, %v3647
        %v3649 = vpop.f32.mrb[0].mxu0
        %v3650 = vpop.f32.mrb[0].mxu0
        %v3651 = vadd.f32 0.0, %v3650
        %v3652 = vpop.f32.mrb[0].mxu0
        %3653 = vmatprep.mubr.bf16.mxu0 %v3542
        %3654 = vmatmul.mubr.bf16.gmra.mrb[0].mxu0 %v3541
        %v3655 = vpop.f32.mrb[0].mxu0
        %v3656 = vadd.f32 0.0, %v3655
        %v3657 = vpop.f32.mrb[0].mxu0
        %v3658 = vpop.f32.mrb[0].mxu0
        %v3659 = vadd.f32 0.0, %v3658
        %v3660 = vpop.f32.mrb[0].mxu0
        %3661 = vmatprep.mubr.bf16.mxu0 %v3546
        %3662 = vmatmul.mubr.bf16.gmra.mrb[0].mxu0 %v3545
        %v3663 = vpop.f32.mrb[0].mxu0
        %v3664 = vadd.f32 0.0, %v3663
        %v3665 = vpop.f32.mrb[0].mxu0
        %v3666 = vpop.f32.mrb[0].mxu0
        %v3667 = vadd.f32 0.0, %v3666
        %v3668 = vpop.f32.mrb[0].mxu0
        %3669 = vmatprep.mubr.bf16.mxu0 %v3550
        %3670 = vmatmul.mubr.bf16.gmra.mrb[0].mxu0 %v3549
        %v3671 = vpop.f32.mrb[0].mxu0
        %v3672 = vadd.f32 0.0, %v3671
        %v3673 = vpop.f32.mrb[0].mxu0
        %v3674 = vpop.f32.mrb[0].mxu0
        %v3675 = vadd.f32 0.0, %v3674
        %v3676 = vpop.f32.mrb[0].mxu0
        %3677 = vmatprep.mubr.bf16.mxu0 %v3554
        %3678 = vmatmul.mubr.bf16.gmra.mrb[0].mxu0 %v3553
        %v3679 = vpop.f32.mrb[0].mxu0
        %v3680 = vadd.f32 0.0, %v3679
        %v3681 = vpop.f32.mrb[0].mxu0
        %v3682 = vpop.f32.mrb[0].mxu0
        %v3683 = vadd.f32 0.0, %v3682
        %v3684 = vpop.f32.mrb[0].mxu0
        %3685 = vmatprep.mubr.bf16.mxu0 %v3558
        %3686 = vmatmul.mubr.bf16.gmra.mrb[0].mxu0 %v3557
        %v3687 = vpop.f32.mrb[0].mxu0
        %v3688 = vadd.f32 0.0, %v3687
        %v3689 = vpop.f32.mrb[0].mxu0
        %v3690 = vpop.f32.mrb[0].mxu0
        %v3691 = vadd.f32 0.0, %v3690
        %v3692 = vpop.f32.mrb[0].mxu0
        %3693 = vmatprep.mubr.bf16.mxu0 %v3562
        %3694 = vmatmul.mubr.bf16.gmra.mrb[0].mxu0 %v3561
        %v3695 = vpop.f32.mrb[0].mxu0
        %v3696 = vadd.f32 0.0, %v3695
        %v3697 = vpop.f32.mrb[0].mxu0
        %v3698 = vpop.f32.mrb[0].mxu0
        %v3699 = vadd.f32 0.0, %v3698
        %v3700 = vpop.f32.mrb[0].mxu0
        %3701 = vmatprep.mubr.bf16.mxu0 %v3566
        %3702 = vmatmul.mubr.bf16.gmra.mrb[0].mxu0 %v3565
        %v3703 = vpop.f32.mrb[0].mxu0
        %v3704 = vadd.f32 0.0, %v3703
        %v3705 = vpop.f32.mrb[0].mxu0
        %v3706 = vpop.f32.mrb[0].mxu0
        %v3707 = vadd.f32 0.0, %v3706
        %v3708 = vpop.f32.mrb[0].mxu0
        %3709 = vmatprep.mubr.bf16.mxu0 %v3570
        %3710 = vmatmul.mubr.bf16.gmra.mrb[0].mxu0 %v3569
        %v3711 = vpop.f32.mrb[0].mxu0
        %v3712 = vadd.f32 0.0, %v3711
        %v3713 = vpop.f32.mrb[0].mxu0
        %v3714 = vpop.f32.mrb[0].mxu0
        %v3715 = vadd.f32 0.0, %v3714
        %v3716 = vpop.f32.mrb[0].mxu0
        %3717 = vmatprep.mubr.bf16.mxu0 %v3574
        %3718 = vmatmul.mubr.bf16.gmra.mrb[0].mxu0 %v3573
        %v3719 = vpop.f32.mrb[0].mxu0
        %v3720 = vadd.f32 0.0, %v3719
        %v3721 = vpop.f32.mrb[0].mxu0
        %v3722 = vpop.f32.mrb[0].mxu0
        %v3723 = vadd.f32 0.0, %v3722
        %v3724 = vpop.f32.mrb[0].mxu0
        %3725 = vmatprep.mubr.bf16.mxu0 %v3578
        %3726 = vmatmul.mubr.bf16.gmra.mrb[0].mxu0 %v3577
        %v3727 = vpop.f32.mrb[0].mxu0
        %v3728 = vadd.f32 0.0, %v3727
        %v3729 = vpop.f32.mrb[0].mxu0
        %v3730 = vpop.f32.mrb[0].mxu0
        %v3731 = vadd.f32 0.0, %v3730
        %v3732 = vpop.f32.mrb[0].mxu0
        %3733 = vmatprep.mubr.bf16.mxu0 %v3582
        %3734 = vmatmul.mubr.bf16.gmra.mrb[0].mxu0 %v3581
        %v3735 = vpop.f32.mrb[0].mxu0
        %v3736 = vadd.f32 0.0, %v3735
        %v3737 = vpop.f32.mrb[0].mxu0
        %v3738 = vpop.f32.mrb[0].mxu0
        %v3739 = vadd.f32 0.0, %v3738
        %v3740 = vpop.f32.mrb[0].mxu0
        %3741 = vmatprep.mubr.bf16.mxu0 %v3586
        %3742 = vmatmul.mubr.bf16.gmra.mrb[0].mxu0 %v3585
        %v3743 = vpop.f32.mrb[0].mxu0
        %v3744 = vadd.f32 0.0, %v3743
        %v3745 = vpop.f32.mrb[0].mxu0
        %v3746 = vpop.f32.mrb[0].mxu0
        %v3747 = vadd.f32 0.0, %v3746
        %v3748 = vpop.f32.mrb[0].mxu0
        %3749 = vdwg.mxu0
        %3750 = vmatprep.subr.bf16.mxu0 0
        %3751 = vmatpush1.bf16.msra.mxu0 %v1730
        %3752 = vmatprep.subr.bf16.mxu0 0
        %3753 = vmatpush1.bf16.msra.mxu0 %v1731
        %3754 = vmatprep.subr.bf16.mxu0 0
        %3755 = vmatpush1.bf16.msra.mxu0 %v1732
        %3756 = vmatprep.subr.bf16.mxu0 0
        %3757 = vmatpush1.bf16.msra.mxu0 %v1733
        %3758 = vmatprep.subr.bf16.mxu0 0
        %3759 = vmatpush1.bf16.msra.mxu0 %v1734
        %3760 = vmatprep.subr.bf16.mxu0 0
        %3761 = vmatpush1.bf16.msra.mxu0 %v1735
        %3762 = vmatprep.subr.bf16.mxu0 0
        %3763 = vmatpush1.bf16.msra.mxu0 %v1736
        %3764 = vmatprep.subr.bf16.mxu0 0
        %3765 = vmatpush1.bf16.msra.mxu0 %v1737
        %3766 = vmatprep.subr.bf16.mxu0 0
        %3767 = vmatpush1.bf16.msra.mxu0 %v1738
        %3768 = vmatprep.subr.bf16.mxu0 0
        %3769 = vmatpush1.bf16.msra.mxu0 %v1739
        %3770 = vmatprep.subr.bf16.mxu0 0
        %3771 = vmatpush1.bf16.msra.mxu0 %v1740
        %3772 = vmatprep.subr.bf16.mxu0 0
        %3773 = vmatpush1.bf16.msra.mxu0 %v1741
        %3774 = vmatprep.subr.bf16.mxu0 0
        %3775 = vmatpush1.bf16.msra.mxu0 %v1742
        %3776 = vmatprep.subr.bf16.mxu0 0
        %3777 = vmatpush1.bf16.msra.mxu0 %v1743
        %3778 = vmatprep.subr.bf16.mxu0 0
        %3779 = vmatpush1.bf16.msra.mxu0 %v1744
        %3780 = vmatprep.subr.bf16.mxu0 0
        %3781 = vmatpush1.bf16.msra.mxu0 %v1745
        %3782 = vmatprep.mubr.bf16.mxu0 %v3528
        %3783 = vmatmul.mubr.bf16.gmra.mrb[0].mxu0 %v3527
        %v3784 = vpop.f32.mrb[0].mxu0
        %v3785 = vadd.f32 %v3624, %v3784
        %v3786 = vpop.f32.mrb[0].mxu0
        %v3787 = vpop.f32.mrb[0].mxu0
        %v3788 = vadd.f32 %v3627, %v3787
        %v3789 = vpop.f32.mrb[0].mxu0
        %3790 = vmatprep.mubr.bf16.mxu0 %v3532
        %3791 = vmatmul.mubr.bf16.gmra.mrb[0].mxu0 %v3531
        %v3792 = vpop.f32.mrb[0].mxu0
        %v3793 = vadd.f32 %v3632, %v3792
        %v3794 = vpop.f32.mrb[0].mxu0
        %v3795 = vpop.f32.mrb[0].mxu0
        %v3796 = vadd.f32 %v3635, %v3795
        %v3797 = vpop.f32.mrb[0].mxu0
        %3798 = vmatprep.mubr.bf16.mxu0 %v3536
        %3799 = vmatmul.mubr.bf16.gmra.mrb[0].mxu0 %v3535
        %v3800 = vpop.f32.mrb[0].mxu0
        %v3801 = vadd.f32 %v3640, %v3800
        %v3802 = vpop.f32.mrb[0].mxu0
        %v3803 = vpop.f32.mrb[0].mxu0
        %v3804 = vadd.f32 %v3643, %v3803
        %v3805 = vpop.f32.mrb[0].mxu0
        %3806 = vmatprep.mubr.bf16.mxu0 %v3540
        %3807 = vmatmul.mubr.bf16.gmra.mrb[0].mxu0 %v3539
        %v3808 = vpop.f32.mrb[0].mxu0
        %v3809 = vadd.f32 %v3648, %v3808
        %v3810 = vpop.f32.mrb[0].mxu0
        %v3811 = vpop.f32.mrb[0].mxu0
        %v3812 = vadd.f32 %v3651, %v3811
        %v3813 = vpop.f32.mrb[0].mxu0
        %3814 = vmatprep.mubr.bf16.mxu0 %v3544
        %3815 = vmatmul.mubr.bf16.gmra.mrb[0].mxu0 %v3543
        %v3816 = vpop.f32.mrb[0].mxu0
        %v3817 = vadd.f32 %v3656, %v3816
        %v3818 = vpop.f32.mrb[0].mxu0
        %v3819 = vpop.f32.mrb[0].mxu0
        %v3820 = vadd.f32 %v3659, %v3819
        %v3821 = vpop.f32.mrb[0].mxu0
        %3822 = vmatprep.mubr.bf16.mxu0 %v3548
        %3823 = vmatmul.mubr.bf16.gmra.mrb[0].mxu0 %v3547
        %v3824 = vpop.f32.mrb[0].mxu0
        %v3825 = vadd.f32 %v3664, %v3824
        %v3826 = vpop.f32.mrb[0].mxu0
        %v3827 = vpop.f32.mrb[0].mxu0
        %v3828 = vadd.f32 %v3667, %v3827
        %v3829 = vpop.f32.mrb[0].mxu0
        %3830 = vmatprep.mubr.bf16.mxu0 %v3552
        %3831 = vmatmul.mubr.bf16.gmra.mrb[0].mxu0 %v3551
        %v3832 = vpop.f32.mrb[0].mxu0
        %v3833 = vadd.f32 %v3672, %v3832
        %v3834 = vpop.f32.mrb[0].mxu0
        %v3835 = vpop.f32.mrb[0].mxu0
        %v3836 = vadd.f32 %v3675, %v3835
        %v3837 = vpop.f32.mrb[0].mxu0
        %3838 = vmatprep.mubr.bf16.mxu0 %v3556
        %3839 = vmatmul.mubr.bf16.gmra.mrb[0].mxu0 %v3555
        %v3840 = vpop.f32.mrb[0].mxu0
        %v3841 = vadd.f32 %v3680, %v3840
        %v3842 = vpop.f32.mrb[0].mxu0
        %v3843 = vpop.f32.mrb[0].mxu0
        %v3844 = vadd.f32 %v3683, %v3843
        %v3845 = vpop.f32.mrb[0].mxu0
        %3846 = vmatprep.mubr.bf16.mxu0 %v3560
        %3847 = vmatmul.mubr.bf16.gmra.mrb[0].mxu0 %v3559
        %v3848 = vpop.f32.mrb[0].mxu0
        %v3849 = vadd.f32 %v3688, %v3848
        %v3850 = vpop.f32.mrb[0].mxu0
        %v3851 = vpop.f32.mrb[0].mxu0
        %v3852 = vadd.f32 %v3691, %v3851
        %v3853 = vpop.f32.mrb[0].mxu0
        %3854 = vmatprep.mubr.bf16.mxu0 %v3564
        %3855 = vmatmul.mubr.bf16.gmra.mrb[0].mxu0 %v3563
        %v3856 = vpop.f32.mrb[0].mxu0
        %v3857 = vadd.f32 %v3696, %v3856
        %v3858 = vpop.f32.mrb[0].mxu0
        %v3859 = vpop.f32.mrb[0].mxu0
        %v3860 = vadd.f32 %v3699, %v3859
        %v3861 = vpop.f32.mrb[0].mxu0
        %3862 = vmatprep.mubr.bf16.mxu0 %v3568
        %3863 = vmatmul.mubr.bf16.gmra.mrb[0].mxu0 %v3567
        %v3864 = vpop.f32.mrb[0].mxu0
        %v3865 = vadd.f32 %v3704, %v3864
        %v3866 = vpop.f32.mrb[0].mxu0
        %v3867 = vpop.f32.mrb[0].mxu0
        %v3868 = vadd.f32 %v3707, %v3867
        %v3869 = vpop.f32.mrb[0].mxu0
        %3870 = vmatprep.mubr.bf16.mxu0 %v3572
        %3871 = vmatmul.mubr.bf16.gmra.mrb[0].mxu0 %v3571
        %v3872 = vpop.f32.mrb[0].mxu0
        %v3873 = vadd.f32 %v3712, %v3872
        %v3874 = vpop.f32.mrb[0].mxu0
        %v3875 = vpop.f32.mrb[0].mxu0
        %v3876 = vadd.f32 %v3715, %v3875
        %v3877 = vpop.f32.mrb[0].mxu0
        %3878 = vmatprep.mubr.bf16.mxu0 %v3576
        %3879 = vmatmul.mubr.bf16.gmra.mrb[0].mxu0 %v3575
        %v3880 = vpop.f32.mrb[0].mxu0
        %v3881 = vadd.f32 %v3720, %v3880
        %v3882 = vpop.f32.mrb[0].mxu0
        %v3883 = vpop.f32.mrb[0].mxu0
        %v3884 = vadd.f32 %v3723, %v3883
        %v3885 = vpop.f32.mrb[0].mxu0
        %3886 = vmatprep.mubr.bf16.mxu0 %v3580
        %3887 = vmatmul.mubr.bf16.gmra.mrb[0].mxu0 %v3579
        %v3888 = vpop.f32.mrb[0].mxu0
        %v3889 = vadd.f32 %v3728, %v3888
        %v3890 = vpop.f32.mrb[0].mxu0
        %v3891 = vpop.f32.mrb[0].mxu0
        %v3892 = vadd.f32 %v3731, %v3891
        %v3893 = vpop.f32.mrb[0].mxu0
        %3894 = vmatprep.mubr.bf16.mxu0 %v3584
        %3895 = vmatmul.mubr.bf16.gmra.mrb[0].mxu0 %v3583
        %v3896 = vpop.f32.mrb[0].mxu0
        %v3897 = vadd.f32 %v3736, %v3896
        %v3898 = vpop.f32.mrb[0].mxu0
        %v3899 = vpop.f32.mrb[0].mxu0
        %v3900 = vadd.f32 %v3739, %v3899
        %v3901 = vpop.f32.mrb[0].mxu0
        %3902 = vmatprep.mubr.bf16.mxu0 %v3588
        %3903 = vmatmul.mubr.bf16.gmra.mrb[0].mxu0 %v3587
        %v3904 = vpop.f32.mrb[0].mxu0
        %v3905 = vadd.f32 %v3744, %v3904
        %v3906 = vpop.f32.mrb[0].mxu0
        %v3907 = vpop.f32.mrb[0].mxu0
        %v3908 = vadd.f32 %v3747, %v3907
        %v3909 = vpop.f32.mrb[0].mxu0
        %3910 = vdwg.mxu0
        %v3911 = vadd.f32 %v3493, %v3785
        %v3912 = vadd.f32 %v3494, %v3788
        %v3913 = vadd.f32 %v3495, %v3793
        %v3914 = vadd.f32 %v3496, %v3796
        %v3915 = vadd.f32 %v3497, %v3801
        %v3916 = vadd.f32 %v3498, %v3804
        %v3917 = vadd.f32 %v3499, %v3809
        %v3918 = vadd.f32 %v3500, %v3812
        %v3919 = vadd.f32 %v3501, %v3817
        %v3920 = vadd.f32 %v3502, %v3820
        %v3921 = vadd.f32 %v3503, %v3825
        %v3922 = vadd.f32 %v3504, %v3828
        %v3923 = vadd.f32 %v3505, %v3833
        %v3924 = vadd.f32 %v3506, %v3836
        %v3925 = vadd.f32 %v3507, %v3841
        %v3926 = vadd.f32 %v3508, %v3844
        %v3927 = vadd.f32 %v3509, %v3849
        %v3928 = vadd.f32 %v3510, %v3852
        %v3929 = vadd.f32 %v3511, %v3857
        %v3930 = vadd.f32 %v3512, %v3860
        %v3931 = vadd.f32 %v3513, %v3865
        %v3932 = vadd.f32 %v3514, %v3868
        %v3933 = vadd.f32 %v3515, %v3873
        %v3934 = vadd.f32 %v3516, %v3876
        %v3935 = vadd.f32 %v3517, %v3881
        %v3936 = vadd.f32 %v3518, %v3884
        %v3937 = vadd.f32 %v3519, %v3889
        %v3938 = vadd.f32 %v3520, %v3892
        %v3939 = vadd.f32 %v3521, %v3897
        %v3940 = vadd.f32 %v3522, %v3900
        %v3941 = vadd.f32 %v3523, %v3905
        %v3942 = vadd.f32 %v3524, %v3908
        %3943 = vst [vmem:[#allocation5] sm:$0xff] %v3911
        %3944 = vst [vmem:[#allocation5 + $0x8] sm:$0xff] %v3912
        %3945 = vst [vmem:[#allocation5 + $0x10] sm:$0xff] %v3913
        %3946 = vst [vmem:[#allocation5 + $0x18] sm:$0xff] %v3914
        %3947 = vst [vmem:[#allocation5 + $0x20] sm:$0xff] %v3915
        %3948 = vst [vmem:[#allocation5 + $0x28] sm:$0xff] %v3916
        %3949 = vst [vmem:[#allocation5 + $0x30] sm:$0xff] %v3917
        %3950 = vst [vmem:[#allocation5 + $0x38] sm:$0xff] %v3918
        %3951 = vst [vmem:[#allocation5 + $0x40] sm:$0xff] %v3919
        %3952 = vst [vmem:[#allocation5 + $0x48] sm:$0xff] %v3920
        %3953 = vst [vmem:[#allocation5 + $0x50] sm:$0xff] %v3921
        %3954 = vst [vmem:[#allocation5 + $0x58] sm:$0xff] %v3922
        %3955 = vst [vmem:[#allocation5 + $0x60] sm:$0xff] %v3923
        %3956 = vst [vmem:[#allocation5 + $0x68] sm:$0xff] %v3924
        %3957 = vst [vmem:[#allocation5 + $0x70] sm:$0xff] %v3925
        %3958 = vst [vmem:[#allocation5 + $0x78] sm:$0xff] %v3926
        %3959 = vst [vmem:[#allocation5 + $0x80] sm:$0xff] %v3927
        %3960 = vst [vmem:[#allocation5 + $0x88] sm:$0xff] %v3928
        %3961 = vst [vmem:[#allocation5 + $0x90] sm:$0xff] %v3929
        %3962 = vst [vmem:[#allocation5 + $0x98] sm:$0xff] %v3930
        %3963 = vst [vmem:[#allocation5 + $0xa0] sm:$0xff] %v3931
        %3964 = vst [vmem:[#allocation5 + $0xa8] sm:$0xff] %v3932
        %3965 = vst [vmem:[#allocation5 + $0xb0] sm:$0xff] %v3933
        %3966 = vst [vmem:[#allocation5 + $0xb8] sm:$0xff] %v3934
        %3967 = vst [vmem:[#allocation5 + $0xc0] sm:$0xff] %v3935
        %3968 = vst [vmem:[#allocation5 + $0xc8] sm:$0xff] %v3936
        %3969 = vst [vmem:[#allocation5 + $0xd0] sm:$0xff] %v3937
        %3970 = vst [vmem:[#allocation5 + $0xd8] sm:$0xff] %v3938
        %3971 = vst [vmem:[#allocation5 + $0xe0] sm:$0xff] %v3939
        %3972 = vst [vmem:[#allocation5 + $0xe8] sm:$0xff] %v3940
        %3973 = vst [vmem:[#allocation5 + $0xf0] sm:$0xff] %v3941
        %3974 = vst [vmem:[#allocation5 + $0xf8] sm:$0xff] %v3942
        %3975 = vst.msk [vmem:[#allocation3] sm:$0xff] %vm3268, %v2340
        %3976 = vst.msk [vmem:[#allocation3 + $0x8] sm:$0xff] %vm3268, %v2341
        %3977 = vst.msk [vmem:[#allocation3 + $0x10] sm:$0xff] %vm3268, %v2342
        %3978 = vst.msk [vmem:[#allocation3 + $0x18] sm:$0xff] %vm3268, %v2343
        %3979 = vst.msk [vmem:[#allocation3 + $0x20] sm:$0xff] %vm3268, %v2344
        %3980 = vst.msk [vmem:[#allocation3 + $0x28] sm:$0xff] %vm3268, %v2345
        %3981 = vst.msk [vmem:[#allocation3 + $0x30] sm:$0xff] %vm3268, %v2346
        %3982 = vst.msk [vmem:[#allocation3 + $0x38] sm:$0xff] %vm3268, %v2347
        %3983 = vst.msk [vmem:[#allocation3 + $0x40] sm:$0xff] %vm3268, %v2348
        %3984 = vst.msk [vmem:[#allocation3 + $0x48] sm:$0xff] %vm3268, %v2349
        %3985 = vst.msk [vmem:[#allocation3 + $0x50] sm:$0xff] %vm3268, %v2350
        %3986 = vst.msk [vmem:[#allocation3 + $0x58] sm:$0xff] %vm3268, %v2351
        %3987 = vst.msk [vmem:[#allocation3 + $0x60] sm:$0xff] %vm3268, %v2352
        %3988 = vst.msk [vmem:[#allocation3 + $0x68] sm:$0xff] %vm3268, %v2353
        %3989 = vst.msk [vmem:[#allocation3 + $0x70] sm:$0xff] %vm3268, %v2354
        %3990 = vst.msk [vmem:[#allocation3 + $0x78] sm:$0xff] %vm3268, %v2355
        %3991 = vst.msk [vmem:[#allocation3 + $0x80] sm:$0xff] %vm3268, %v2356
        %3992 = vst.msk [vmem:[#allocation3 + $0x88] sm:$0xff] %vm3268, %v2357
        %3993 = vst.msk [vmem:[#allocation3 + $0x90] sm:$0xff] %vm3268, %v2358
        %3994 = vst.msk [vmem:[#allocation3 + $0x98] sm:$0xff] %vm3268, %v2359
        %3995 = vst.msk [vmem:[#allocation3 + $0xa0] sm:$0xff] %vm3268, %v2360
        %3996 = vst.msk [vmem:[#allocation3 + $0xa8] sm:$0xff] %vm3268, %v2361
        %3997 = vst.msk [vmem:[#allocation3 + $0xb0] sm:$0xff] %vm3268, %v2362
        %3998 = vst.msk [vmem:[#allocation3 + $0xb8] sm:$0xff] %vm3268, %v2363
        %3999 = vst.msk [vmem:[#allocation3 + $0xc0] sm:$0xff] %vm3268, %v2364
        %4000 = vst.msk [vmem:[#allocation3 + $0xc8] sm:$0xff] %vm3268, %v2365
        %4001 = vst.msk [vmem:[#allocation3 + $0xd0] sm:$0xff] %vm3268, %v2366
        %4002 = vst.msk [vmem:[#allocation3 + $0xd8] sm:$0xff] %vm3268, %v2367
        %4003 = vst.msk [vmem:[#allocation3 + $0xe0] sm:$0xff] %vm3268, %v2368
        %4004 = vst.msk [vmem:[#allocation3 + $0xe8] sm:$0xff] %vm3268, %v2369
        %4005 = vst.msk [vmem:[#allocation3 + $0xf0] sm:$0xff] %vm3268, %v2370
        %4006 = vst.msk [vmem:[#allocation3 + $0xf8] sm:$0xff] %vm3268, %v2371
        // Predicated region
        $region65: #{memory_efficient_attn_block.3} parent=59 // pred_check
          %p4007 = pneg %p461
        $region66: #{memory_efficient_attn_block.3} parent=59 // pred_check_branch
          %4009 = sbr.rel (%p4007) target = $region68
        $region67: #{memory_efficient_attn_block.3} parent=59 // pred_region
          %v4010 = vld [vmem:[#allocation5] sm:$0xff]
          %v4011 = vld [vmem:[#allocation5 + $0x8] sm:$0xff]
          %v4012 = vld [vmem:[#allocation5 + $0x10] sm:$0xff]
          %v4013 = vld [vmem:[#allocation5 + $0x18] sm:$0xff]
          %v4014 = vld [vmem:[#allocation5 + $0x20] sm:$0xff]
          %v4015 = vld [vmem:[#allocation5 + $0x28] sm:$0xff]
          %v4016 = vld [vmem:[#allocation5 + $0x30] sm:$0xff]
          %v4017 = vld [vmem:[#allocation5 + $0x38] sm:$0xff]
          %v4018 = vld [vmem:[#allocation5 + $0x40] sm:$0xff]
          %v4019 = vld [vmem:[#allocation5 + $0x48] sm:$0xff]
          %v4020 = vld [vmem:[#allocation5 + $0x50] sm:$0xff]
          %v4021 = vld [vmem:[#allocation5 + $0x58] sm:$0xff]
          %v4022 = vld [vmem:[#allocation5 + $0x60] sm:$0xff]
          %v4023 = vld [vmem:[#allocation5 + $0x68] sm:$0xff]
          %v4024 = vld [vmem:[#allocation5 + $0x70] sm:$0xff]
          %v4025 = vld [vmem:[#allocation5 + $0x78] sm:$0xff]
          %v4026 = vld [vmem:[#allocation5 + $0x80] sm:$0xff]
          %v4027 = vld [vmem:[#allocation5 + $0x88] sm:$0xff]
          %v4028 = vld [vmem:[#allocation5 + $0x90] sm:$0xff]
          %v4029 = vld [vmem:[#allocation5 + $0x98] sm:$0xff]
          %v4030 = vld [vmem:[#allocation5 + $0xa0] sm:$0xff]
          %v4031 = vld [vmem:[#allocation5 + $0xa8] sm:$0xff]
          %v4032 = vld [vmem:[#allocation5 + $0xb0] sm:$0xff]
          %v4033 = vld [vmem:[#allocation5 + $0xb8] sm:$0xff]
          %v4034 = vld [vmem:[#allocation5 + $0xc0] sm:$0xff]
          %v4035 = vld [vmem:[#allocation5 + $0xc8] sm:$0xff]
          %v4036 = vld [vmem:[#allocation5 + $0xd0] sm:$0xff]
          %v4037 = vld [vmem:[#allocation5 + $0xd8] sm:$0xff]
          %v4038 = vld [vmem:[#allocation5 + $0xe0] sm:$0xff]
          %v4039 = vld [vmem:[#allocation5 + $0xe8] sm:$0xff]
          %v4040 = vld [vmem:[#allocation5 + $0xf0] sm:$0xff]
          %v4041 = vld [vmem:[#allocation5 + $0xf8] sm:$0xff]
          %v4042 = vld [vmem:[#allocation4] sm:$0xff]
          %v4043 = vld [vmem:[#allocation4 + $0x8] sm:$0xff]
          %v4044 = vld [vmem:[#allocation4 + $0x10] sm:$0xff]
          %v4045 = vld [vmem:[#allocation4 + $0x18] sm:$0xff]
          %v4046 = vld [vmem:[#allocation4 + $0x20] sm:$0xff]
          %v4047 = vld [vmem:[#allocation4 + $0x28] sm:$0xff]
          %v4048 = vld [vmem:[#allocation4 + $0x30] sm:$0xff]
          %v4049 = vld [vmem:[#allocation4 + $0x38] sm:$0xff]
          %v4050 = vld [vmem:[#allocation4 + $0x40] sm:$0xff]
          %v4051 = vld [vmem:[#allocation4 + $0x48] sm:$0xff]
          %v4052 = vld [vmem:[#allocation4 + $0x50] sm:$0xff]
          %v4053 = vld [vmem:[#allocation4 + $0x58] sm:$0xff]
          %v4054 = vld [vmem:[#allocation4 + $0x60] sm:$0xff]
          %v4055 = vld [vmem:[#allocation4 + $0x68] sm:$0xff]
          %v4056 = vld [vmem:[#allocation4 + $0x70] sm:$0xff]
          %v4057 = vld [vmem:[#allocation4 + $0x78] sm:$0xff]
          %v4058 = vld [vmem:[#allocation4 + $0x80] sm:$0xff]
          %v4059 = vld [vmem:[#allocation4 + $0x88] sm:$0xff]
          %v4060 = vld [vmem:[#allocation4 + $0x90] sm:$0xff]
          %v4061 = vld [vmem:[#allocation4 + $0x98] sm:$0xff]
          %v4062 = vld [vmem:[#allocation4 + $0xa0] sm:$0xff]
          %v4063 = vld [vmem:[#allocation4 + $0xa8] sm:$0xff]
          %v4064 = vld [vmem:[#allocation4 + $0xb0] sm:$0xff]
          %v4065 = vld [vmem:[#allocation4 + $0xb8] sm:$0xff]
          %v4066 = vld [vmem:[#allocation4 + $0xc0] sm:$0xff]
          %v4067 = vld [vmem:[#allocation4 + $0xc8] sm:$0xff]
          %v4068 = vld [vmem:[#allocation4 + $0xd0] sm:$0xff]
          %v4069 = vld [vmem:[#allocation4 + $0xd8] sm:$0xff]
          %v4070 = vld [vmem:[#allocation4 + $0xe0] sm:$0xff]
          %v4071 = vld [vmem:[#allocation4 + $0xe8] sm:$0xff]
          %v4072 = vld [vmem:[#allocation4 + $0xf0] sm:$0xff]
          %v4073 = vld [vmem:[#allocation4 + $0xf8] sm:$0xff]
          %v4074 = vrcp.pop %v4042
          %v4075 = vrcp.pop %v4043
          %v4076 = vrcp.pop %v4044
          %v4077 = vrcp.pop %v4045
          %v4078 = vrcp.pop %v4046
          %v4079 = vrcp.pop %v4047
          %v4080 = vrcp.pop %v4048
          %v4081 = vrcp.pop %v4049
          %v4082 = vrcp.pop %v4050
          %v4083 = vrcp.pop %v4051
          %v4084 = vrcp.pop %v4052
          %v4085 = vrcp.pop %v4053
          %v4086 = vrcp.pop %v4054
          %v4087 = vrcp.pop %v4055
          %v4088 = vrcp.pop %v4056
          %v4089 = vrcp.pop %v4057
          %v4090 = vrcp.pop %v4058
          %v4091 = vrcp.pop %v4059
          %v4092 = vrcp.pop %v4060
          %v4093 = vrcp.pop %v4061
          %v4094 = vrcp.pop %v4062
          %v4095 = vrcp.pop %v4063
          %v4096 = vrcp.pop %v4064
          %v4097 = vrcp.pop %v4065
          %v4098 = vrcp.pop %v4066
          %v4099 = vrcp.pop %v4067
          %v4100 = vrcp.pop %v4068
          %v4101 = vrcp.pop %v4069
          %v4102 = vrcp.pop %v4070
          %v4103 = vrcp.pop %v4071
          %v4104 = vrcp.pop %v4072
          %v4105 = vrcp.pop %v4073
          %4107 = vset.pattern.permute.xlu0 0
          %4108 = vperm.xlu0 %4107, %v4074
          %v4109 = vpop.permute.xlu0 %4108
          %4112 = vset.pattern.permute.xlu0 0
          %4113 = vperm.xlu0 %4112, %v4075
          %v4114 = vpop.permute.xlu0 %4113
          %4117 = vset.pattern.permute.xlu0 0
          %4118 = vperm.xlu0 %4117, %v4076
          %v4119 = vpop.permute.xlu0 %4118
          %4122 = vset.pattern.permute.xlu0 0
          %4123 = vperm.xlu0 %4122, %v4077
          %v4124 = vpop.permute.xlu0 %4123
          %4127 = vset.pattern.permute.xlu0 0
          %4128 = vperm.xlu0 %4127, %v4078
          %v4129 = vpop.permute.xlu0 %4128
          %4132 = vset.pattern.permute.xlu0 0
          %4133 = vperm.xlu0 %4132, %v4079
          %v4134 = vpop.permute.xlu0 %4133
          %4137 = vset.pattern.permute.xlu0 0
          %4138 = vperm.xlu0 %4137, %v4080
          %v4139 = vpop.permute.xlu0 %4138
          %4142 = vset.pattern.permute.xlu0 0
          %4143 = vperm.xlu0 %4142, %v4081
          %v4144 = vpop.permute.xlu0 %4143
          %4147 = vset.pattern.permute.xlu0 0
          %4148 = vperm.xlu0 %4147, %v4082
          %v4149 = vpop.permute.xlu0 %4148
          %4152 = vset.pattern.permute.xlu0 0
          %4153 = vperm.xlu0 %4152, %v4083
          %v4154 = vpop.permute.xlu0 %4153
          %4157 = vset.pattern.permute.xlu0 0
          %4158 = vperm.xlu0 %4157, %v4084
          %v4159 = vpop.permute.xlu0 %4158
          %4162 = vset.pattern.permute.xlu0 0
          %4163 = vperm.xlu0 %4162, %v4085
          %v4164 = vpop.permute.xlu0 %4163
          %4167 = vset.pattern.permute.xlu0 0
          %4168 = vperm.xlu0 %4167, %v4086
          %v4169 = vpop.permute.xlu0 %4168
          %4172 = vset.pattern.permute.xlu0 0
          %4173 = vperm.xlu0 %4172, %v4087
          %v4174 = vpop.permute.xlu0 %4173
          %4177 = vset.pattern.permute.xlu0 0
          %4178 = vperm.xlu0 %4177, %v4088
          %v4179 = vpop.permute.xlu0 %4178
          %4182 = vset.pattern.permute.xlu0 0
          %4183 = vperm.xlu0 %4182, %v4089
          %v4184 = vpop.permute.xlu0 %4183
          %4187 = vset.pattern.permute.xlu0 0
          %4188 = vperm.xlu0 %4187, %v4090
          %v4189 = vpop.permute.xlu0 %4188
          %4192 = vset.pattern.permute.xlu0 0
          %4193 = vperm.xlu0 %4192, %v4091
          %v4194 = vpop.permute.xlu0 %4193
          %4197 = vset.pattern.permute.xlu0 0
          %4198 = vperm.xlu0 %4197, %v4092
          %v4199 = vpop.permute.xlu0 %4198
          %4202 = vset.pattern.permute.xlu0 0
          %4203 = vperm.xlu0 %4202, %v4093
          %v4204 = vpop.permute.xlu0 %4203
          %4207 = vset.pattern.permute.xlu0 0
          %4208 = vperm.xlu0 %4207, %v4094
          %v4209 = vpop.permute.xlu0 %4208
          %4212 = vset.pattern.permute.xlu0 0
          %4213 = vperm.xlu0 %4212, %v4095
          %v4214 = vpop.permute.xlu0 %4213
          %4217 = vset.pattern.permute.xlu0 0
          %4218 = vperm.xlu0 %4217, %v4096
          %v4219 = vpop.permute.xlu0 %4218
          %4222 = vset.pattern.permute.xlu0 0
          %4223 = vperm.xlu0 %4222, %v4097
          %v4224 = vpop.permute.xlu0 %4223
          %4227 = vset.pattern.permute.xlu0 0
          %4228 = vperm.xlu0 %4227, %v4098
          %v4229 = vpop.permute.xlu0 %4228
          %4232 = vset.pattern.permute.xlu0 0
          %4233 = vperm.xlu0 %4232, %v4099
          %v4234 = vpop.permute.xlu0 %4233
          %4237 = vset.pattern.permute.xlu0 0
          %4238 = vperm.xlu0 %4237, %v4100
          %v4239 = vpop.permute.xlu0 %4238
          %4242 = vset.pattern.permute.xlu0 0
          %4243 = vperm.xlu0 %4242, %v4101
          %v4244 = vpop.permute.xlu0 %4243
          %4247 = vset.pattern.permute.xlu0 0
          %4248 = vperm.xlu0 %4247, %v4102
          %v4249 = vpop.permute.xlu0 %4248
          %4252 = vset.pattern.permute.xlu0 0
          %4253 = vperm.xlu0 %4252, %v4103
          %v4254 = vpop.permute.xlu0 %4253
          %4257 = vset.pattern.permute.xlu0 0
          %4258 = vperm.xlu0 %4257, %v4104
          %v4259 = vpop.permute.xlu0 %4258
          %4262 = vset.pattern.permute.xlu0 0
          %4263 = vperm.xlu0 %4262, %v4105
          %v4264 = vpop.permute.xlu0 %4263
          %v4266 = vmul.f32 %v4010, %v4109
          %v4267 = vmul.f32 %v4011, %v4114
          %v4268 = vmul.f32 %v4012, %v4119
          %v4269 = vmul.f32 %v4013, %v4124
          %v4270 = vmul.f32 %v4014, %v4129
          %v4271 = vmul.f32 %v4015, %v4134
          %v4272 = vmul.f32 %v4016, %v4139
          %v4273 = vmul.f32 %v4017, %v4144
          %v4274 = vmul.f32 %v4018, %v4149
          %v4275 = vmul.f32 %v4019, %v4154
          %v4276 = vmul.f32 %v4020, %v4159
          %v4277 = vmul.f32 %v4021, %v4164
          %v4278 = vmul.f32 %v4022, %v4169
          %v4279 = vmul.f32 %v4023, %v4174
          %v4280 = vmul.f32 %v4024, %v4179
          %v4281 = vmul.f32 %v4025, %v4184
          %v4282 = vmul.f32 %v4026, %v4189
          %v4283 = vmul.f32 %v4027, %v4194
          %v4284 = vmul.f32 %v4028, %v4199
          %v4285 = vmul.f32 %v4029, %v4204
          %v4286 = vmul.f32 %v4030, %v4209
          %v4287 = vmul.f32 %v4031, %v4214
          %v4288 = vmul.f32 %v4032, %v4219
          %v4289 = vmul.f32 %v4033, %v4224
          %v4290 = vmul.f32 %v4034, %v4229
          %v4291 = vmul.f32 %v4035, %v4234
          %v4292 = vmul.f32 %v4036, %v4239
          %v4293 = vmul.f32 %v4037, %v4244
          %v4294 = vmul.f32 %v4038, %v4249
          %v4295 = vmul.f32 %v4039, %v4254
          %v4296 = vmul.f32 %v4040, %v4259
          %v4297 = vmul.f32 %v4041, %v4264
          %v4298 = vpack.c.bf16 %v4267, %v4266
          %v4299 = vpack.c.bf16 %v4269, %v4268
          %v4300 = vpack.c.bf16 %v4271, %v4270
          %v4301 = vpack.c.bf16 %v4273, %v4272
          %v4302 = vpack.c.bf16 %v4275, %v4274
          %v4303 = vpack.c.bf16 %v4277, %v4276
          %v4304 = vpack.c.bf16 %v4279, %v4278
          %v4305 = vpack.c.bf16 %v4281, %v4280
          %v4306 = vpack.c.bf16 %v4283, %v4282
          %v4307 = vpack.c.bf16 %v4285, %v4284
          %v4308 = vpack.c.bf16 %v4287, %v4286
          %v4309 = vpack.c.bf16 %v4289, %v4288
          %v4310 = vpack.c.bf16 %v4291, %v4290
          %v4311 = vpack.c.bf16 %v4293, %v4292
          %v4312 = vpack.c.bf16 %v4295, %v4294
          %v4313 = vpack.c.bf16 %v4297, %v4296
          %v4314 = vld [vmem:[%s8] sm:$0xf]
          %v4315 = vld [vmem:[%s8 + $0x4] sm:$0xf]
          %v4316 = vld [vmem:[%s8 + $0x8] sm:$0xf]
          %v4317 = vld [vmem:[%s8 + $0xc] sm:$0xf]
          %v4318 = vld [vmem:[%s8 + $0x10] sm:$0xf]
          %v4319 = vld [vmem:[%s8 + $0x14] sm:$0xf]
          %v4320 = vld [vmem:[%s8 + $0x18] sm:$0xf]
          %v4321 = vld [vmem:[%s8 + $0x1c] sm:$0xf]
          %v4322 = vld [vmem:[%s8 + $0x20] sm:$0xf]
          %v4323 = vld [vmem:[%s8 + $0x24] sm:$0xf]
          %v4324 = vld [vmem:[%s8 + $0x28] sm:$0xf]
          %v4325 = vld [vmem:[%s8 + $0x2c] sm:$0xf]
          %v4326 = vld [vmem:[%s8 + $0x30] sm:$0xf]
          %v4327 = vld [vmem:[%s8 + $0x34] sm:$0xf]
          %v4328 = vld [vmem:[%s8 + $0x38] sm:$0xf]
          %v4329 = vld [vmem:[%s8 + $0x3c] sm:$0xf]
          %v4330 = vld [vmem:[%s9] sm:$0x1]
          %v4332 = vlaneseq
          %v4333 = vshrl.u32 %v4332, 7
          %v4334 = vsub.s32 0, %v4333
          %v4335 = vrot.slane %v4330, %v4334
          %v4353 = vunpack.c.l.b16 %v4314
          %v4354 = vunpack.c.l.b16 %v4315
          %v4355 = vunpack.c.l.b16 %v4316
          %v4356 = vunpack.c.l.b16 %v4317
          %v4357 = vunpack.c.l.b16 %v4318
          %v4358 = vunpack.c.l.b16 %v4319
          %v4359 = vunpack.c.l.b16 %v4320
          %v4360 = vunpack.c.l.b16 %v4321
          %v4361 = vunpack.c.l.b16 %v4322
          %v4362 = vunpack.c.l.b16 %v4323
          %v4363 = vunpack.c.l.b16 %v4324
          %v4364 = vunpack.c.l.b16 %v4325
          %v4365 = vunpack.c.l.b16 %v4326
          %v4366 = vunpack.c.l.b16 %v4327
          %v4367 = vunpack.c.l.b16 %v4328
          %v4368 = vunpack.c.l.b16 %v4329
          %v4369 = vpack.c.b16 %v4354, %v4353
          %v4370 = vpack.c.b16 %v4356, %v4355
          %v4371 = vpack.c.b16 %v4358, %v4357
          %v4372 = vpack.c.b16 %v4360, %v4359
          %v4373 = vpack.c.b16 %v4362, %v4361
          %v4374 = vpack.c.b16 %v4364, %v4363
          %v4375 = vpack.c.b16 %v4366, %v4365
          %v4376 = vpack.c.b16 %v4368, %v4367
          %4385 = vmatprep.subr.bf16.mxu0 0
          %4386 = vmatpush1.bf16.msra.mxu0 %v4369
          %4387 = vmatprep.subr.bf16.mxu0 0
          %4388 = vmatpush1.bf16.msra.mxu0 %v4370
          %4389 = vmatprep.subr.bf16.mxu0 0
          %4390 = vmatpush1.bf16.msra.mxu0 %v4371
          %4391 = vmatprep.subr.bf16.mxu0 0
          %4392 = vmatpush1.bf16.msra.mxu0 %v4372
          %4393 = vmatprep.subr.bf16.mxu0 0
          %4394 = vmatpush1.bf16.msra.mxu0 %v4373
          %4395 = vmatprep.subr.bf16.mxu0 0
          %4396 = vmatpush1.bf16.msra.mxu0 %v4374
          %4397 = vmatprep.subr.bf16.mxu0 0
          %4398 = vmatpush1.bf16.msra.mxu0 %v4375
          %4399 = vmatprep.subr.bf16.mxu0 0
          %4400 = vmatpush1.bf16.msra.mxu0 %v4376
          %4401 = vmatprep.subr.bf16.mxu0 0
          %4402 = vmatpush1.bf16.msra.mxu0 0
          %4403 = vmatprep.subr.bf16.mxu0 0
          %4404 = vmatpush1.bf16.msra.mxu0 0
          %4405 = vmatprep.subr.bf16.mxu0 0
          %4406 = vmatpush1.bf16.msra.mxu0 0
          %4407 = vmatprep.subr.bf16.mxu0 0
          %4408 = vmatpush1.bf16.msra.mxu0 0
          %4409 = vmatprep.subr.bf16.mxu0 0
          %4410 = vmatpush1.bf16.msra.mxu0 0
          %4411 = vmatprep.subr.bf16.mxu0 0
          %4412 = vmatpush1.bf16.msra.mxu0 0
          %4413 = vmatprep.subr.bf16.mxu0 0
          %4414 = vmatpush1.bf16.msra.mxu0 0
          %4415 = vmatprep.subr.bf16.mxu0 0
          %4416 = vmatpush1.bf16.msra.mxu0 0
          %4417 = vmatprep.mubr.bf16.mxu0 0
          %4418 = vmatmul.mubr.bf16.gmra.mrb[0].mxu0 %v4298
          %v4419 = vpop.f32.mrb[0].mxu0
          %v4420 = vadd.f32 %v4335, %v4419
          %v4421 = vpop.f32.mrb[0].mxu0
          %v4422 = vpop.f32.mrb[0].mxu0
          %v4423 = vadd.f32 %v4335, %v4422
          %v4424 = vpop.f32.mrb[0].mxu0
          %4425 = vmatprep.mubr.bf16.mxu0 0
          %4426 = vmatmul.mubr.bf16.gmra.mrb[0].mxu0 %v4299
          %v4427 = vpop.f32.mrb[0].mxu0
          %v4428 = vadd.f32 %v4335, %v4427
          %v4429 = vpop.f32.mrb[0].mxu0
          %v4430 = vpop.f32.mrb[0].mxu0
          %v4431 = vadd.f32 %v4335, %v4430
          %v4432 = vpop.f32.mrb[0].mxu0
          %4433 = vmatprep.mubr.bf16.mxu0 0
          %4434 = vmatmul.mubr.bf16.gmra.mrb[0].mxu0 %v4300
          %v4435 = vpop.f32.mrb[0].mxu0
          %v4436 = vadd.f32 %v4335, %v4435
          %v4437 = vpop.f32.mrb[0].mxu0
          %v4438 = vpop.f32.mrb[0].mxu0
          %v4439 = vadd.f32 %v4335, %v4438
          %v4440 = vpop.f32.mrb[0].mxu0
          %4441 = vmatprep.mubr.bf16.mxu0 0
          %4442 = vmatmul.mubr.bf16.gmra.mrb[0].mxu0 %v4301
          %v4443 = vpop.f32.mrb[0].mxu0
          %v4444 = vadd.f32 %v4335, %v4443
          %v4445 = vpop.f32.mrb[0].mxu0
          %v4446 = vpop.f32.mrb[0].mxu0
          %v4447 = vadd.f32 %v4335, %v4446
          %v4448 = vpop.f32.mrb[0].mxu0
          %4449 = vmatprep.mubr.bf16.mxu0 0
          %4450 = vmatmul.mubr.bf16.gmra.mrb[0].mxu0 %v4302
          %v4451 = vpop.f32.mrb[0].mxu0
          %v4452 = vadd.f32 %v4335, %v4451
          %v4453 = vpop.f32.mrb[0].mxu0
          %v4454 = vpop.f32.mrb[0].mxu0
          %v4455 = vadd.f32 %v4335, %v4454
          %v4456 = vpop.f32.mrb[0].mxu0
          %4457 = vmatprep.mubr.bf16.mxu0 0
          %4458 = vmatmul.mubr.bf16.gmra.mrb[0].mxu0 %v4303
          %v4459 = vpop.f32.mrb[0].mxu0
          %v4460 = vadd.f32 %v4335, %v4459
          %v4461 = vpop.f32.mrb[0].mxu0
          %v4462 = vpop.f32.mrb[0].mxu0
          %v4463 = vadd.f32 %v4335, %v4462
          %v4464 = vpop.f32.mrb[0].mxu0
          %4465 = vmatprep.mubr.bf16.mxu0 0
          %4466 = vmatmul.mubr.bf16.gmra.mrb[0].mxu0 %v4304
          %v4467 = vpop.f32.mrb[0].mxu0
          %v4468 = vadd.f32 %v4335, %v4467
          %v4469 = vpop.f32.mrb[0].mxu0
          %v4470 = vpop.f32.mrb[0].mxu0
          %v4471 = vadd.f32 %v4335, %v4470
          %v4472 = vpop.f32.mrb[0].mxu0
          %4473 = vmatprep.mubr.bf16.mxu0 0
          %4474 = vmatmul.mubr.bf16.gmra.mrb[0].mxu0 %v4305
          %v4475 = vpop.f32.mrb[0].mxu0
          %v4476 = vadd.f32 %v4335, %v4475
          %v4477 = vpop.f32.mrb[0].mxu0
          %v4478 = vpop.f32.mrb[0].mxu0
          %v4479 = vadd.f32 %v4335, %v4478
          %v4480 = vpop.f32.mrb[0].mxu0
          %4481 = vmatprep.mubr.bf16.mxu0 0
          %4482 = vmatmul.mubr.bf16.gmra.mrb[0].mxu0 %v4306
          %v4483 = vpop.f32.mrb[0].mxu0
          %v4484 = vadd.f32 %v4335, %v4483
          %v4485 = vpop.f32.mrb[0].mxu0
          %v4486 = vpop.f32.mrb[0].mxu0
          %v4487 = vadd.f32 %v4335, %v4486
          %v4488 = vpop.f32.mrb[0].mxu0
          %4489 = vmatprep.mubr.bf16.mxu0 0
          %4490 = vmatmul.mubr.bf16.gmra.mrb[0].mxu0 %v4307
          %v4491 = vpop.f32.mrb[0].mxu0
          %v4492 = vadd.f32 %v4335, %v4491
          %v4493 = vpop.f32.mrb[0].mxu0
          %v4494 = vpop.f32.mrb[0].mxu0
          %v4495 = vadd.f32 %v4335, %v4494
          %v4496 = vpop.f32.mrb[0].mxu0
          %4497 = vmatprep.mubr.bf16.mxu0 0
          %4498 = vmatmul.mubr.bf16.gmra.mrb[0].mxu0 %v4308
          %v4499 = vpop.f32.mrb[0].mxu0
          %v4500 = vadd.f32 %v4335, %v4499
          %v4501 = vpop.f32.mrb[0].mxu0
          %v4502 = vpop.f32.mrb[0].mxu0
          %v4503 = vadd.f32 %v4335, %v4502
          %v4504 = vpop.f32.mrb[0].mxu0
          %4505 = vmatprep.mubr.bf16.mxu0 0
          %4506 = vmatmul.mubr.bf16.gmra.mrb[0].mxu0 %v4309
          %v4507 = vpop.f32.mrb[0].mxu0
          %v4508 = vadd.f32 %v4335, %v4507
          %v4509 = vpop.f32.mrb[0].mxu0
          %v4510 = vpop.f32.mrb[0].mxu0
          %v4511 = vadd.f32 %v4335, %v4510
          %v4512 = vpop.f32.mrb[0].mxu0
          %4513 = vmatprep.mubr.bf16.mxu0 0
          %4514 = vmatmul.mubr.bf16.gmra.mrb[0].mxu0 %v4310
          %v4515 = vpop.f32.mrb[0].mxu0
          %v4516 = vadd.f32 %v4335, %v4515
          %v4517 = vpop.f32.mrb[0].mxu0
          %v4518 = vpop.f32.mrb[0].mxu0
          %v4519 = vadd.f32 %v4335, %v4518
          %v4520 = vpop.f32.mrb[0].mxu0
          %4521 = vmatprep.mubr.bf16.mxu0 0
          %4522 = vmatmul.mubr.bf16.gmra.mrb[0].mxu0 %v4311
          %v4523 = vpop.f32.mrb[0].mxu0
          %v4524 = vadd.f32 %v4335, %v4523
          %v4525 = vpop.f32.mrb[0].mxu0
          %v4526 = vpop.f32.mrb[0].mxu0
          %v4527 = vadd.f32 %v4335, %v4526
          %v4528 = vpop.f32.mrb[0].mxu0
          %4529 = vmatprep.mubr.bf16.mxu0 0
          %4530 = vmatmul.mubr.bf16.gmra.mrb[0].mxu0 %v4312
          %v4531 = vpop.f32.mrb[0].mxu0
          %v4532 = vadd.f32 %v4335, %v4531
          %v4533 = vpop.f32.mrb[0].mxu0
          %v4534 = vpop.f32.mrb[0].mxu0
          %v4535 = vadd.f32 %v4335, %v4534
          %v4536 = vpop.f32.mrb[0].mxu0
          %4537 = vmatprep.mubr.bf16.mxu0 0
          %4538 = vmatmul.mubr.bf16.gmra.mrb[0].mxu0 %v4313
          %v4539 = vpop.f32.mrb[0].mxu0
          %v4540 = vadd.f32 %v4335, %v4539
          %v4541 = vpop.f32.mrb[0].mxu0
          %v4542 = vpop.f32.mrb[0].mxu0
          %v4543 = vadd.f32 %v4335, %v4542
          %v4544 = vpop.f32.mrb[0].mxu0
          %4545 = vdwg.mxu0
          %v4546 = vld [vmem:[%s441] sm:$0xff]
          %v4547 = vld [vmem:[%s441 + $0x8] sm:$0xff]
          %v4548 = vld [vmem:[%s441 + $0x10] sm:$0xff]
          %v4549 = vld [vmem:[%s441 + $0x18] sm:$0xff]
          %v4550 = vld [vmem:[%s441 + $0x20] sm:$0xff]
          %v4551 = vld [vmem:[%s441 + $0x28] sm:$0xff]
          %v4552 = vld [vmem:[%s441 + $0x30] sm:$0xff]
          %v4553 = vld [vmem:[%s441 + $0x38] sm:$0xff]
          %v4554 = vld [vmem:[%s441 + $0x40] sm:$0xff]
          %v4555 = vld [vmem:[%s441 + $0x48] sm:$0xff]
          %v4556 = vld [vmem:[%s441 + $0x50] sm:$0xff]
          %v4557 = vld [vmem:[%s441 + $0x58] sm:$0xff]
          %v4558 = vld [vmem:[%s441 + $0x60] sm:$0xff]
          %v4559 = vld [vmem:[%s441 + $0x68] sm:$0xff]
          %v4560 = vld [vmem:[%s441 + $0x70] sm:$0xff]
          %v4561 = vld [vmem:[%s441 + $0x78] sm:$0xff]
          %v4562 = vld [vmem:[%s441 + $0x80] sm:$0xff]
          %v4563 = vld [vmem:[%s441 + $0x88] sm:$0xff]
          %v4564 = vld [vmem:[%s441 + $0x90] sm:$0xff]
          %v4565 = vld [vmem:[%s441 + $0x98] sm:$0xff]
          %v4566 = vld [vmem:[%s441 + $0xa0] sm:$0xff]
          %v4567 = vld [vmem:[%s441 + $0xa8] sm:$0xff]
          %v4568 = vld [vmem:[%s441 + $0xb0] sm:$0xff]
          %v4569 = vld [vmem:[%s441 + $0xb8] sm:$0xff]
          %v4570 = vld [vmem:[%s441 + $0xc0] sm:$0xff]
          %v4571 = vld [vmem:[%s441 + $0xc8] sm:$0xff]
          %v4572 = vld [vmem:[%s441 + $0xd0] sm:$0xff]
          %v4573 = vld [vmem:[%s441 + $0xd8] sm:$0xff]
          %v4574 = vld [vmem:[%s441 + $0xe0] sm:$0xff]
          %v4575 = vld [vmem:[%s441 + $0xe8] sm:$0xff]
          %v4576 = vld [vmem:[%s441 + $0xf0] sm:$0xff]
          %v4577 = vld [vmem:[%s441 + $0xf8] sm:$0xff]
          %v4578 = vadd.f32 %v4546, %v4420
          %v4579 = vadd.f32 %v4547, %v4423
          %v4580 = vadd.f32 %v4548, %v4428
          %v4581 = vadd.f32 %v4549, %v4431
          %v4582 = vadd.f32 %v4550, %v4436
          %v4583 = vadd.f32 %v4551, %v4439
          %v4584 = vadd.f32 %v4552, %v4444
          %v4585 = vadd.f32 %v4553, %v4447
          %v4586 = vadd.f32 %v4554, %v4452
          %v4587 = vadd.f32 %v4555, %v4455
          %v4588 = vadd.f32 %v4556, %v4460
          %v4589 = vadd.f32 %v4557, %v4463
          %v4590 = vadd.f32 %v4558, %v4468
          %v4591 = vadd.f32 %v4559, %v4471
          %v4592 = vadd.f32 %v4560, %v4476
          %v4593 = vadd.f32 %v4561, %v4479
          %v4594 = vadd.f32 %v4562, %v4484
          %v4595 = vadd.f32 %v4563, %v4487
          %v4596 = vadd.f32 %v4564, %v4492
          %v4597 = vadd.f32 %v4565, %v4495
          %v4598 = vadd.f32 %v4566, %v4500
          %v4599 = vadd.f32 %v4567, %v4503
          %v4600 = vadd.f32 %v4568, %v4508
          %v4601 = vadd.f32 %v4569, %v4511
          %v4602 = vadd.f32 %v4570, %v4516
          %v4603 = vadd.f32 %v4571, %v4519
          %v4604 = vadd.f32 %v4572, %v4524
          %v4605 = vadd.f32 %v4573, %v4527
          %v4606 = vadd.f32 %v4574, %v4532
          %v4607 = vadd.f32 %v4575, %v4535
          %v4608 = vadd.f32 %v4576, %v4540
          %v4609 = vadd.f32 %v4577, %v4543
          %4610 = vst [vmem:[%s432] sm:$0xff] %v4578
          %4611 = vst [vmem:[%s432 + $0x8] sm:$0xff] %v4579
          %4612 = vst [vmem:[%s432 + $0x10] sm:$0xff] %v4580
          %4613 = vst [vmem:[%s432 + $0x18] sm:$0xff] %v4581
          %4614 = vst [vmem:[%s432 + $0x20] sm:$0xff] %v4582
          %4615 = vst [vmem:[%s432 + $0x28] sm:$0xff] %v4583
          %4616 = vst [vmem:[%s432 + $0x30] sm:$0xff] %v4584
          %4617 = vst [vmem:[%s432 + $0x38] sm:$0xff] %v4585
          %4618 = vst [vmem:[%s432 + $0x40] sm:$0xff] %v4586
          %4619 = vst [vmem:[%s432 + $0x48] sm:$0xff] %v4587
          %4620 = vst [vmem:[%s432 + $0x50] sm:$0xff] %v4588
          %4621 = vst [vmem:[%s432 + $0x58] sm:$0xff] %v4589
          %4622 = vst [vmem:[%s432 + $0x60] sm:$0xff] %v4590
          %4623 = vst [vmem:[%s432 + $0x68] sm:$0xff] %v4591
          %4624 = vst [vmem:[%s432 + $0x70] sm:$0xff] %v4592
          %4625 = vst [vmem:[%s432 + $0x78] sm:$0xff] %v4593
          %4626 = vst [vmem:[%s432 + $0x80] sm:$0xff] %v4594
          %4627 = vst [vmem:[%s432 + $0x88] sm:$0xff] %v4595
          %4628 = vst [vmem:[%s432 + $0x90] sm:$0xff] %v4596
          %4629 = vst [vmem:[%s432 + $0x98] sm:$0xff] %v4597
          %4630 = vst [vmem:[%s432 + $0xa0] sm:$0xff] %v4598
          %4631 = vst [vmem:[%s432 + $0xa8] sm:$0xff] %v4599
          %4632 = vst [vmem:[%s432 + $0xb0] sm:$0xff] %v4600
          %4633 = vst [vmem:[%s432 + $0xb8] sm:$0xff] %v4601
          %4634 = vst [vmem:[%s432 + $0xc0] sm:$0xff] %v4602
          %4635 = vst [vmem:[%s432 + $0xc8] sm:$0xff] %v4603
          %4636 = vst [vmem:[%s432 + $0xd0] sm:$0xff] %v4604
          %4637 = vst [vmem:[%s432 + $0xd8] sm:$0xff] %v4605
          %4638 = vst [vmem:[%s432 + $0xe0] sm:$0xff] %v4606
          %4639 = vst [vmem:[%s432 + $0xe8] sm:$0xff] %v4607
          %4640 = vst [vmem:[%s432 + $0xf0] sm:$0xff] %v4608
          %4641 = vst [vmem:[%s432 + $0xf8] sm:$0xff] %v4609
        $region68: #{memory_efficient_attn_block.3} parent=59 // pred_fallthru
          _
        %s4642 = sand.u32 %s287, 1
        %s4643 = scalar_lea.sflag [#allocation7], %s4642
        %s4644 = sand.u32 %s287, 1
        %s4645 = smul.addr %s4644, 256
        %s4646 = scalar_lea.vmem [#allocation6], %s4645
        // Predicated region
        $region69: #{memory_efficient_attn_block.3} parent=59 // pred_check
          %p4647 = pneg %p297
        $region70: #{memory_efficient_attn_block.3} parent=59 // pred_check_branch
          %4649 = sbr.rel (%p4647) target = $region72
        $region71: #{memory_efficient_attn_block.3} parent=59 // pred_region
          %s4650 = smul.u32 32, %s30
          %s4652 = ssub.s32 4096, 4096
          %4653 = vsyncadd %s4643, %s4652
          %s4654 = smul.addr %s29, 128
          %s4655 = sadd.s32 %s4650, %s4654
          %s4656 = smul.addr %s4655, 128
          %s4657 = scalar_lea.hbm %s10, %s4656
          %s4658 = sshll.u32 %s4646, 4
          %s4659 = int_to_ptr.vmem [resolvable:$true] %s4658
          %4664 = dma.vmem_to_hbm [thread:$0]  %s4659, 4096, %s4657, %s4643, 128, 128, 8
        $region72: #{memory_efficient_attn_block.3} parent=59 // pred_fallthru
          _
      $region60: #{memory_efficient_attn_block.3} parent=5 // pred_fallthru
        _
      %p4665 = scmp.le.s32.totalorder 2, %s19
      // Predicated region
      $region73: #{memory_efficient_attn_block.3} parent=5 // pred_check
        %p4666 = pneg %p4665
      $region74: #{memory_efficient_attn_block.3} parent=5 // pred_check_branch
        %4668 = sbr.rel (%p4666) target = $region76
      $region75: #{memory_efficient_attn_block.3} parent=5 // pred_region
        %s4669 = ssub.s32 %s19, 2
        // Predicated region
        $region77: #{memory_efficient_attn_block.3} parent=75 // pred_check
          %p4670 = pneg %p303
        $region78: #{memory_efficient_attn_block.3} parent=75 // pred_check_branch
          %4672 = sbr.rel (%p4670) target = $region80
        $region79: #{memory_efficient_attn_block.3} parent=75 // pred_region
          %s4673 = sand.u32 %s288, 1
          %s4674 = scalar_lea.sflag [#allocation7], %s4673
          %s4675 = sand.u32 %s288, 1
          %s4676 = smul.addr %s4675, 256
          %s4677 = scalar_lea.vmem [#allocation6], %s4676
          %4678 = dma.done %s4674, 4096
        $region80: #{memory_efficient_attn_block.3} parent=75 // pred_fallthru
          _
      $region76: #{memory_efficient_attn_block.3} parent=5 // pred_fallthru
        _
    $region6: #{memory_efficient_attn_block.3} parent=1 // loop_footer
      %s23 = sadd.s32 1, %s19
    $region7: #{memory_efficient_attn_block.3} parent=1 // loop_footer_branch
      %18 = sbr.rel target = $region3
    $region8: #{memory_efficient_attn_block.3} parent=1 // loop_exit
      _
    %4679 = vsyncpa [#allocation7], 1
    %s4680 = scalar_lea.sflag [#allocation7], 1
    %4681 = vsyncpa %s4680, 1

</llo_original>
